<compile_context>
chip_gen: v7x
topology: tpu7x:2x2x1
jax: 0.10.0
libtpu: 0.0.40
codegen_flags: <defaults>
</compile_context>

<pallas_src>
import functools

import jax
import jax.numpy as jnp
from jax.experimental import pallas as pl
from jax.experimental.pallas import tpu as pltpu

LANE = 128
SUBLANE = 8
DIN_PAD = 128  # padded input-feature width for the small W_in x matmul


def _round_up(x, m):
    return (x + m - 1) // m * m


def gru_linear_kernel(xh_ref, h_ref, x_ref, w_g_ref, w_in_ref, w_lin_ref,
                      b_ref, o_ref, *, hp):
    """Fused GRUCell step + Linear projection.

    PyTorch GRUCell semantics:
      r  = sigmoid(W_ir x + b_ir + W_hr h + b_hr)
      z  = sigmoid(W_iz x + b_iz + W_hz h + b_hz)
      n  = tanh  (W_in x + b_in + r * (W_hn h + b_hn))
      h' = (1 - z) * n + z * h
      out = h' @ W_lin.T + b_lin
    Gate columns are packed into 128-aligned stripes of width `hp`.
    """
    # One fused MXU push: [r_pre | z_pre | W_hn h] over xh = [x | h]  (bf16 -> f32)
    g = jnp.dot(xh_ref[...], w_g_ref[...], preferred_element_type=jnp.float32)
    g = g + b_ref[:, 0:3 * hp]            # [b_ir+b_hr | b_iz+b_hz | b_hn]

    r = jax.nn.sigmoid(g[:, 0:hp])
    z = jax.nn.sigmoid(g[:, hp:2 * hp])
    hn = g[:, 2 * hp:3 * hp]              # W_hn h + b_hn  (padding lanes are 0)

    # i_n = W_in x + b_in  -- kept separate because r multiplies only hn.
    i_n = jnp.dot(x_ref[...], w_in_ref[...], preferred_element_type=jnp.float32)
    i_n = i_n + b_ref[:, 3 * hp:4 * hp]

    n = jnp.tanh(i_n + r * hn)
    h = h_ref[...]
    h_new = (1.0 - z) * n + z * h         # f32 epilogue (v5e-safe)

    out = jnp.dot(h_new.astype(jnp.bfloat16), w_lin_ref[...],
                  preferred_element_type=jnp.float32)
    out = out + b_ref[:, 4 * hp:]

    # Single lane-dense output slab: [h_new | out]
    o_ref[:, 0:hp] = h_new
    o_ref[:, hp:] = out.astype(o_ref.dtype)


def pack_params(params, d_in, d_out, d_hidden):
    """One-time packing of PyTorch-layout weights into fused, padded, bf16 slabs."""
    H, Din, Dout = d_hidden, d_in, d_out
    Hp = _round_up(H, LANE)
    Kp = _round_up(Din + H, LANE)
    Np = _round_up(Dout, LANE)

    f32 = jnp.float32
    w_ih = params["w_ih"].astype(f32)     # (3H, Din)
    w_hh = params["w_hh"].astype(f32)     # (3H, H)
    b_ih = params["b_ih"].astype(f32)     # (3H,)
    b_hh = params["b_hh"].astype(f32)     # (3H,)

    W_ir, W_iz, W_inn = w_ih[0:H], w_ih[H:2 * H], w_ih[2 * H:3 * H]
    W_hr, W_hz, W_hn = w_hh[0:H], w_hh[H:2 * H], w_hh[2 * H:3 * H]

    # Fused gate weight: rows follow xh = [x | h]; columns are 128-aligned stripes
    # [r | z | n_h]  (n_h uses only the h rows).
    w_g = jnp.zeros((Kp, 3 * Hp), f32)
    w_g = w_g.at[0:Din, 0:H].set(W_ir.T)
    w_g = w_g.at[Din:Din + H, 0:H].set(W_hr.T)
    w_g = w_g.at[0:Din, Hp:Hp + H].set(W_iz.T)
    w_g = w_g.at[Din:Din + H, Hp:Hp + H].set(W_hz.T)
    w_g = w_g.at[Din:Din + H, 2 * Hp:2 * Hp + H].set(W_hn.T)

    w_in = jnp.zeros((DIN_PAD, Hp), f32).at[0:Din, 0:H].set(W_inn.T)
    w_lin = jnp.zeros((Hp, Np), f32).at[0:H, 0:Dout].set(
        params["w_lin"].astype(f32).T)

    # Bias slab: [b_ir+b_hr | b_iz+b_hz | b_hn | b_in | b_lin], 128-aligned stripes.
    bias = jnp.zeros((1, 4 * Hp + Np), f32)
    bias = bias.at[0, 0:H].set(b_ih[0:H] + b_hh[0:H])
    bias = bias.at[0, Hp:Hp + H].set(b_ih[H:2 * H] + b_hh[H:2 * H])
    bias = bias.at[0, 2 * Hp:2 * Hp + H].set(b_hh[2 * H:3 * H])
    bias = bias.at[0, 3 * Hp:3 * Hp + H].set(b_ih[2 * H:3 * H])
    bias = bias.at[0, 4 * Hp:4 * Hp + Dout].set(params["b_lin"].astype(f32))

    return {
        "w_g": w_g.astype(jnp.bfloat16),
        "w_in": w_in.astype(jnp.bfloat16),
        "w_lin": w_lin.astype(jnp.bfloat16),
        "bias": bias,
    }


def gru_model_forward(x, h_0, packed, *, d_out):
    """Wrapper: pad/concat activations (glue) and run the fused Pallas kernel."""
    B, d_in = x.shape
    H = h_0.shape[1]
    w_g, w_in, w_lin, bias = (packed["w_g"], packed["w_in"],
                              packed["w_lin"], packed["bias"])
    Kp, Hp3 = w_g.shape
    Hp = Hp3 // 3
    Np = w_lin.shape[1]

    # Batch tiling: multiples of 8 rows; marked "parallel" so large batches shard
    # across both v7x TensorCores. Weights get a constant index_map (VMEM-resident).
    Bp = _round_up(B, SUBLANE)
    TB = Bp if Bp <= 256 else 256
    Bp = _round_up(Bp, TB)
    n_tiles = Bp // TB

    f32 = jnp.float32
    xh = jnp.zeros((Bp, Kp), f32)
    xh = xh.at[:B, 0:d_in].set(x.astype(f32))
    xh = xh.at[:B, d_in:d_in + H].set(h_0.astype(f32))
    xh = xh.astype(jnp.bfloat16)

    x_p = jnp.zeros((Bp, DIN_PAD), jnp.bfloat16).at[:B, 0:d_in].set(
        x.astype(jnp.bfloat16))
    h_p = jnp.zeros((Bp, Hp), f32).at[:B, 0:H].set(h_0.astype(f32))

    row_spec = lambda w: pl.BlockSpec((TB, w), lambda i: (i, 0))
    const_spec = lambda shape: pl.BlockSpec(shape, lambda i: (0, 0))

    slab = pl.pallas_call(
        functools.partial(gru_linear_kernel, hp=Hp),
        grid=(n_tiles,),
        in_specs=[
            row_spec(Kp),                  # xh = [x | h]      (bf16)
            row_spec(Hp),                  # h                 (f32)
            row_spec(DIN_PAD),             # x (padded)        (bf16)
            const_spec((Kp, 3 * Hp)),      # fused gate weight (bf16, resident)
            const_spec((DIN_PAD, Hp)),     # W_in              (bf16, resident)
            const_spec((Hp, Np)),          # W_lin             (bf16, resident)
            const_spec((1, 4 * Hp + Np)),  # fused bias slab   (f32, resident)
        ],
        out_specs=pl.BlockSpec((TB, Hp + Np), lambda i: (i, 0)),
        out_shape=jax.ShapeDtypeStruct((Bp, Hp + Np), f32),
        compiler_params=pltpu.CompilerParams(
            dimension_semantics=("parallel",),
            vmem_limit_bytes=32 * 1024 * 1024),
    )(xh, h_p, x_p, w_g, w_in, w_lin, bias)

    h_new = slab[:B, 0:H]
    out = slab[:B, Hp:Hp + d_out]
    return out, h_new


def init_params(key, d_in, d_out, d_hidden):
    """Deterministic init mirroring PyTorch's GRUCell/Linear uniform init."""
    ks = jax.random.split(key, 6)
    k_gru = 1.0 / jnp.sqrt(d_hidden)
    k_lin = 1.0 / jnp.sqrt(d_hidden)
    u = lambda k, shape, bound: jax.random.uniform(
        k, shape, jnp.float32, minval=-bound, maxval=bound)
    return {
        "w_ih": u(ks[0], (3 * d_hidden, d_in), k_gru),
        "w_hh": u(ks[1], (3 * d_hidden, d_hidden), k_gru),
        "b_ih": u(ks[2], (3 * d_hidden,), k_gru),
        "b_hh": u(ks[3], (3 * d_hidden,), k_gru),
        "w_lin": u(ks[4], (d_out, d_hidden), k_lin),
        "b_lin": u(ks[5], (d_out,), k_lin),
    }


def gru_model_reference(x, h_0, params):
    """Pure-JAX f32 reference of the PyTorch forward, for correctness checking."""
    H = h_0.shape[1]
    gi = x @ params["w_ih"].T + params["b_ih"]
    gh = h_0 @ params["w_hh"].T + params["b_hh"]
    i_r, i_z, i_n = gi[:, :H], gi[:, H:2 * H], gi[:, 2 * H:]
    h_r, h_z, h_n = gh[:, :H], gh[:, H:2 * H], gh[:, 2 * H:]
    r = jax.nn.sigmoid(i_r + h_r)
    z = jax.nn.sigmoid(i_z + h_z)
    n = jnp.tanh(i_n + r * h_n)
    h = (1.0 - z) * n + z * h_0
    out = h @ params["w_lin"].T + params["b_lin"]
    return out, h


if __name__ == "__main__":
    # Module spec constants: GRUModel(D_in=6, D_out=9, D_Hidden=725); small batch.
    B, D_in, D_out, D_Hidden = 4, 6, 9, 725

    key = jax.random.PRNGKey(0)
    k_params, k_x, k_h = jax.random.split(key, 3)

    params = init_params(k_params, D_in, D_out, D_Hidden)
    x = jax.random.normal(k_x, (B, D_in), jnp.float32)
    h_0 = jax.random.normal(k_h, (B, D_Hidden), jnp.float32)

    packed = pack_params(params, D_in, D_out, D_Hidden)
    fwd = jax.jit(functools.partial(gru_model_forward, d_out=D_out))
    out_t, h_new = fwd(x, h_0, packed)
    jax.block_until_ready((out_t, h_new))

    out_ref, h_ref = gru_model_reference(x, h_0, params)
    assert out_t.shape == (B, D_out) and h_new.shape == (B, D_Hidden)
    # bf16 matmul operands vs f32 reference -> modest tolerance.
    assert jnp.allclose(out_t, out_ref, atol=3e-2, rtol=3e-2), \
        float(jnp.max(jnp.abs(out_t - out_ref)))
    assert jnp.allclose(h_new, h_ref, atol=3e-2, rtol=3e-2), \
        float(jnp.max(jnp.abs(h_new - h_ref)))

    print("KERNEL_OK")
</pallas_src>

<mosaic_0001>
module attributes {stable_mosaic.version = 11 : i64} {
  func.func @gru_linear_kernel(%arg0: i32, %arg1: memref<8x768xbf16, #tpu.memory_space<vmem>>, %arg2: memref<8x768xf32, #tpu.memory_space<vmem>>, %arg3: memref<8x128xbf16, #tpu.memory_space<vmem>>, %arg4: memref<768x2304xbf16, #tpu.memory_space<vmem>>, %arg5: memref<128x768xbf16, #tpu.memory_space<vmem>>, %arg6: memref<768x128xbf16, #tpu.memory_space<vmem>>, %arg7: memref<1x3200xf32, #tpu.memory_space<vmem>>, %arg8: memref<8x896xf32, #tpu.memory_space<vmem>>) attributes {dimension_semantics = [#tpu.dimension_semantics<parallel>], iteration_bounds = array<i64: 1>, scalar_prefetch = 0 : i64, scratch_operands = 0 : i64, tpu.core_type = #tpu.core_type<tc>, window_params = [{transform_indices = @transform_0, window_bounds = array<i64: 8, 768>}, {transform_indices = @transform_1, window_bounds = array<i64: 8, 768>}, {transform_indices = @transform_2, window_bounds = array<i64: 8, 128>}, {pipeline_mode = #tpu.pipeline_mode<synchronous>, transform_indices = @transform_3, window_bounds = array<i64: 768, 2304>}, {pipeline_mode = #tpu.pipeline_mode<synchronous>, transform_indices = @transform_4, window_bounds = array<i64: 128, 768>}, {pipeline_mode = #tpu.pipeline_mode<synchronous>, transform_indices = @transform_5, window_bounds = array<i64: 768, 128>}, {pipeline_mode = #tpu.pipeline_mode<synchronous>, transform_indices = @transform_6, window_bounds = array<i64: 1, 3200>}, {transform_indices = @transform_7, window_bounds = array<i64: 8, 896>}]} {
    %c0 = arith.constant 0 : index
    %c0_0 = arith.constant 0 : index
    %0 = vector.load %arg1[%c0, %c0_0] : memref<8x768xbf16, #tpu.memory_space<vmem>>, vector<8x768xbf16>
    %c0_1 = arith.constant 0 : index
    %c0_2 = arith.constant 0 : index
    %1 = vector.load %arg4[%c0_1, %c0_2] : memref<768x2304xbf16, #tpu.memory_space<vmem>>, vector<768x2304xbf16>
    %cst = arith.constant dense<0.000000e+00> : vector<8x2304xf32>
    %2 = tpu.matmul %0, %1, %cst {dimension_numbers = #tpu.dot_dimension_numbers<[1], [0], [0], [1], [0, 0, 1, 1], [], []>} : vector<8x768xbf16>, vector<768x2304xbf16>, vector<8x2304xf32> -> vector<8x2304xf32>
    %c0_3 = arith.constant 0 : index
    %c0_4 = arith.constant 0 : index
    %3 = vector.load %arg7[%c0_3, %c0_4] : memref<1x3200xf32, #tpu.memory_space<vmem>>, vector<1x2304xf32>
    %4 = vector.broadcast %3 : vector<1x2304xf32> to vector<8x2304xf32>
    %5 = arith.addf %2, %4 : vector<8x2304xf32>
    %6 = vector.extract_strided_slice %5 {offsets = [0, 0], sizes = [8, 768], strides = [1, 1]} : vector<8x2304xf32> to vector<8x768xf32>
    %7 = arith.negf %6 : vector<8x768xf32>
    %8 = math.exp %7 : vector<8x768xf32>
    %cst_5 = arith.constant 1.000000e+00 : f32
    %9 = vector.broadcast %cst_5 : f32 to vector<8x768xf32>
    %10 = arith.addf %9, %8 : vector<8x768xf32>
    %11 = arith.divf %9, %10 : vector<8x768xf32>
    %12 = vector.extract_strided_slice %5 {offsets = [0, 768], sizes = [8, 768], strides = [1, 1]} : vector<8x2304xf32> to vector<8x768xf32>
    %13 = arith.negf %12 : vector<8x768xf32>
    %14 = math.exp %13 : vector<8x768xf32>
    %cst_6 = arith.constant 1.000000e+00 : f32
    %15 = vector.broadcast %cst_6 : f32 to vector<8x768xf32>
    %16 = arith.addf %15, %14 : vector<8x768xf32>
    %17 = arith.divf %15, %16 : vector<8x768xf32>
    %18 = vector.extract_strided_slice %5 {offsets = [0, 1536], sizes = [8, 768], strides = [1, 1]} : vector<8x2304xf32> to vector<8x768xf32>
    %c0_7 = arith.constant 0 : index
    %c0_8 = arith.constant 0 : index
    %19 = vector.load %arg3[%c0_7, %c0_8] : memref<8x128xbf16, #tpu.memory_space<vmem>>, vector<8x128xbf16>
    %c0_9 = arith.constant 0 : index
    %c0_10 = arith.constant 0 : index
    %20 = vector.load %arg5[%c0_9, %c0_10] : memref<128x768xbf16, #tpu.memory_space<vmem>>, vector<128x768xbf16>
    %cst_11 = arith.constant dense<0.000000e+00> : vector<8x768xf32>
    %21 = tpu.matmul %19, %20, %cst_11 {dimension_numbers = #tpu.dot_dimension_numbers<[1], [0], [0], [1], [0, 0, 1, 1], [], []>} : vector<8x128xbf16>, vector<128x768xbf16>, vector<8x768xf32> -> vector<8x768xf32>
    %c0_12 = arith.constant 0 : index
    %c2304 = arith.constant 2304 : index
    %22 = vector.load %arg7[%c0_12, %c2304] : memref<1x3200xf32, #tpu.memory_space<vmem>>, vector<1x768xf32>
    %23 = vector.broadcast %22 : vector<1x768xf32> to vector<8x768xf32>
    %24 = arith.addf %21, %23 : vector<8x768xf32>
    %25 = arith.mulf %11, %18 : vector<8x768xf32>
    %26 = arith.addf %24, %25 : vector<8x768xf32>
    %27 = math.tanh %26 : vector<8x768xf32>
    %c0_13 = arith.constant 0 : index
    %c0_14 = arith.constant 0 : index
    %28 = vector.load %arg2[%c0_13, %c0_14] : memref<8x768xf32, #tpu.memory_space<vmem>>, vector<8x768xf32>
    %cst_15 = arith.constant 1.000000e+00 : f32
    %29 = vector.broadcast %cst_15 : f32 to vector<8x768xf32>
    %30 = arith.subf %29, %17 : vector<8x768xf32>
    %31 = arith.mulf %30, %27 : vector<8x768xf32>
    %32 = arith.mulf %17, %28 : vector<8x768xf32>
    %33 = arith.addf %31, %32 : vector<8x768xf32>
    %34 = arith.truncf %33 : vector<8x768xf32> to vector<8x768xbf16>
    %c0_16 = arith.constant 0 : index
    %c0_17 = arith.constant 0 : index
    %35 = vector.load %arg6[%c0_16, %c0_17] : memref<768x128xbf16, #tpu.memory_space<vmem>>, vector<768x128xbf16>
    %cst_18 = arith.constant dense<0.000000e+00> : vector<8x128xf32>
    %36 = tpu.matmul %34, %35, %cst_18 {dimension_numbers = #tpu.dot_dimension_numbers<[1], [0], [0], [1], [0, 0, 1, 1], [], []>} : vector<8x768xbf16>, vector<768x128xbf16>, vector<8x128xf32> -> vector<8x128xf32>
    %c0_19 = arith.constant 0 : index
    %c3072 = arith.constant 3072 : index
    %37 = vector.load %arg7[%c0_19, %c3072] : memref<1x3200xf32, #tpu.memory_space<vmem>>, vector<1x128xf32>
    %38 = vector.broadcast %37 : vector<1x128xf32> to vector<8x128xf32>
    %39 = arith.addf %36, %38 : vector<8x128xf32>
    %c0_20 = arith.constant 0 : index
    %c0_21 = arith.constant 0 : index
    %40 = vector.load %arg8[%c0_20, %c0_21] : memref<8x896xf32, #tpu.memory_space<vmem>>, vector<8x768xf32>
    tpu.vector_store %arg8[%c0_20, %c0_21], %33 {strides = array<i32>} : memref<8x896xf32, #tpu.memory_space<vmem>>, vector<8x768xf32>,
    %c0_22 = arith.constant 0 : index
    %c768 = arith.constant 768 : index
    %41 = vector.load %arg8[%c0_22, %c768] : memref<8x896xf32, #tpu.memory_space<vmem>>, vector<8x128xf32>
    tpu.vector_store %arg8[%c0_22, %c768], %39 {strides = array<i32>} : memref<8x896xf32, #tpu.memory_space<vmem>>, vector<8x128xf32>,
    return
  }
  func.func @transform_0(%arg0: i32) -> (i32, i32) {
    %c0_i32 = arith.constant 0 : i32
    %c0_i32_0 = arith.constant 0 : i32
    return %arg0, %c0_i32 : i32, i32
  }
  func.func @transform_1(%arg0: i32) -> (i32, i32) {
    %c0_i32 = arith.constant 0 : i32
    %c0_i32_0 = arith.constant 0 : i32
    return %arg0, %c0_i32 : i32, i32
  }
  func.func @transform_2(%arg0: i32) -> (i32, i32) {
    %c0_i32 = arith.constant 0 : i32
    %c0_i32_0 = arith.constant 0 : i32
    return %arg0, %c0_i32 : i32, i32
  }
  func.func @transform_3(%arg0: i32) -> (i32, i32) {
    %c0_i32 = arith.constant 0 : i32
    %c0_i32_0 = arith.constant 0 : i32
    %c0_i32_1 = arith.constant 0 : i32
    return %c0_i32, %c0_i32_0 : i32, i32
  }
  func.func @transform_4(%arg0: i32) -> (i32, i32) {
    %c0_i32 = arith.constant 0 : i32
    %c0_i32_0 = arith.constant 0 : i32
    %c0_i32_1 = arith.constant 0 : i32
    return %c0_i32, %c0_i32_0 : i32, i32
  }
  func.func @transform_5(%arg0: i32) -> (i32, i32) {
    %c0_i32 = arith.constant 0 : i32
    %c0_i32_0 = arith.constant 0 : i32
    %c0_i32_1 = arith.constant 0 : i32
    return %c0_i32, %c0_i32_0 : i32, i32
  }
  func.func @transform_6(%arg0: i32) -> (i32, i32) {
    %c0_i32 = arith.constant 0 : i32
    %c0_i32_0 = arith.constant 0 : i32
    %c0_i32_1 = arith.constant 0 : i32
    return %c0_i32, %c0_i32_0 : i32, i32
  }
  func.func @transform_7(%arg0: i32) -> (i32, i32) {
    %c0_i32 = arith.constant 0 : i32
    %c0_i32_0 = arith.constant 0 : i32
    return %arg0, %c0_i32 : i32, i32
  }
}

</mosaic_0001>

<llo_original>
// kernel: gru_model_forward.1
$region0: #{gru_model_forward.1}
  #allocation0 [shape = 'u32[]', space=smem, size = 0x4, offset = 0x4, fixed_abs, tag = 'smem constant byte address 0x4 - core index']
  #allocation1 [shape = 'u32[144,128]{1,0:T(1,128)}', space=vmem, size = 0x12000, scoped, tag = 'internal scratch']
  %s0 = inlined_call_operand.vmem [shape: bf16[8,768], index: 0, kind: input, shape index: {}]
  %s1 = inlined_call_operand.vmem [shape: f32[8,768], index: 1, kind: input, shape index: {}]
  %s2 = inlined_call_operand.vmem [shape: bf16[8,128], index: 2, kind: input, shape index: {}]
  %s3 = inlined_call_operand.hbm [shape: bf16[768,2304], index: 3, kind: input, shape index: {}]
  %s4 = inlined_call_operand.hbm [shape: bf16[128,768], index: 4, kind: input, shape index: {}]
  %s5 = inlined_call_operand.hbm [shape: bf16[768,128], index: 5, kind: input, shape index: {}]
  %s6 = inlined_call_operand.hbm [shape: f32[1,3200], index: 6, kind: input, shape index: {}]
  %s7 = inlined_call_operand.vmem [shape: f32[8,896], index: 7, kind: output, shape index: {}]
  %s8 = sld [smem:[#allocation0]]
  $region54: #{gru_model_forward.1} parent=0
    _
  %s10 = ssub.s32 1, %s8
  %s11 = scalar_select 0, %s10, %s8
  $region1: #{gru_model_forward.1} parent=0
    #allocation2 [shape = 'u8[3538944]{0}', space=vmem, size = 0x360000, scoped, tag = 'input window, operand 3, single buffered']
    #allocation3 [shape = 's32[1]{0}', space=sflag, size = 0x4, scoped, tag = 'scoped memory for gru_model_forward.1']
    #allocation4 [shape = 'u8[196608]{0}', space=vmem, size = 0x30000, scoped, tag = 'input window, operand 4, single buffered']
    #allocation5 [shape = 's32[1]{0}', space=sflag, size = 0x4, scoped, tag = 'scoped memory for gru_model_forward.1']
    #allocation6 [shape = 'u8[196608]{0}', space=vmem, size = 0x30000, scoped, tag = 'input window, operand 5, single buffered']
    #allocation7 [shape = 'u8[12800]{0}', space=vmem, size = 0x3400, scoped, tag = 'input window, operand 6, single buffered']
    #allocation8 [shape = 's32[1]{0}', space=sflag, size = 0x4, scoped, tag = 'scoped memory for gru_model_forward.1']
    %12 = vsyncpa [#allocation3], 0
    %13 = vsyncpa [#allocation5], 0
    %14 = vsyncpa [#allocation8], 0
    // Predicated region
    $region2: #{gru_model_forward.1} parent=1 // pred_check
      _
    $region3: #{gru_model_forward.1} parent=1 // pred_check_branch
      %16 = sbr.rel (0) target = $region5
    $region4: #{gru_model_forward.1} parent=1 // pred_region
      _
    $region5: #{gru_model_forward.1} parent=1 // pred_fallthru
      _
    // Predicated region
    $region6: #{gru_model_forward.1} parent=1 // pred_check
      _
    $region7: #{gru_model_forward.1} parent=1 // pred_check_branch
      %18 = sbr.rel (0) target = $region9
    $region8: #{gru_model_forward.1} parent=1 // pred_region
      _
    $region9: #{gru_model_forward.1} parent=1 // pred_fallthru
      _
    // Predicated region
    $region10: #{gru_model_forward.1} parent=1 // pred_check
      _
    $region11: #{gru_model_forward.1} parent=1 // pred_check_branch
      %20 = sbr.rel (0) target = $region13
    $region12: #{gru_model_forward.1} parent=1 // pred_region
      _
    $region13: #{gru_model_forward.1} parent=1 // pred_fallthru
      _
    // Predicated region
    $region14: #{gru_model_forward.1} parent=1 // pred_check
      _
    $region15: #{gru_model_forward.1} parent=1 // pred_check_branch
      %22 = sbr.rel (0) target = $region17
    $region16: #{gru_model_forward.1} parent=1 // pred_region
      %s24 = ssub.s32 110592, 110592
      %25 = vsyncadd [#allocation3], %s24
      %s26 = sshll.u32 [#allocation2], 4
      %s27 = int_to_ptr.vmem [resolvable:$true] %s26
      %32 = dma.hbm_to_vmem [thread:$0]  %s3, 110592, %s27, [#allocation3], 1152, 1152, 72
    $region17: #{gru_model_forward.1} parent=1 // pred_fallthru
      _
    // Predicated region
    $region18: #{gru_model_forward.1} parent=1 // pred_check
      _
    $region19: #{gru_model_forward.1} parent=1 // pred_check_branch
      %34 = sbr.rel (0) target = $region21
    $region20: #{gru_model_forward.1} parent=1 // pred_region
      %s36 = ssub.s32 6144, 6144
      %37 = vsyncadd [#allocation5], %s36
      %s38 = sshll.u32 [#allocation4], 4
      %s39 = int_to_ptr.vmem [resolvable:$true] %s38
      %44 = dma.hbm_to_vmem [thread:$0]  %s4, 6144, %s39, [#allocation5], 384, 384, 24
    $region21: #{gru_model_forward.1} parent=1 // pred_fallthru
      _
    // Predicated region
    $region22: #{gru_model_forward.1} parent=1 // pred_check
      _
    $region23: #{gru_model_forward.1} parent=1 // pred_check_branch
      %46 = sbr.rel (0) target = $region25
    $region24: #{gru_model_forward.1} parent=1 // pred_region
      %s48 = ssub.s32 6144, 6144
      %49 = vsyncadd [#allocation5], %s48
      %s50 = sshll.u32 [#allocation6], 4
      %s51 = int_to_ptr.vmem [resolvable:$true] %s50
      %56 = dma.hbm_to_vmem [thread:$0]  %s5, 6144, %s51, [#allocation5], 64, 64, 4
    $region25: #{gru_model_forward.1} parent=1 // pred_fallthru
      _
    // Predicated region
    $region26: #{gru_model_forward.1} parent=1 // pred_check
      _
    $region27: #{gru_model_forward.1} parent=1 // pred_check_branch
      %58 = sbr.rel (0) target = $region29
    $region28: #{gru_model_forward.1} parent=1 // pred_region
      %s60 = ssub.s32 400, 400
      %61 = vsyncadd [#allocation8], %s60
      %s63 = sshll.u32 [#allocation7], 4
      %s64 = int_to_ptr.vmem [resolvable:$true] %s63
      %66 = dma.hbm_to_vmem [thread:$0]  %s6, 400, %s64, [#allocation8]
    $region29: #{gru_model_forward.1} parent=1 // pred_fallthru
      _
    // Predicated region
    $region30: #{gru_model_forward.1} parent=1 // pred_check
      _
    $region31: #{gru_model_forward.1} parent=1 // pred_check_branch
      %68 = sbr.rel (0) target = $region33
    $region32: #{gru_model_forward.1} parent=1 // pred_region
      %69 = dma.done [#allocation3], 110592
    $region33: #{gru_model_forward.1} parent=1 // pred_fallthru
      _
    // Predicated region
    $region34: #{gru_model_forward.1} parent=1 // pred_check
      _
    $region35: #{gru_model_forward.1} parent=1 // pred_check_branch
      %71 = sbr.rel (0) target = $region37
    $region36: #{gru_model_forward.1} parent=1 // pred_region
      %72 = dma.done [#allocation5], 6144
    $region37: #{gru_model_forward.1} parent=1 // pred_fallthru
      _
    // Predicated region
    $region38: #{gru_model_forward.1} parent=1 // pred_check
      _
    $region39: #{gru_model_forward.1} parent=1 // pred_check_branch
      %74 = sbr.rel (0) target = $region41
    $region40: #{gru_model_forward.1} parent=1 // pred_region
      %75 = dma.done [#allocation5], 6144
    $region41: #{gru_model_forward.1} parent=1 // pred_fallthru
      _
    // Predicated region
    $region42: #{gru_model_forward.1} parent=1 // pred_check
      _
    $region43: #{gru_model_forward.1} parent=1 // pred_check_branch
      %77 = sbr.rel (0) target = $region45
    $region44: #{gru_model_forward.1} parent=1 // pred_region
      %78 = dma.done [#allocation8], 400
    $region45: #{gru_model_forward.1} parent=1 // pred_fallthru
      _
    %v80 = vld [vmem:[%s0] sm:$0xff]
    %v81 = vld [vmem:[%s0 + $0x8] sm:$0xff]
    %v82 = vld [vmem:[%s0 + $0x10] sm:$0xff]
    %v83 = vld [vmem:[#allocation2] sm:$0xff]
    %v84 = vld [vmem:[#allocation2 + $0x8] sm:$0xff]
    %v85 = vld [vmem:[#allocation2 + $0x10] sm:$0xff]
    %v86 = vld [vmem:[#allocation2 + $0x18] sm:$0xff]
    %v87 = vld [vmem:[#allocation2 + $0x20] sm:$0xff]
    %v88 = vld [vmem:[#allocation2 + $0x28] sm:$0xff]
    %v89 = vld [vmem:[#allocation2 + $0x30] sm:$0xff]
    %v90 = vld [vmem:[#allocation2 + $0x38] sm:$0xff]
    %v91 = vld [vmem:[#allocation2 + $0x40] sm:$0xff]
    %v92 = vld [vmem:[#allocation2 + $0x48] sm:$0xff]
    %v93 = vld [vmem:[#allocation2 + $0x50] sm:$0xff]
    %v94 = vld [vmem:[#allocation2 + $0x58] sm:$0xff]
    %v95 = vld [vmem:[#allocation2 + $0x60] sm:$0xff]
    %v96 = vld [vmem:[#allocation2 + $0x68] sm:$0xff]
    %v97 = vld [vmem:[#allocation2 + $0x70] sm:$0xff]
    %v98 = vld [vmem:[#allocation2 + $0x78] sm:$0xff]
    %v99 = vld [vmem:[#allocation2 + $0x80] sm:$0xff]
    %v100 = vld [vmem:[#allocation2 + $0x88] sm:$0xff]
    %v101 = vld [vmem:[#allocation2 + $0x90] sm:$0xff]
    %v102 = vld [vmem:[#allocation2 + $0x98] sm:$0xff]
    %v103 = vld [vmem:[#allocation2 + $0xa0] sm:$0xff]
    %v104 = vld [vmem:[#allocation2 + $0xa8] sm:$0xff]
    %v105 = vld [vmem:[#allocation2 + $0xb0] sm:$0xff]
    %v106 = vld [vmem:[#allocation2 + $0xb8] sm:$0xff]
    %v107 = vld [vmem:[#allocation2 + $0xc0] sm:$0xff]
    %v108 = vld [vmem:[#allocation2 + $0xc8] sm:$0xff]
    %v109 = vld [vmem:[#allocation2 + $0xd0] sm:$0xff]
    %v110 = vld [vmem:[#allocation2 + $0xd8] sm:$0xff]
    %v111 = vld [vmem:[#allocation2 + $0xe0] sm:$0xff]
    %v112 = vld [vmem:[#allocation2 + $0xe8] sm:$0xff]
    %v113 = vld [vmem:[#allocation2 + $0xf0] sm:$0xff]
    %v114 = vld [vmem:[#allocation2 + $0xf8] sm:$0xff]
    %v115 = vld [vmem:[#allocation2 + $0x100] sm:$0xff]
    %v116 = vld [vmem:[#allocation2 + $0x108] sm:$0xff]
    %v117 = vld [vmem:[#allocation2 + $0x110] sm:$0xff]
    %v118 = vld [vmem:[#allocation2 + $0x118] sm:$0xff]
    %v119 = vld [vmem:[#allocation2 + $0x120] sm:$0xff]
    %v120 = vld [vmem:[#allocation2 + $0x128] sm:$0xff]
    %v121 = vld [vmem:[#allocation2 + $0x130] sm:$0xff]
    %v122 = vld [vmem:[#allocation2 + $0x138] sm:$0xff]
    %v123 = vld [vmem:[#allocation2 + $0x140] sm:$0xff]
    %v124 = vld [vmem:[#allocation2 + $0x148] sm:$0xff]
    %v125 = vld [vmem:[#allocation2 + $0x150] sm:$0xff]
    %v126 = vld [vmem:[#allocation2 + $0x158] sm:$0xff]
    %v127 = vld [vmem:[#allocation2 + $0x160] sm:$0xff]
    %v128 = vld [vmem:[#allocation2 + $0x168] sm:$0xff]
    %v129 = vld [vmem:[#allocation2 + $0x170] sm:$0xff]
    %v130 = vld [vmem:[#allocation2 + $0x178] sm:$0xff]
    %v131 = vld [vmem:[#allocation2 + $0x180] sm:$0xff]
    %v132 = vld [vmem:[#allocation2 + $0x188] sm:$0xff]
    %v133 = vld [vmem:[#allocation2 + $0x190] sm:$0xff]
    %v134 = vld [vmem:[#allocation2 + $0x198] sm:$0xff]
    %v135 = vld [vmem:[#allocation2 + $0x1a0] sm:$0xff]
    %v136 = vld [vmem:[#allocation2 + $0x1a8] sm:$0xff]
    %v137 = vld [vmem:[#allocation2 + $0x1b0] sm:$0xff]
    %v138 = vld [vmem:[#allocation2 + $0x1b8] sm:$0xff]
    %v139 = vld [vmem:[#allocation2 + $0x1c0] sm:$0xff]
    %v140 = vld [vmem:[#allocation2 + $0x1c8] sm:$0xff]
    %v141 = vld [vmem:[#allocation2 + $0x1d0] sm:$0xff]
    %v142 = vld [vmem:[#allocation2 + $0x1d8] sm:$0xff]
    %v143 = vld [vmem:[#allocation2 + $0x1e0] sm:$0xff]
    %v144 = vld [vmem:[#allocation2 + $0x1e8] sm:$0xff]
    %v145 = vld [vmem:[#allocation2 + $0x1f0] sm:$0xff]
    %v146 = vld [vmem:[#allocation2 + $0x1f8] sm:$0xff]
    %v147 = vld [vmem:[#allocation2 + $0x200] sm:$0xff]
    %v148 = vld [vmem:[#allocation2 + $0x208] sm:$0xff]
    %v149 = vld [vmem:[#allocation2 + $0x210] sm:$0xff]
    %v150 = vld [vmem:[#allocation2 + $0x218] sm:$0xff]
    %v151 = vld [vmem:[#allocation2 + $0x220] sm:$0xff]
    %v152 = vld [vmem:[#allocation2 + $0x228] sm:$0xff]
    %v153 = vld [vmem:[#allocation2 + $0x230] sm:$0xff]
    %v154 = vld [vmem:[#allocation2 + $0x238] sm:$0xff]
    %v155 = vld [vmem:[#allocation2 + $0x240] sm:$0xff]
    %v156 = vld [vmem:[#allocation2 + $0x248] sm:$0xff]
    %v157 = vld [vmem:[#allocation2 + $0x250] sm:$0xff]
    %v158 = vld [vmem:[#allocation2 + $0x258] sm:$0xff]
    %v159 = vld [vmem:[#allocation2 + $0x260] sm:$0xff]
    %v160 = vld [vmem:[#allocation2 + $0x268] sm:$0xff]
    %v161 = vld [vmem:[#allocation2 + $0x270] sm:$0xff]
    %v162 = vld [vmem:[#allocation2 + $0x278] sm:$0xff]
    %v163 = vld [vmem:[#allocation2 + $0x280] sm:$0xff]
    %v164 = vld [vmem:[#allocation2 + $0x288] sm:$0xff]
    %v165 = vld [vmem:[#allocation2 + $0x290] sm:$0xff]
    %v166 = vld [vmem:[#allocation2 + $0x298] sm:$0xff]
    %v167 = vld [vmem:[#allocation2 + $0x2a0] sm:$0xff]
    %v168 = vld [vmem:[#allocation2 + $0x2a8] sm:$0xff]
    %v169 = vld [vmem:[#allocation2 + $0x2b0] sm:$0xff]
    %v170 = vld [vmem:[#allocation2 + $0x2b8] sm:$0xff]
    %v171 = vld [vmem:[#allocation2 + $0x2c0] sm:$0xff]
    %v172 = vld [vmem:[#allocation2 + $0x2c8] sm:$0xff]
    %v173 = vld [vmem:[#allocation2 + $0x2d0] sm:$0xff]
    %v174 = vld [vmem:[#allocation2 + $0x2d8] sm:$0xff]
    %v175 = vld [vmem:[#allocation2 + $0x2e0] sm:$0xff]
    %v176 = vld [vmem:[#allocation2 + $0x2e8] sm:$0xff]
    %v177 = vld [vmem:[#allocation2 + $0x2f0] sm:$0xff]
    %v178 = vld [vmem:[#allocation2 + $0x2f8] sm:$0xff]
    %v179 = vld [vmem:[#allocation2 + $0x300] sm:$0xff]
    %v180 = vld [vmem:[#allocation2 + $0x308] sm:$0xff]
    %v181 = vld [vmem:[#allocation2 + $0x310] sm:$0xff]
    %v182 = vld [vmem:[#allocation2 + $0x318] sm:$0xff]
    %v183 = vld [vmem:[#allocation2 + $0x320] sm:$0xff]
    %v184 = vld [vmem:[#allocation2 + $0x328] sm:$0xff]
    %v185 = vld [vmem:[#allocation2 + $0x330] sm:$0xff]
    %v186 = vld [vmem:[#allocation2 + $0x338] sm:$0xff]
    %v187 = vld [vmem:[#allocation2 + $0x340] sm:$0xff]
    %v188 = vld [vmem:[#allocation2 + $0x348] sm:$0xff]
    %v189 = vld [vmem:[#allocation2 + $0x350] sm:$0xff]
    %v190 = vld [vmem:[#allocation2 + $0x358] sm:$0xff]
    %v191 = vld [vmem:[#allocation2 + $0x360] sm:$0xff]
    %v192 = vld [vmem:[#allocation2 + $0x368] sm:$0xff]
    %v193 = vld [vmem:[#allocation2 + $0x370] sm:$0xff]
    %v194 = vld [vmem:[#allocation2 + $0x378] sm:$0xff]
    %v195 = vld [vmem:[#allocation2 + $0x380] sm:$0xff]
    %v196 = vld [vmem:[#allocation2 + $0x388] sm:$0xff]
    %v197 = vld [vmem:[#allocation2 + $0x390] sm:$0xff]
    %v198 = vld [vmem:[#allocation2 + $0x398] sm:$0xff]
    %v199 = vld [vmem:[#allocation2 + $0x3a0] sm:$0xff]
    %v200 = vld [vmem:[#allocation2 + $0x3a8] sm:$0xff]
    %v201 = vld [vmem:[#allocation2 + $0x3b0] sm:$0xff]
    %v202 = vld [vmem:[#allocation2 + $0x3b8] sm:$0xff]
    %v203 = vld [vmem:[#allocation2 + $0x3c0] sm:$0xff]
    %v204 = vld [vmem:[#allocation2 + $0x3c8] sm:$0xff]
    %v205 = vld [vmem:[#allocation2 + $0x3d0] sm:$0xff]
    %v206 = vld [vmem:[#allocation2 + $0x3d8] sm:$0xff]
    %v207 = vld [vmem:[#allocation2 + $0x3e0] sm:$0xff]
    %v208 = vld [vmem:[#allocation2 + $0x3e8] sm:$0xff]
    %v209 = vld [vmem:[#allocation2 + $0x3f0] sm:$0xff]
    %v210 = vld [vmem:[#allocation2 + $0x3f8] sm:$0xff]
    %v211 = vld [vmem:[#allocation2 + $0x400] sm:$0xff]
    %v212 = vld [vmem:[#allocation2 + $0x408] sm:$0xff]
    %v213 = vld [vmem:[#allocation2 + $0x410] sm:$0xff]
    %v214 = vld [vmem:[#allocation2 + $0x418] sm:$0xff]
    %v215 = vld [vmem:[#allocation2 + $0x420] sm:$0xff]
    %v216 = vld [vmem:[#allocation2 + $0x428] sm:$0xff]
    %v217 = vld [vmem:[#allocation2 + $0x430] sm:$0xff]
    %v218 = vld [vmem:[#allocation2 + $0x438] sm:$0xff]
    %v219 = vld [vmem:[#allocation2 + $0x440] sm:$0xff]
    %v220 = vld [vmem:[#allocation2 + $0x448] sm:$0xff]
    %v221 = vld [vmem:[#allocation2 + $0x450] sm:$0xff]
    %v222 = vld [vmem:[#allocation2 + $0x458] sm:$0xff]
    %v223 = vld [vmem:[#allocation2 + $0x460] sm:$0xff]
    %v224 = vld [vmem:[#allocation2 + $0x468] sm:$0xff]
    %v225 = vld [vmem:[#allocation2 + $0x470] sm:$0xff]
    %v226 = vld [vmem:[#allocation2 + $0x478] sm:$0xff]
    %v227 = vld [vmem:[#allocation2 + $0x480] sm:$0xff]
    %v228 = vld [vmem:[#allocation2 + $0x488] sm:$0xff]
    %v229 = vld [vmem:[#allocation2 + $0x490] sm:$0xff]
    %v230 = vld [vmem:[#allocation2 + $0x498] sm:$0xff]
    %v231 = vld [vmem:[#allocation2 + $0x4a0] sm:$0xff]
    %v232 = vld [vmem:[#allocation2 + $0x4a8] sm:$0xff]
    %v233 = vld [vmem:[#allocation2 + $0x4b0] sm:$0xff]
    %v234 = vld [vmem:[#allocation2 + $0x4b8] sm:$0xff]
    %v235 = vld [vmem:[#allocation2 + $0x4c0] sm:$0xff]
    %v236 = vld [vmem:[#allocation2 + $0x4c8] sm:$0xff]
    %v237 = vld [vmem:[#allocation2 + $0x4d0] sm:$0xff]
    %v238 = vld [vmem:[#allocation2 + $0x4d8] sm:$0xff]
    %v239 = vld [vmem:[#allocation2 + $0x4e0] sm:$0xff]
    %v240 = vld [vmem:[#allocation2 + $0x4e8] sm:$0xff]
    %v241 = vld [vmem:[#allocation2 + $0x4f0] sm:$0xff]
    %v242 = vld [vmem:[#allocation2 + $0x4f8] sm:$0xff]
    %v243 = vld [vmem:[#allocation2 + $0x500] sm:$0xff]
    %v244 = vld [vmem:[#allocation2 + $0x508] sm:$0xff]
    %v245 = vld [vmem:[#allocation2 + $0x510] sm:$0xff]
    %v246 = vld [vmem:[#allocation2 + $0x518] sm:$0xff]
    %v247 = vld [vmem:[#allocation2 + $0x520] sm:$0xff]
    %v248 = vld [vmem:[#allocation2 + $0x528] sm:$0xff]
    %v249 = vld [vmem:[#allocation2 + $0x530] sm:$0xff]
    %v250 = vld [vmem:[#allocation2 + $0x538] sm:$0xff]
    %v251 = vld [vmem:[#allocation2 + $0x540] sm:$0xff]
    %v252 = vld [vmem:[#allocation2 + $0x548] sm:$0xff]
    %v253 = vld [vmem:[#allocation2 + $0x550] sm:$0xff]
    %v254 = vld [vmem:[#allocation2 + $0x558] sm:$0xff]
    %v255 = vld [vmem:[#allocation2 + $0x560] sm:$0xff]
    %v256 = vld [vmem:[#allocation2 + $0x568] sm:$0xff]
    %v257 = vld [vmem:[#allocation2 + $0x570] sm:$0xff]
    %v258 = vld [vmem:[#allocation2 + $0x578] sm:$0xff]
    %v259 = vld [vmem:[#allocation2 + $0x580] sm:$0xff]
    %v260 = vld [vmem:[#allocation2 + $0x588] sm:$0xff]
    %v261 = vld [vmem:[#allocation2 + $0x590] sm:$0xff]
    %v262 = vld [vmem:[#allocation2 + $0x598] sm:$0xff]
    %v263 = vld [vmem:[#allocation2 + $0x5a0] sm:$0xff]
    %v264 = vld [vmem:[#allocation2 + $0x5a8] sm:$0xff]
    %v265 = vld [vmem:[#allocation2 + $0x5b0] sm:$0xff]
    %v266 = vld [vmem:[#allocation2 + $0x5b8] sm:$0xff]
    %v267 = vld [vmem:[#allocation2 + $0x5c0] sm:$0xff]
    %v268 = vld [vmem:[#allocation2 + $0x5c8] sm:$0xff]
    %v269 = vld [vmem:[#allocation2 + $0x5d0] sm:$0xff]
    %v270 = vld [vmem:[#allocation2 + $0x5d8] sm:$0xff]
    %v271 = vld [vmem:[#allocation2 + $0x5e0] sm:$0xff]
    %v272 = vld [vmem:[#allocation2 + $0x5e8] sm:$0xff]
    %v273 = vld [vmem:[#allocation2 + $0x5f0] sm:$0xff]
    %v274 = vld [vmem:[#allocation2 + $0x5f8] sm:$0xff]
    %v275 = vld [vmem:[#allocation2 + $0x600] sm:$0xff]
    %v276 = vld [vmem:[#allocation2 + $0x608] sm:$0xff]
    %v277 = vld [vmem:[#allocation2 + $0x610] sm:$0xff]
    %v278 = vld [vmem:[#allocation2 + $0x618] sm:$0xff]
    %v279 = vld [vmem:[#allocation2 + $0x620] sm:$0xff]
    %v280 = vld [vmem:[#allocation2 + $0x628] sm:$0xff]
    %v281 = vld [vmem:[#allocation2 + $0x630] sm:$0xff]
    %v282 = vld [vmem:[#allocation2 + $0x638] sm:$0xff]
    %v283 = vld [vmem:[#allocation2 + $0x640] sm:$0xff]
    %v284 = vld [vmem:[#allocation2 + $0x648] sm:$0xff]
    %v285 = vld [vmem:[#allocation2 + $0x650] sm:$0xff]
    %v286 = vld [vmem:[#allocation2 + $0x658] sm:$0xff]
    %v287 = vld [vmem:[#allocation2 + $0x660] sm:$0xff]
    %v288 = vld [vmem:[#allocation2 + $0x668] sm:$0xff]
    %v289 = vld [vmem:[#allocation2 + $0x670] sm:$0xff]
    %v290 = vld [vmem:[#allocation2 + $0x678] sm:$0xff]
    %v291 = vld [vmem:[#allocation2 + $0x680] sm:$0xff]
    %v292 = vld [vmem:[#allocation2 + $0x688] sm:$0xff]
    %v293 = vld [vmem:[#allocation2 + $0x690] sm:$0xff]
    %v294 = vld [vmem:[#allocation2 + $0x698] sm:$0xff]
    %v295 = vld [vmem:[#allocation2 + $0x6a0] sm:$0xff]
    %v296 = vld [vmem:[#allocation2 + $0x6a8] sm:$0xff]
    %v297 = vld [vmem:[#allocation2 + $0x6b0] sm:$0xff]
    %v298 = vld [vmem:[#allocation2 + $0x6b8] sm:$0xff]
    %v299 = vld [vmem:[#allocation2 + $0x6c0] sm:$0xff]
    %v300 = vld [vmem:[#allocation2 + $0x6c8] sm:$0xff]
    %v301 = vld [vmem:[#allocation2 + $0x6d0] sm:$0xff]
    %v302 = vld [vmem:[#allocation2 + $0x6d8] sm:$0xff]
    %v303 = vld [vmem:[#allocation2 + $0x6e0] sm:$0xff]
    %v304 = vld [vmem:[#allocation2 + $0x6e8] sm:$0xff]
    %v305 = vld [vmem:[#allocation2 + $0x6f0] sm:$0xff]
    %v306 = vld [vmem:[#allocation2 + $0x6f8] sm:$0xff]
    %v307 = vld [vmem:[#allocation2 + $0x700] sm:$0xff]
    %v308 = vld [vmem:[#allocation2 + $0x708] sm:$0xff]
    %v309 = vld [vmem:[#allocation2 + $0x710] sm:$0xff]
    %v310 = vld [vmem:[#allocation2 + $0x718] sm:$0xff]
    %v311 = vld [vmem:[#allocation2 + $0x720] sm:$0xff]
    %v312 = vld [vmem:[#allocation2 + $0x728] sm:$0xff]
    %v313 = vld [vmem:[#allocation2 + $0x730] sm:$0xff]
    %v314 = vld [vmem:[#allocation2 + $0x738] sm:$0xff]
    %v315 = vld [vmem:[#allocation2 + $0x740] sm:$0xff]
    %v316 = vld [vmem:[#allocation2 + $0x748] sm:$0xff]
    %v317 = vld [vmem:[#allocation2 + $0x750] sm:$0xff]
    %v318 = vld [vmem:[#allocation2 + $0x758] sm:$0xff]
    %v319 = vld [vmem:[#allocation2 + $0x760] sm:$0xff]
    %v320 = vld [vmem:[#allocation2 + $0x768] sm:$0xff]
    %v321 = vld [vmem:[#allocation2 + $0x770] sm:$0xff]
    %v322 = vld [vmem:[#allocation2 + $0x778] sm:$0xff]
    %v323 = vld [vmem:[#allocation2 + $0x780] sm:$0xff]
    %v324 = vld [vmem:[#allocation2 + $0x788] sm:$0xff]
    %v325 = vld [vmem:[#allocation2 + $0x790] sm:$0xff]
    %v326 = vld [vmem:[#allocation2 + $0x798] sm:$0xff]
    %v327 = vld [vmem:[#allocation2 + $0x7a0] sm:$0xff]
    %v328 = vld [vmem:[#allocation2 + $0x7a8] sm:$0xff]
    %v329 = vld [vmem:[#allocation2 + $0x7b0] sm:$0xff]
    %v330 = vld [vmem:[#allocation2 + $0x7b8] sm:$0xff]
    %v331 = vld [vmem:[#allocation2 + $0x7c0] sm:$0xff]
    %v332 = vld [vmem:[#allocation2 + $0x7c8] sm:$0xff]
    %v333 = vld [vmem:[#allocation2 + $0x7d0] sm:$0xff]
    %v334 = vld [vmem:[#allocation2 + $0x7d8] sm:$0xff]
    %v335 = vld [vmem:[#allocation2 + $0x7e0] sm:$0xff]
    %v336 = vld [vmem:[#allocation2 + $0x7e8] sm:$0xff]
    %v337 = vld [vmem:[#allocation2 + $0x7f0] sm:$0xff]
    %v338 = vld [vmem:[#allocation2 + $0x7f8] sm:$0xff]
    %v339 = vld [vmem:[#allocation2 + $0x800] sm:$0xff]
    %v340 = vld [vmem:[#allocation2 + $0x808] sm:$0xff]
    %v341 = vld [vmem:[#allocation2 + $0x810] sm:$0xff]
    %v342 = vld [vmem:[#allocation2 + $0x818] sm:$0xff]
    %v343 = vld [vmem:[#allocation2 + $0x820] sm:$0xff]
    %v344 = vld [vmem:[#allocation2 + $0x828] sm:$0xff]
    %v345 = vld [vmem:[#allocation2 + $0x830] sm:$0xff]
    %v346 = vld [vmem:[#allocation2 + $0x838] sm:$0xff]
    %v347 = vld [vmem:[#allocation2 + $0x840] sm:$0xff]
    %v348 = vld [vmem:[#allocation2 + $0x848] sm:$0xff]
    %v349 = vld [vmem:[#allocation2 + $0x850] sm:$0xff]
    %v350 = vld [vmem:[#allocation2 + $0x858] sm:$0xff]
    %v351 = vld [vmem:[#allocation2 + $0x860] sm:$0xff]
    %v352 = vld [vmem:[#allocation2 + $0x868] sm:$0xff]
    %v353 = vld [vmem:[#allocation2 + $0x870] sm:$0xff]
    %v354 = vld [vmem:[#allocation2 + $0x878] sm:$0xff]
    %v355 = vld [vmem:[#allocation2 + $0x880] sm:$0xff]
    %v356 = vld [vmem:[#allocation2 + $0x888] sm:$0xff]
    %v357 = vld [vmem:[#allocation2 + $0x890] sm:$0xff]
    %v358 = vld [vmem:[#allocation2 + $0x898] sm:$0xff]
    %v359 = vld [vmem:[#allocation2 + $0x8a0] sm:$0xff]
    %v360 = vld [vmem:[#allocation2 + $0x8a8] sm:$0xff]
    %v361 = vld [vmem:[#allocation2 + $0x8b0] sm:$0xff]
    %v362 = vld [vmem:[#allocation2 + $0x8b8] sm:$0xff]
    %v363 = vld [vmem:[#allocation2 + $0x8c0] sm:$0xff]
    %v364 = vld [vmem:[#allocation2 + $0x8c8] sm:$0xff]
    %v365 = vld [vmem:[#allocation2 + $0x8d0] sm:$0xff]
    %v366 = vld [vmem:[#allocation2 + $0x8d8] sm:$0xff]
    %v367 = vld [vmem:[#allocation2 + $0x8e0] sm:$0xff]
    %v368 = vld [vmem:[#allocation2 + $0x8e8] sm:$0xff]
    %v369 = vld [vmem:[#allocation2 + $0x8f0] sm:$0xff]
    %v370 = vld [vmem:[#allocation2 + $0x8f8] sm:$0xff]
    %v371 = vld [vmem:[#allocation2 + $0x900] sm:$0xff]
    %v372 = vld [vmem:[#allocation2 + $0x908] sm:$0xff]
    %v373 = vld [vmem:[#allocation2 + $0x910] sm:$0xff]
    %v374 = vld [vmem:[#allocation2 + $0x918] sm:$0xff]
    %v375 = vld [vmem:[#allocation2 + $0x920] sm:$0xff]
    %v376 = vld [vmem:[#allocation2 + $0x928] sm:$0xff]
    %v377 = vld [vmem:[#allocation2 + $0x930] sm:$0xff]
    %v378 = vld [vmem:[#allocation2 + $0x938] sm:$0xff]
    %v379 = vld [vmem:[#allocation2 + $0x940] sm:$0xff]
    %v380 = vld [vmem:[#allocation2 + $0x948] sm:$0xff]
    %v381 = vld [vmem:[#allocation2 + $0x950] sm:$0xff]
    %v382 = vld [vmem:[#allocation2 + $0x958] sm:$0xff]
    %v383 = vld [vmem:[#allocation2 + $0x960] sm:$0xff]
    %v384 = vld [vmem:[#allocation2 + $0x968] sm:$0xff]
    %v385 = vld [vmem:[#allocation2 + $0x970] sm:$0xff]
    %v386 = vld [vmem:[#allocation2 + $0x978] sm:$0xff]
    %v387 = vld [vmem:[#allocation2 + $0x980] sm:$0xff]
    %v388 = vld [vmem:[#allocation2 + $0x988] sm:$0xff]
    %v389 = vld [vmem:[#allocation2 + $0x990] sm:$0xff]
    %v390 = vld [vmem:[#allocation2 + $0x998] sm:$0xff]
    %v391 = vld [vmem:[#allocation2 + $0x9a0] sm:$0xff]
    %v392 = vld [vmem:[#allocation2 + $0x9a8] sm:$0xff]
    %v393 = vld [vmem:[#allocation2 + $0x9b0] sm:$0xff]
    %v394 = vld [vmem:[#allocation2 + $0x9b8] sm:$0xff]
    %v395 = vld [vmem:[#allocation2 + $0x9c0] sm:$0xff]
    %v396 = vld [vmem:[#allocation2 + $0x9c8] sm:$0xff]
    %v397 = vld [vmem:[#allocation2 + $0x9d0] sm:$0xff]
    %v398 = vld [vmem:[#allocation2 + $0x9d8] sm:$0xff]
    %v399 = vld [vmem:[#allocation2 + $0x9e0] sm:$0xff]
    %v400 = vld [vmem:[#allocation2 + $0x9e8] sm:$0xff]
    %v401 = vld [vmem:[#allocation2 + $0x9f0] sm:$0xff]
    %v402 = vld [vmem:[#allocation2 + $0x9f8] sm:$0xff]
    %v403 = vld [vmem:[#allocation2 + $0xa00] sm:$0xff]
    %v404 = vld [vmem:[#allocation2 + $0xa08] sm:$0xff]
    %v405 = vld [vmem:[#allocation2 + $0xa10] sm:$0xff]
    %v406 = vld [vmem:[#allocation2 + $0xa18] sm:$0xff]
    %v407 = vld [vmem:[#allocation2 + $0xa20] sm:$0xff]
    %v408 = vld [vmem:[#allocation2 + $0xa28] sm:$0xff]
    %v409 = vld [vmem:[#allocation2 + $0xa30] sm:$0xff]
    %v410 = vld [vmem:[#allocation2 + $0xa38] sm:$0xff]
    %v411 = vld [vmem:[#allocation2 + $0xa40] sm:$0xff]
    %v412 = vld [vmem:[#allocation2 + $0xa48] sm:$0xff]
    %v413 = vld [vmem:[#allocation2 + $0xa50] sm:$0xff]
    %v414 = vld [vmem:[#allocation2 + $0xa58] sm:$0xff]
    %v415 = vld [vmem:[#allocation2 + $0xa60] sm:$0xff]
    %v416 = vld [vmem:[#allocation2 + $0xa68] sm:$0xff]
    %v417 = vld [vmem:[#allocation2 + $0xa70] sm:$0xff]
    %v418 = vld [vmem:[#allocation2 + $0xa78] sm:$0xff]
    %v419 = vld [vmem:[#allocation2 + $0xa80] sm:$0xff]
    %v420 = vld [vmem:[#allocation2 + $0xa88] sm:$0xff]
    %v421 = vld [vmem:[#allocation2 + $0xa90] sm:$0xff]
    %v422 = vld [vmem:[#allocation2 + $0xa98] sm:$0xff]
    %v423 = vld [vmem:[#allocation2 + $0xaa0] sm:$0xff]
    %v424 = vld [vmem:[#allocation2 + $0xaa8] sm:$0xff]
    %v425 = vld [vmem:[#allocation2 + $0xab0] sm:$0xff]
    %v426 = vld [vmem:[#allocation2 + $0xab8] sm:$0xff]
    %v427 = vld [vmem:[#allocation2 + $0xac0] sm:$0xff]
    %v428 = vld [vmem:[#allocation2 + $0xac8] sm:$0xff]
    %v429 = vld [vmem:[#allocation2 + $0xad0] sm:$0xff]
    %v430 = vld [vmem:[#allocation2 + $0xad8] sm:$0xff]
    %v431 = vld [vmem:[#allocation2 + $0xae0] sm:$0xff]
    %v432 = vld [vmem:[#allocation2 + $0xae8] sm:$0xff]
    %v433 = vld [vmem:[#allocation2 + $0xaf0] sm:$0xff]
    %v434 = vld [vmem:[#allocation2 + $0xaf8] sm:$0xff]
    %v435 = vld [vmem:[#allocation2 + $0xb00] sm:$0xff]
    %v436 = vld [vmem:[#allocation2 + $0xb08] sm:$0xff]
    %v437 = vld [vmem:[#allocation2 + $0xb10] sm:$0xff]
    %v438 = vld [vmem:[#allocation2 + $0xb18] sm:$0xff]
    %v439 = vld [vmem:[#allocation2 + $0xb20] sm:$0xff]
    %v440 = vld [vmem:[#allocation2 + $0xb28] sm:$0xff]
    %v441 = vld [vmem:[#allocation2 + $0xb30] sm:$0xff]
    %v442 = vld [vmem:[#allocation2 + $0xb38] sm:$0xff]
    %v443 = vld [vmem:[#allocation2 + $0xb40] sm:$0xff]
    %v444 = vld [vmem:[#allocation2 + $0xb48] sm:$0xff]
    %v445 = vld [vmem:[#allocation2 + $0xb50] sm:$0xff]
    %v446 = vld [vmem:[#allocation2 + $0xb58] sm:$0xff]
    %v447 = vld [vmem:[#allocation2 + $0xb60] sm:$0xff]
    %v448 = vld [vmem:[#allocation2 + $0xb68] sm:$0xff]
    %v449 = vld [vmem:[#allocation2 + $0xb70] sm:$0xff]
    %v450 = vld [vmem:[#allocation2 + $0xb78] sm:$0xff]
    %v451 = vld [vmem:[#allocation2 + $0xb80] sm:$0xff]
    %v452 = vld [vmem:[#allocation2 + $0xb88] sm:$0xff]
    %v453 = vld [vmem:[#allocation2 + $0xb90] sm:$0xff]
    %v454 = vld [vmem:[#allocation2 + $0xb98] sm:$0xff]
    %v455 = vld [vmem:[#allocation2 + $0xba0] sm:$0xff]
    %v456 = vld [vmem:[#allocation2 + $0xba8] sm:$0xff]
    %v457 = vld [vmem:[#allocation2 + $0xbb0] sm:$0xff]
    %v458 = vld [vmem:[#allocation2 + $0xbb8] sm:$0xff]
    %v459 = vld [vmem:[#allocation2 + $0xbc0] sm:$0xff]
    %v460 = vld [vmem:[#allocation2 + $0xbc8] sm:$0xff]
    %v461 = vld [vmem:[#allocation2 + $0xbd0] sm:$0xff]
    %v462 = vld [vmem:[#allocation2 + $0xbd8] sm:$0xff]
    %v463 = vld [vmem:[#allocation2 + $0xbe0] sm:$0xff]
    %v464 = vld [vmem:[#allocation2 + $0xbe8] sm:$0xff]
    %v465 = vld [vmem:[#allocation2 + $0xbf0] sm:$0xff]
    %v466 = vld [vmem:[#allocation2 + $0xbf8] sm:$0xff]
    %v467 = vld [vmem:[#allocation2 + $0xc00] sm:$0xff]
    %v468 = vld [vmem:[#allocation2 + $0xc08] sm:$0xff]
    %v469 = vld [vmem:[#allocation2 + $0xc10] sm:$0xff]
    %v470 = vld [vmem:[#allocation2 + $0xc18] sm:$0xff]
    %v471 = vld [vmem:[#allocation2 + $0xc20] sm:$0xff]
    %v472 = vld [vmem:[#allocation2 + $0xc28] sm:$0xff]
    %v473 = vld [vmem:[#allocation2 + $0xc30] sm:$0xff]
    %v474 = vld [vmem:[#allocation2 + $0xc38] sm:$0xff]
    %v475 = vld [vmem:[#allocation2 + $0xc40] sm:$0xff]
    %v476 = vld [vmem:[#allocation2 + $0xc48] sm:$0xff]
    %v477 = vld [vmem:[#allocation2 + $0xc50] sm:$0xff]
    %v478 = vld [vmem:[#allocation2 + $0xc58] sm:$0xff]
    %v479 = vld [vmem:[#allocation2 + $0xc60] sm:$0xff]
    %v480 = vld [vmem:[#allocation2 + $0xc68] sm:$0xff]
    %v481 = vld [vmem:[#allocation2 + $0xc70] sm:$0xff]
    %v482 = vld [vmem:[#allocation2 + $0xc78] sm:$0xff]
    %v483 = vld [vmem:[#allocation2 + $0xc80] sm:$0xff]
    %v484 = vld [vmem:[#allocation2 + $0xc88] sm:$0xff]
    %v485 = vld [vmem:[#allocation2 + $0xc90] sm:$0xff]
    %v486 = vld [vmem:[#allocation2 + $0xc98] sm:$0xff]
    %v487 = vld [vmem:[#allocation2 + $0xca0] sm:$0xff]
    %v488 = vld [vmem:[#allocation2 + $0xca8] sm:$0xff]
    %v489 = vld [vmem:[#allocation2 + $0xcb0] sm:$0xff]
    %v490 = vld [vmem:[#allocation2 + $0xcb8] sm:$0xff]
    %v491 = vld [vmem:[#allocation2 + $0xcc0] sm:$0xff]
    %v492 = vld [vmem:[#allocation2 + $0xcc8] sm:$0xff]
    %v493 = vld [vmem:[#allocation2 + $0xcd0] sm:$0xff]
    %v494 = vld [vmem:[#allocation2 + $0xcd8] sm:$0xff]
    %v495 = vld [vmem:[#allocation2 + $0xce0] sm:$0xff]
    %v496 = vld [vmem:[#allocation2 + $0xce8] sm:$0xff]
    %v497 = vld [vmem:[#allocation2 + $0xcf0] sm:$0xff]
    %v498 = vld [vmem:[#allocation2 + $0xcf8] sm:$0xff]
    %v499 = vld [vmem:[#allocation2 + $0xd00] sm:$0xff]
    %v500 = vld [vmem:[#allocation2 + $0xd08] sm:$0xff]
    %v501 = vld [vmem:[#allocation2 + $0xd10] sm:$0xff]
    %v502 = vld [vmem:[#allocation2 + $0xd18] sm:$0xff]
    %v503 = vld [vmem:[#allocation2 + $0xd20] sm:$0xff]
    %v504 = vld [vmem:[#allocation2 + $0xd28] sm:$0xff]
    %v505 = vld [vmem:[#allocation2 + $0xd30] sm:$0xff]
    %v506 = vld [vmem:[#allocation2 + $0xd38] sm:$0xff]
    %v507 = vld [vmem:[#allocation2 + $0xd40] sm:$0xff]
    %v508 = vld [vmem:[#allocation2 + $0xd48] sm:$0xff]
    %v509 = vld [vmem:[#allocation2 + $0xd50] sm:$0xff]
    %v510 = vld [vmem:[#allocation2 + $0xd58] sm:$0xff]
    %v511 = vld [vmem:[#allocation2 + $0xd60] sm:$0xff]
    %v512 = vld [vmem:[#allocation2 + $0xd68] sm:$0xff]
    %v513 = vld [vmem:[#allocation2 + $0xd70] sm:$0xff]
    %v514 = vld [vmem:[#allocation2 + $0xd78] sm:$0xff]
    %v515 = vld [vmem:[#allocation2 + $0xd80] sm:$0xff]
    %v516 = vld [vmem:[#allocation2 + $0xd88] sm:$0xff]
    %v517 = vld [vmem:[#allocation2 + $0xd90] sm:$0xff]
    %v518 = vld [vmem:[#allocation2 + $0xd98] sm:$0xff]
    %v519 = vld [vmem:[#allocation2 + $0xda0] sm:$0xff]
    %v520 = vld [vmem:[#allocation2 + $0xda8] sm:$0xff]
    %v521 = vld [vmem:[#allocation2 + $0xdb0] sm:$0xff]
    %v522 = vld [vmem:[#allocation2 + $0xdb8] sm:$0xff]
    %v523 = vld [vmem:[#allocation2 + $0xdc0] sm:$0xff]
    %v524 = vld [vmem:[#allocation2 + $0xdc8] sm:$0xff]
    %v525 = vld [vmem:[#allocation2 + $0xdd0] sm:$0xff]
    %v526 = vld [vmem:[#allocation2 + $0xdd8] sm:$0xff]
    %v527 = vld [vmem:[#allocation2 + $0xde0] sm:$0xff]
    %v528 = vld [vmem:[#allocation2 + $0xde8] sm:$0xff]
    %v529 = vld [vmem:[#allocation2 + $0xdf0] sm:$0xff]
    %v530 = vld [vmem:[#allocation2 + $0xdf8] sm:$0xff]
    %v531 = vld [vmem:[#allocation2 + $0xe00] sm:$0xff]
    %v532 = vld [vmem:[#allocation2 + $0xe08] sm:$0xff]
    %v533 = vld [vmem:[#allocation2 + $0xe10] sm:$0xff]
    %v534 = vld [vmem:[#allocation2 + $0xe18] sm:$0xff]
    %v535 = vld [vmem:[#allocation2 + $0xe20] sm:$0xff]
    %v536 = vld [vmem:[#allocation2 + $0xe28] sm:$0xff]
    %v537 = vld [vmem:[#allocation2 + $0xe30] sm:$0xff]
    %v538 = vld [vmem:[#allocation2 + $0xe38] sm:$0xff]
    %v539 = vld [vmem:[#allocation2 + $0xe40] sm:$0xff]
    %v540 = vld [vmem:[#allocation2 + $0xe48] sm:$0xff]
    %v541 = vld [vmem:[#allocation2 + $0xe50] sm:$0xff]
    %v542 = vld [vmem:[#allocation2 + $0xe58] sm:$0xff]
    %v543 = vld [vmem:[#allocation2 + $0xe60] sm:$0xff]
    %v544 = vld [vmem:[#allocation2 + $0xe68] sm:$0xff]
    %v545 = vld [vmem:[#allocation2 + $0xe70] sm:$0xff]
    %v546 = vld [vmem:[#allocation2 + $0xe78] sm:$0xff]
    %v547 = vld [vmem:[#allocation2 + $0xe80] sm:$0xff]
    %v548 = vld [vmem:[#allocation2 + $0xe88] sm:$0xff]
    %v549 = vld [vmem:[#allocation2 + $0xe90] sm:$0xff]
    %v550 = vld [vmem:[#allocation2 + $0xe98] sm:$0xff]
    %v551 = vld [vmem:[#allocation2 + $0xea0] sm:$0xff]
    %v552 = vld [vmem:[#allocation2 + $0xea8] sm:$0xff]
    %v553 = vld [vmem:[#allocation2 + $0xeb0] sm:$0xff]
    %v554 = vld [vmem:[#allocation2 + $0xeb8] sm:$0xff]
    %v555 = vld [vmem:[#allocation2 + $0xec0] sm:$0xff]
    %v556 = vld [vmem:[#allocation2 + $0xec8] sm:$0xff]
    %v557 = vld [vmem:[#allocation2 + $0xed0] sm:$0xff]
    %v558 = vld [vmem:[#allocation2 + $0xed8] sm:$0xff]
    %v559 = vld [vmem:[#allocation2 + $0xee0] sm:$0xff]
    %v560 = vld [vmem:[#allocation2 + $0xee8] sm:$0xff]
    %v561 = vld [vmem:[#allocation2 + $0xef0] sm:$0xff]
    %v562 = vld [vmem:[#allocation2 + $0xef8] sm:$0xff]
    %v563 = vld [vmem:[#allocation2 + $0xf00] sm:$0xff]
    %v564 = vld [vmem:[#allocation2 + $0xf08] sm:$0xff]
    %v565 = vld [vmem:[#allocation2 + $0xf10] sm:$0xff]
    %v566 = vld [vmem:[#allocation2 + $0xf18] sm:$0xff]
    %v567 = vld [vmem:[#allocation2 + $0xf20] sm:$0xff]
    %v568 = vld [vmem:[#allocation2 + $0xf28] sm:$0xff]
    %v569 = vld [vmem:[#allocation2 + $0xf30] sm:$0xff]
    %v570 = vld [vmem:[#allocation2 + $0xf38] sm:$0xff]
    %v571 = vld [vmem:[#allocation2 + $0xf40] sm:$0xff]
    %v572 = vld [vmem:[#allocation2 + $0xf48] sm:$0xff]
    %v573 = vld [vmem:[#allocation2 + $0xf50] sm:$0xff]
    %v574 = vld [vmem:[#allocation2 + $0xf58] sm:$0xff]
    %v575 = vld [vmem:[#allocation2 + $0xf60] sm:$0xff]
    %v576 = vld [vmem:[#allocation2 + $0xf68] sm:$0xff]
    %v577 = vld [vmem:[#allocation2 + $0xf70] sm:$0xff]
    %v578 = vld [vmem:[#allocation2 + $0xf78] sm:$0xff]
    %v579 = vld [vmem:[#allocation2 + $0xf80] sm:$0xff]
    %v580 = vld [vmem:[#allocation2 + $0xf88] sm:$0xff]
    %v581 = vld [vmem:[#allocation2 + $0xf90] sm:$0xff]
    %v582 = vld [vmem:[#allocation2 + $0xf98] sm:$0xff]
    %v583 = vld [vmem:[#allocation2 + $0xfa0] sm:$0xff]
    %v584 = vld [vmem:[#allocation2 + $0xfa8] sm:$0xff]
    %v585 = vld [vmem:[#allocation2 + $0xfb0] sm:$0xff]
    %v586 = vld [vmem:[#allocation2 + $0xfb8] sm:$0xff]
    %v587 = vld [vmem:[#allocation2 + $0xfc0] sm:$0xff]
    %v588 = vld [vmem:[#allocation2 + $0xfc8] sm:$0xff]
    %v589 = vld [vmem:[#allocation2 + $0xfd0] sm:$0xff]
    %v590 = vld [vmem:[#allocation2 + $0xfd8] sm:$0xff]
    %v591 = vld [vmem:[#allocation2 + $0xfe0] sm:$0xff]
    %v592 = vld [vmem:[#allocation2 + $0xfe8] sm:$0xff]
    %v593 = vld [vmem:[#allocation2 + $0xff0] sm:$0xff]
    %v594 = vld [vmem:[#allocation2 + $0xff8] sm:$0xff]
    %v595 = vld [vmem:[#allocation2 + $0x1000] sm:$0xff]
    %v596 = vld [vmem:[#allocation2 + $0x1008] sm:$0xff]
    %v597 = vld [vmem:[#allocation2 + $0x1010] sm:$0xff]
    %v598 = vld [vmem:[#allocation2 + $0x1018] sm:$0xff]
    %v599 = vld [vmem:[#allocation2 + $0x1020] sm:$0xff]
    %v600 = vld [vmem:[#allocation2 + $0x1028] sm:$0xff]
    %v601 = vld [vmem:[#allocation2 + $0x1030] sm:$0xff]
    %v602 = vld [vmem:[#allocation2 + $0x1038] sm:$0xff]
    %v603 = vld [vmem:[#allocation2 + $0x1040] sm:$0xff]
    %v604 = vld [vmem:[#allocation2 + $0x1048] sm:$0xff]
    %v605 = vld [vmem:[#allocation2 + $0x1050] sm:$0xff]
    %v606 = vld [vmem:[#allocation2 + $0x1058] sm:$0xff]
    %v607 = vld [vmem:[#allocation2 + $0x1060] sm:$0xff]
    %v608 = vld [vmem:[#allocation2 + $0x1068] sm:$0xff]
    %v609 = vld [vmem:[#allocation2 + $0x1070] sm:$0xff]
    %v610 = vld [vmem:[#allocation2 + $0x1078] sm:$0xff]
    %v611 = vld [vmem:[#allocation2 + $0x1080] sm:$0xff]
    %v612 = vld [vmem:[#allocation2 + $0x1088] sm:$0xff]
    %v613 = vld [vmem:[#allocation2 + $0x1090] sm:$0xff]
    %v614 = vld [vmem:[#allocation2 + $0x1098] sm:$0xff]
    %v615 = vld [vmem:[#allocation2 + $0x10a0] sm:$0xff]
    %v616 = vld [vmem:[#allocation2 + $0x10a8] sm:$0xff]
    %v617 = vld [vmem:[#allocation2 + $0x10b0] sm:$0xff]
    %v618 = vld [vmem:[#allocation2 + $0x10b8] sm:$0xff]
    %v619 = vld [vmem:[#allocation2 + $0x10c0] sm:$0xff]
    %v620 = vld [vmem:[#allocation2 + $0x10c8] sm:$0xff]
    %v621 = vld [vmem:[#allocation2 + $0x10d0] sm:$0xff]
    %v622 = vld [vmem:[#allocation2 + $0x10d8] sm:$0xff]
    %v623 = vld [vmem:[#allocation2 + $0x10e0] sm:$0xff]
    %v624 = vld [vmem:[#allocation2 + $0x10e8] sm:$0xff]
    %v625 = vld [vmem:[#allocation2 + $0x10f0] sm:$0xff]
    %v626 = vld [vmem:[#allocation2 + $0x10f8] sm:$0xff]
    %v627 = vld [vmem:[#allocation2 + $0x1100] sm:$0xff]
    %v628 = vld [vmem:[#allocation2 + $0x1108] sm:$0xff]
    %v629 = vld [vmem:[#allocation2 + $0x1110] sm:$0xff]
    %v630 = vld [vmem:[#allocation2 + $0x1118] sm:$0xff]
    %v631 = vld [vmem:[#allocation2 + $0x1120] sm:$0xff]
    %v632 = vld [vmem:[#allocation2 + $0x1128] sm:$0xff]
    %v633 = vld [vmem:[#allocation2 + $0x1130] sm:$0xff]
    %v634 = vld [vmem:[#allocation2 + $0x1138] sm:$0xff]
    %v635 = vld [vmem:[#allocation2 + $0x1140] sm:$0xff]
    %v636 = vld [vmem:[#allocation2 + $0x1148] sm:$0xff]
    %v637 = vld [vmem:[#allocation2 + $0x1150] sm:$0xff]
    %v638 = vld [vmem:[#allocation2 + $0x1158] sm:$0xff]
    %v639 = vld [vmem:[#allocation2 + $0x1160] sm:$0xff]
    %v640 = vld [vmem:[#allocation2 + $0x1168] sm:$0xff]
    %v641 = vld [vmem:[#allocation2 + $0x1170] sm:$0xff]
    %v642 = vld [vmem:[#allocation2 + $0x1178] sm:$0xff]
    %v643 = vld [vmem:[#allocation2 + $0x1180] sm:$0xff]
    %v644 = vld [vmem:[#allocation2 + $0x1188] sm:$0xff]
    %v645 = vld [vmem:[#allocation2 + $0x1190] sm:$0xff]
    %v646 = vld [vmem:[#allocation2 + $0x1198] sm:$0xff]
    %v647 = vld [vmem:[#allocation2 + $0x11a0] sm:$0xff]
    %v648 = vld [vmem:[#allocation2 + $0x11a8] sm:$0xff]
    %v649 = vld [vmem:[#allocation2 + $0x11b0] sm:$0xff]
    %v650 = vld [vmem:[#allocation2 + $0x11b8] sm:$0xff]
    %v651 = vld [vmem:[#allocation2 + $0x11c0] sm:$0xff]
    %v652 = vld [vmem:[#allocation2 + $0x11c8] sm:$0xff]
    %v653 = vld [vmem:[#allocation2 + $0x11d0] sm:$0xff]
    %v654 = vld [vmem:[#allocation2 + $0x11d8] sm:$0xff]
    %v655 = vld [vmem:[#allocation2 + $0x11e0] sm:$0xff]
    %v656 = vld [vmem:[#allocation2 + $0x11e8] sm:$0xff]
    %v657 = vld [vmem:[#allocation2 + $0x11f0] sm:$0xff]
    %v658 = vld [vmem:[#allocation2 + $0x11f8] sm:$0xff]
    %v659 = vld [vmem:[#allocation2 + $0x1200] sm:$0xff]
    %v660 = vld [vmem:[#allocation2 + $0x1208] sm:$0xff]
    %v661 = vld [vmem:[#allocation2 + $0x1210] sm:$0xff]
    %v662 = vld [vmem:[#allocation2 + $0x1218] sm:$0xff]
    %v663 = vld [vmem:[#allocation2 + $0x1220] sm:$0xff]
    %v664 = vld [vmem:[#allocation2 + $0x1228] sm:$0xff]
    %v665 = vld [vmem:[#allocation2 + $0x1230] sm:$0xff]
    %v666 = vld [vmem:[#allocation2 + $0x1238] sm:$0xff]
    %v667 = vld [vmem:[#allocation2 + $0x1240] sm:$0xff]
    %v668 = vld [vmem:[#allocation2 + $0x1248] sm:$0xff]
    %v669 = vld [vmem:[#allocation2 + $0x1250] sm:$0xff]
    %v670 = vld [vmem:[#allocation2 + $0x1258] sm:$0xff]
    %v671 = vld [vmem:[#allocation2 + $0x1260] sm:$0xff]
    %v672 = vld [vmem:[#allocation2 + $0x1268] sm:$0xff]
    %v673 = vld [vmem:[#allocation2 + $0x1270] sm:$0xff]
    %v674 = vld [vmem:[#allocation2 + $0x1278] sm:$0xff]
    %v675 = vld [vmem:[#allocation2 + $0x1280] sm:$0xff]
    %v676 = vld [vmem:[#allocation2 + $0x1288] sm:$0xff]
    %v677 = vld [vmem:[#allocation2 + $0x1290] sm:$0xff]
    %v678 = vld [vmem:[#allocation2 + $0x1298] sm:$0xff]
    %v679 = vld [vmem:[#allocation2 + $0x12a0] sm:$0xff]
    %v680 = vld [vmem:[#allocation2 + $0x12a8] sm:$0xff]
    %v681 = vld [vmem:[#allocation2 + $0x12b0] sm:$0xff]
    %v682 = vld [vmem:[#allocation2 + $0x12b8] sm:$0xff]
    %v683 = vld [vmem:[#allocation2 + $0x12c0] sm:$0xff]
    %v684 = vld [vmem:[#allocation2 + $0x12c8] sm:$0xff]
    %v685 = vld [vmem:[#allocation2 + $0x12d0] sm:$0xff]
    %v686 = vld [vmem:[#allocation2 + $0x12d8] sm:$0xff]
    %v687 = vld [vmem:[#allocation2 + $0x12e0] sm:$0xff]
    %v688 = vld [vmem:[#allocation2 + $0x12e8] sm:$0xff]
    %v689 = vld [vmem:[#allocation2 + $0x12f0] sm:$0xff]
    %v690 = vld [vmem:[#allocation2 + $0x12f8] sm:$0xff]
    %v691 = vld [vmem:[#allocation2 + $0x1300] sm:$0xff]
    %v692 = vld [vmem:[#allocation2 + $0x1308] sm:$0xff]
    %v693 = vld [vmem:[#allocation2 + $0x1310] sm:$0xff]
    %v694 = vld [vmem:[#allocation2 + $0x1318] sm:$0xff]
    %v695 = vld [vmem:[#allocation2 + $0x1320] sm:$0xff]
    %v696 = vld [vmem:[#allocation2 + $0x1328] sm:$0xff]
    %v697 = vld [vmem:[#allocation2 + $0x1330] sm:$0xff]
    %v698 = vld [vmem:[#allocation2 + $0x1338] sm:$0xff]
    %v699 = vld [vmem:[#allocation2 + $0x1340] sm:$0xff]
    %v700 = vld [vmem:[#allocation2 + $0x1348] sm:$0xff]
    %v701 = vld [vmem:[#allocation2 + $0x1350] sm:$0xff]
    %v702 = vld [vmem:[#allocation2 + $0x1358] sm:$0xff]
    %v703 = vld [vmem:[#allocation2 + $0x1360] sm:$0xff]
    %v704 = vld [vmem:[#allocation2 + $0x1368] sm:$0xff]
    %v705 = vld [vmem:[#allocation2 + $0x1370] sm:$0xff]
    %v706 = vld [vmem:[#allocation2 + $0x1378] sm:$0xff]
    %v707 = vld [vmem:[#allocation2 + $0x1380] sm:$0xff]
    %v708 = vld [vmem:[#allocation2 + $0x1388] sm:$0xff]
    %v709 = vld [vmem:[#allocation2 + $0x1390] sm:$0xff]
    %v710 = vld [vmem:[#allocation2 + $0x1398] sm:$0xff]
    %v711 = vld [vmem:[#allocation2 + $0x13a0] sm:$0xff]
    %v712 = vld [vmem:[#allocation2 + $0x13a8] sm:$0xff]
    %v713 = vld [vmem:[#allocation2 + $0x13b0] sm:$0xff]
    %v714 = vld [vmem:[#allocation2 + $0x13b8] sm:$0xff]
    %v715 = vld [vmem:[#allocation2 + $0x13c0] sm:$0xff]
    %v716 = vld [vmem:[#allocation2 + $0x13c8] sm:$0xff]
    %v717 = vld [vmem:[#allocation2 + $0x13d0] sm:$0xff]
    %v718 = vld [vmem:[#allocation2 + $0x13d8] sm:$0xff]
    %v719 = vld [vmem:[#allocation2 + $0x13e0] sm:$0xff]
    %v720 = vld [vmem:[#allocation2 + $0x13e8] sm:$0xff]
    %v721 = vld [vmem:[#allocation2 + $0x13f0] sm:$0xff]
    %v722 = vld [vmem:[#allocation2 + $0x13f8] sm:$0xff]
    %v723 = vld [vmem:[#allocation2 + $0x1400] sm:$0xff]
    %v724 = vld [vmem:[#allocation2 + $0x1408] sm:$0xff]
    %v725 = vld [vmem:[#allocation2 + $0x1410] sm:$0xff]
    %v726 = vld [vmem:[#allocation2 + $0x1418] sm:$0xff]
    %v727 = vld [vmem:[#allocation2 + $0x1420] sm:$0xff]
    %v728 = vld [vmem:[#allocation2 + $0x1428] sm:$0xff]
    %v729 = vld [vmem:[#allocation2 + $0x1430] sm:$0xff]
    %v730 = vld [vmem:[#allocation2 + $0x1438] sm:$0xff]
    %v731 = vld [vmem:[#allocation2 + $0x1440] sm:$0xff]
    %v732 = vld [vmem:[#allocation2 + $0x1448] sm:$0xff]
    %v733 = vld [vmem:[#allocation2 + $0x1450] sm:$0xff]
    %v734 = vld [vmem:[#allocation2 + $0x1458] sm:$0xff]
    %v735 = vld [vmem:[#allocation2 + $0x1460] sm:$0xff]
    %v736 = vld [vmem:[#allocation2 + $0x1468] sm:$0xff]
    %v737 = vld [vmem:[#allocation2 + $0x1470] sm:$0xff]
    %v738 = vld [vmem:[#allocation2 + $0x1478] sm:$0xff]
    %v739 = vld [vmem:[#allocation2 + $0x1480] sm:$0xff]
    %v740 = vld [vmem:[#allocation2 + $0x1488] sm:$0xff]
    %v741 = vld [vmem:[#allocation2 + $0x1490] sm:$0xff]
    %v742 = vld [vmem:[#allocation2 + $0x1498] sm:$0xff]
    %v743 = vld [vmem:[#allocation2 + $0x14a0] sm:$0xff]
    %v744 = vld [vmem:[#allocation2 + $0x14a8] sm:$0xff]
    %v745 = vld [vmem:[#allocation2 + $0x14b0] sm:$0xff]
    %v746 = vld [vmem:[#allocation2 + $0x14b8] sm:$0xff]
    %v747 = vld [vmem:[#allocation2 + $0x14c0] sm:$0xff]
    %v748 = vld [vmem:[#allocation2 + $0x14c8] sm:$0xff]
    %v749 = vld [vmem:[#allocation2 + $0x14d0] sm:$0xff]
    %v750 = vld [vmem:[#allocation2 + $0x14d8] sm:$0xff]
    %v751 = vld [vmem:[#allocation2 + $0x14e0] sm:$0xff]
    %v752 = vld [vmem:[#allocation2 + $0x14e8] sm:$0xff]
    %v753 = vld [vmem:[#allocation2 + $0x14f0] sm:$0xff]
    %v754 = vld [vmem:[#allocation2 + $0x14f8] sm:$0xff]
    %v755 = vld [vmem:[#allocation2 + $0x1500] sm:$0xff]
    %v756 = vld [vmem:[#allocation2 + $0x1508] sm:$0xff]
    %v757 = vld [vmem:[#allocation2 + $0x1510] sm:$0xff]
    %v758 = vld [vmem:[#allocation2 + $0x1518] sm:$0xff]
    %v759 = vld [vmem:[#allocation2 + $0x1520] sm:$0xff]
    %v760 = vld [vmem:[#allocation2 + $0x1528] sm:$0xff]
    %v761 = vld [vmem:[#allocation2 + $0x1530] sm:$0xff]
    %v762 = vld [vmem:[#allocation2 + $0x1538] sm:$0xff]
    %v763 = vld [vmem:[#allocation2 + $0x1540] sm:$0xff]
    %v764 = vld [vmem:[#allocation2 + $0x1548] sm:$0xff]
    %v765 = vld [vmem:[#allocation2 + $0x1550] sm:$0xff]
    %v766 = vld [vmem:[#allocation2 + $0x1558] sm:$0xff]
    %v767 = vld [vmem:[#allocation2 + $0x1560] sm:$0xff]
    %v768 = vld [vmem:[#allocation2 + $0x1568] sm:$0xff]
    %v769 = vld [vmem:[#allocation2 + $0x1570] sm:$0xff]
    %v770 = vld [vmem:[#allocation2 + $0x1578] sm:$0xff]
    %v771 = vld [vmem:[#allocation2 + $0x1580] sm:$0xff]
    %v772 = vld [vmem:[#allocation2 + $0x1588] sm:$0xff]
    %v773 = vld [vmem:[#allocation2 + $0x1590] sm:$0xff]
    %v774 = vld [vmem:[#allocation2 + $0x1598] sm:$0xff]
    %v775 = vld [vmem:[#allocation2 + $0x15a0] sm:$0xff]
    %v776 = vld [vmem:[#allocation2 + $0x15a8] sm:$0xff]
    %v777 = vld [vmem:[#allocation2 + $0x15b0] sm:$0xff]
    %v778 = vld [vmem:[#allocation2 + $0x15b8] sm:$0xff]
    %v779 = vld [vmem:[#allocation2 + $0x15c0] sm:$0xff]
    %v780 = vld [vmem:[#allocation2 + $0x15c8] sm:$0xff]
    %v781 = vld [vmem:[#allocation2 + $0x15d0] sm:$0xff]
    %v782 = vld [vmem:[#allocation2 + $0x15d8] sm:$0xff]
    %v783 = vld [vmem:[#allocation2 + $0x15e0] sm:$0xff]
    %v784 = vld [vmem:[#allocation2 + $0x15e8] sm:$0xff]
    %v785 = vld [vmem:[#allocation2 + $0x15f0] sm:$0xff]
    %v786 = vld [vmem:[#allocation2 + $0x15f8] sm:$0xff]
    %v787 = vld [vmem:[#allocation2 + $0x1600] sm:$0xff]
    %v788 = vld [vmem:[#allocation2 + $0x1608] sm:$0xff]
    %v789 = vld [vmem:[#allocation2 + $0x1610] sm:$0xff]
    %v790 = vld [vmem:[#allocation2 + $0x1618] sm:$0xff]
    %v791 = vld [vmem:[#allocation2 + $0x1620] sm:$0xff]
    %v792 = vld [vmem:[#allocation2 + $0x1628] sm:$0xff]
    %v793 = vld [vmem:[#allocation2 + $0x1630] sm:$0xff]
    %v794 = vld [vmem:[#allocation2 + $0x1638] sm:$0xff]
    %v795 = vld [vmem:[#allocation2 + $0x1640] sm:$0xff]
    %v796 = vld [vmem:[#allocation2 + $0x1648] sm:$0xff]
    %v797 = vld [vmem:[#allocation2 + $0x1650] sm:$0xff]
    %v798 = vld [vmem:[#allocation2 + $0x1658] sm:$0xff]
    %v799 = vld [vmem:[#allocation2 + $0x1660] sm:$0xff]
    %v800 = vld [vmem:[#allocation2 + $0x1668] sm:$0xff]
    %v801 = vld [vmem:[#allocation2 + $0x1670] sm:$0xff]
    %v802 = vld [vmem:[#allocation2 + $0x1678] sm:$0xff]
    %v803 = vld [vmem:[#allocation2 + $0x1680] sm:$0xff]
    %v804 = vld [vmem:[#allocation2 + $0x1688] sm:$0xff]
    %v805 = vld [vmem:[#allocation2 + $0x1690] sm:$0xff]
    %v806 = vld [vmem:[#allocation2 + $0x1698] sm:$0xff]
    %v807 = vld [vmem:[#allocation2 + $0x16a0] sm:$0xff]
    %v808 = vld [vmem:[#allocation2 + $0x16a8] sm:$0xff]
    %v809 = vld [vmem:[#allocation2 + $0x16b0] sm:$0xff]
    %v810 = vld [vmem:[#allocation2 + $0x16b8] sm:$0xff]
    %v811 = vld [vmem:[#allocation2 + $0x16c0] sm:$0xff]
    %v812 = vld [vmem:[#allocation2 + $0x16c8] sm:$0xff]
    %v813 = vld [vmem:[#allocation2 + $0x16d0] sm:$0xff]
    %v814 = vld [vmem:[#allocation2 + $0x16d8] sm:$0xff]
    %v815 = vld [vmem:[#allocation2 + $0x16e0] sm:$0xff]
    %v816 = vld [vmem:[#allocation2 + $0x16e8] sm:$0xff]
    %v817 = vld [vmem:[#allocation2 + $0x16f0] sm:$0xff]
    %v818 = vld [vmem:[#allocation2 + $0x16f8] sm:$0xff]
    %v819 = vld [vmem:[#allocation2 + $0x1700] sm:$0xff]
    %v820 = vld [vmem:[#allocation2 + $0x1708] sm:$0xff]
    %v821 = vld [vmem:[#allocation2 + $0x1710] sm:$0xff]
    %v822 = vld [vmem:[#allocation2 + $0x1718] sm:$0xff]
    %v823 = vld [vmem:[#allocation2 + $0x1720] sm:$0xff]
    %v824 = vld [vmem:[#allocation2 + $0x1728] sm:$0xff]
    %v825 = vld [vmem:[#allocation2 + $0x1730] sm:$0xff]
    %v826 = vld [vmem:[#allocation2 + $0x1738] sm:$0xff]
    %v827 = vld [vmem:[#allocation2 + $0x1740] sm:$0xff]
    %v828 = vld [vmem:[#allocation2 + $0x1748] sm:$0xff]
    %v829 = vld [vmem:[#allocation2 + $0x1750] sm:$0xff]
    %v830 = vld [vmem:[#allocation2 + $0x1758] sm:$0xff]
    %v831 = vld [vmem:[#allocation2 + $0x1760] sm:$0xff]
    %v832 = vld [vmem:[#allocation2 + $0x1768] sm:$0xff]
    %v833 = vld [vmem:[#allocation2 + $0x1770] sm:$0xff]
    %v834 = vld [vmem:[#allocation2 + $0x1778] sm:$0xff]
    %v835 = vld [vmem:[#allocation2 + $0x1780] sm:$0xff]
    %v836 = vld [vmem:[#allocation2 + $0x1788] sm:$0xff]
    %v837 = vld [vmem:[#allocation2 + $0x1790] sm:$0xff]
    %v838 = vld [vmem:[#allocation2 + $0x1798] sm:$0xff]
    %v839 = vld [vmem:[#allocation2 + $0x17a0] sm:$0xff]
    %v840 = vld [vmem:[#allocation2 + $0x17a8] sm:$0xff]
    %v841 = vld [vmem:[#allocation2 + $0x17b0] sm:$0xff]
    %v842 = vld [vmem:[#allocation2 + $0x17b8] sm:$0xff]
    %v843 = vld [vmem:[#allocation2 + $0x17c0] sm:$0xff]
    %v844 = vld [vmem:[#allocation2 + $0x17c8] sm:$0xff]
    %v845 = vld [vmem:[#allocation2 + $0x17d0] sm:$0xff]
    %v846 = vld [vmem:[#allocation2 + $0x17d8] sm:$0xff]
    %v847 = vld [vmem:[#allocation2 + $0x17e0] sm:$0xff]
    %v848 = vld [vmem:[#allocation2 + $0x17e8] sm:$0xff]
    %v849 = vld [vmem:[#allocation2 + $0x17f0] sm:$0xff]
    %v850 = vld [vmem:[#allocation2 + $0x17f8] sm:$0xff]
    %v851 = vld [vmem:[#allocation2 + $0x1800] sm:$0xff]
    %v852 = vld [vmem:[#allocation2 + $0x1808] sm:$0xff]
    %v853 = vld [vmem:[#allocation2 + $0x1810] sm:$0xff]
    %v854 = vld [vmem:[#allocation2 + $0x1818] sm:$0xff]
    %v855 = vld [vmem:[#allocation2 + $0x1820] sm:$0xff]
    %v856 = vld [vmem:[#allocation2 + $0x1828] sm:$0xff]
    %v857 = vld [vmem:[#allocation2 + $0x1830] sm:$0xff]
    %v858 = vld [vmem:[#allocation2 + $0x1838] sm:$0xff]
    %v859 = vld [vmem:[#allocation2 + $0x1840] sm:$0xff]
    %v860 = vld [vmem:[#allocation2 + $0x1848] sm:$0xff]
    %v861 = vld [vmem:[#allocation2 + $0x1850] sm:$0xff]
    %v862 = vld [vmem:[#allocation2 + $0x1858] sm:$0xff]
    %v863 = vld [vmem:[#allocation2 + $0x1860] sm:$0xff]
    %v864 = vld [vmem:[#allocation2 + $0x1868] sm:$0xff]
    %v865 = vld [vmem:[#allocation2 + $0x1870] sm:$0xff]
    %v866 = vld [vmem:[#allocation2 + $0x1878] sm:$0xff]
    %v867 = vld [vmem:[#allocation2 + $0x1880] sm:$0xff]
    %v868 = vld [vmem:[#allocation2 + $0x1888] sm:$0xff]
    %v869 = vld [vmem:[#allocation2 + $0x1890] sm:$0xff]
    %v870 = vld [vmem:[#allocation2 + $0x1898] sm:$0xff]
    %v871 = vld [vmem:[#allocation2 + $0x18a0] sm:$0xff]
    %v872 = vld [vmem:[#allocation2 + $0x18a8] sm:$0xff]
    %v873 = vld [vmem:[#allocation2 + $0x18b0] sm:$0xff]
    %v874 = vld [vmem:[#allocation2 + $0x18b8] sm:$0xff]
    %v875 = vld [vmem:[#allocation2 + $0x18c0] sm:$0xff]
    %v876 = vld [vmem:[#allocation2 + $0x18c8] sm:$0xff]
    %v877 = vld [vmem:[#allocation2 + $0x18d0] sm:$0xff]
    %v878 = vld [vmem:[#allocation2 + $0x18d8] sm:$0xff]
    %v879 = vld [vmem:[#allocation2 + $0x18e0] sm:$0xff]
    %v880 = vld [vmem:[#allocation2 + $0x18e8] sm:$0xff]
    %v881 = vld [vmem:[#allocation2 + $0x18f0] sm:$0xff]
    %v882 = vld [vmem:[#allocation2 + $0x18f8] sm:$0xff]
    %v883 = vld [vmem:[#allocation2 + $0x1900] sm:$0xff]
    %v884 = vld [vmem:[#allocation2 + $0x1908] sm:$0xff]
    %v885 = vld [vmem:[#allocation2 + $0x1910] sm:$0xff]
    %v886 = vld [vmem:[#allocation2 + $0x1918] sm:$0xff]
    %v887 = vld [vmem:[#allocation2 + $0x1920] sm:$0xff]
    %v888 = vld [vmem:[#allocation2 + $0x1928] sm:$0xff]
    %v889 = vld [vmem:[#allocation2 + $0x1930] sm:$0xff]
    %v890 = vld [vmem:[#allocation2 + $0x1938] sm:$0xff]
    %v891 = vld [vmem:[#allocation2 + $0x1940] sm:$0xff]
    %v892 = vld [vmem:[#allocation2 + $0x1948] sm:$0xff]
    %v893 = vld [vmem:[#allocation2 + $0x1950] sm:$0xff]
    %v894 = vld [vmem:[#allocation2 + $0x1958] sm:$0xff]
    %v895 = vld [vmem:[#allocation2 + $0x1960] sm:$0xff]
    %v896 = vld [vmem:[#allocation2 + $0x1968] sm:$0xff]
    %v897 = vld [vmem:[#allocation2 + $0x1970] sm:$0xff]
    %v898 = vld [vmem:[#allocation2 + $0x1978] sm:$0xff]
    %v899 = vld [vmem:[#allocation2 + $0x1980] sm:$0xff]
    %v900 = vld [vmem:[#allocation2 + $0x1988] sm:$0xff]
    %v901 = vld [vmem:[#allocation2 + $0x1990] sm:$0xff]
    %v902 = vld [vmem:[#allocation2 + $0x1998] sm:$0xff]
    %v903 = vld [vmem:[#allocation2 + $0x19a0] sm:$0xff]
    %v904 = vld [vmem:[#allocation2 + $0x19a8] sm:$0xff]
    %v905 = vld [vmem:[#allocation2 + $0x19b0] sm:$0xff]
    %v906 = vld [vmem:[#allocation2 + $0x19b8] sm:$0xff]
    %v907 = vld [vmem:[#allocation2 + $0x19c0] sm:$0xff]
    %v908 = vld [vmem:[#allocation2 + $0x19c8] sm:$0xff]
    %v909 = vld [vmem:[#allocation2 + $0x19d0] sm:$0xff]
    %v910 = vld [vmem:[#allocation2 + $0x19d8] sm:$0xff]
    %v911 = vld [vmem:[#allocation2 + $0x19e0] sm:$0xff]
    %v912 = vld [vmem:[#allocation2 + $0x19e8] sm:$0xff]
    %v913 = vld [vmem:[#allocation2 + $0x19f0] sm:$0xff]
    %v914 = vld [vmem:[#allocation2 + $0x19f8] sm:$0xff]
    %v915 = vld [vmem:[#allocation2 + $0x1a00] sm:$0xff]
    %v916 = vld [vmem:[#allocation2 + $0x1a08] sm:$0xff]
    %v917 = vld [vmem:[#allocation2 + $0x1a10] sm:$0xff]
    %v918 = vld [vmem:[#allocation2 + $0x1a18] sm:$0xff]
    %v919 = vld [vmem:[#allocation2 + $0x1a20] sm:$0xff]
    %v920 = vld [vmem:[#allocation2 + $0x1a28] sm:$0xff]
    %v921 = vld [vmem:[#allocation2 + $0x1a30] sm:$0xff]
    %v922 = vld [vmem:[#allocation2 + $0x1a38] sm:$0xff]
    %v923 = vld [vmem:[#allocation2 + $0x1a40] sm:$0xff]
    %v924 = vld [vmem:[#allocation2 + $0x1a48] sm:$0xff]
    %v925 = vld [vmem:[#allocation2 + $0x1a50] sm:$0xff]
    %v926 = vld [vmem:[#allocation2 + $0x1a58] sm:$0xff]
    %v927 = vld [vmem:[#allocation2 + $0x1a60] sm:$0xff]
    %v928 = vld [vmem:[#allocation2 + $0x1a68] sm:$0xff]
    %v929 = vld [vmem:[#allocation2 + $0x1a70] sm:$0xff]
    %v930 = vld [vmem:[#allocation2 + $0x1a78] sm:$0xff]
    %v931 = vld [vmem:[#allocation2 + $0x1a80] sm:$0xff]
    %v932 = vld [vmem:[#allocation2 + $0x1a88] sm:$0xff]
    %v933 = vld [vmem:[#allocation2 + $0x1a90] sm:$0xff]
    %v934 = vld [vmem:[#allocation2 + $0x1a98] sm:$0xff]
    %v935 = vld [vmem:[#allocation2 + $0x1aa0] sm:$0xff]
    %v936 = vld [vmem:[#allocation2 + $0x1aa8] sm:$0xff]
    %v937 = vld [vmem:[#allocation2 + $0x1ab0] sm:$0xff]
    %v938 = vld [vmem:[#allocation2 + $0x1ab8] sm:$0xff]
    %v939 = vld [vmem:[#allocation2 + $0x1ac0] sm:$0xff]
    %v940 = vld [vmem:[#allocation2 + $0x1ac8] sm:$0xff]
    %v941 = vld [vmem:[#allocation2 + $0x1ad0] sm:$0xff]
    %v942 = vld [vmem:[#allocation2 + $0x1ad8] sm:$0xff]
    %v943 = vld [vmem:[#allocation2 + $0x1ae0] sm:$0xff]
    %v944 = vld [vmem:[#allocation2 + $0x1ae8] sm:$0xff]
    %v945 = vld [vmem:[#allocation2 + $0x1af0] sm:$0xff]
    %v946 = vld [vmem:[#allocation2 + $0x1af8] sm:$0xff]
    %v947 = vld [vmem:[#allocation7] sm:$0xff]
    %v948 = vld [vmem:[#allocation7 + $0x8] sm:$0xff]
    %v949 = vld [vmem:[#allocation7 + $0x10] sm:$0x3]
    %v953 = vlaneseq
    %v954 = vshrl.u32 %v953, 7
    %v955 = vsub.s32 0, %v954
    %v956 = vrot.slane %v947, %v955
    %v957 = vlaneseq
    %v958 = vshrl.u32 %v957, 7
    %v959 = vsub.s32 1, %v958
    %v960 = vrot.slane %v947, %v959
    %v961 = vlaneseq
    %v962 = vshrl.u32 %v961, 7
    %v963 = vsub.s32 2, %v962
    %v964 = vrot.slane %v947, %v963
    %v965 = vlaneseq
    %v966 = vshrl.u32 %v965, 7
    %v967 = vsub.s32 3, %v966
    %v968 = vrot.slane %v947, %v967
    %v969 = vlaneseq
    %v970 = vshrl.u32 %v969, 7
    %v971 = vsub.s32 4, %v970
    %v972 = vrot.slane %v947, %v971
    %v973 = vlaneseq
    %v974 = vshrl.u32 %v973, 7
    %v975 = vsub.s32 5, %v974
    %v976 = vrot.slane %v947, %v975
    %v977 = vlaneseq
    %v978 = vshrl.u32 %v977, 7
    %v979 = vsub.s32 6, %v978
    %v980 = vrot.slane %v947, %v979
    %v981 = vlaneseq
    %v982 = vshrl.u32 %v981, 7
    %v983 = vsub.s32 7, %v982
    %v984 = vrot.slane %v947, %v983
    %v985 = vlaneseq
    %v986 = vshrl.u32 %v985, 7
    %v987 = vsub.s32 0, %v986
    %v988 = vrot.slane %v948, %v987
    %v989 = vlaneseq
    %v990 = vshrl.u32 %v989, 7
    %v991 = vsub.s32 1, %v990
    %v992 = vrot.slane %v948, %v991
    %v993 = vlaneseq
    %v994 = vshrl.u32 %v993, 7
    %v995 = vsub.s32 2, %v994
    %v996 = vrot.slane %v948, %v995
    %v997 = vlaneseq
    %v998 = vshrl.u32 %v997, 7
    %v999 = vsub.s32 3, %v998
    %v1000 = vrot.slane %v948, %v999
    %v1001 = vlaneseq
    %v1002 = vshrl.u32 %v1001, 7
    %v1003 = vsub.s32 4, %v1002
    %v1004 = vrot.slane %v948, %v1003
    %v1005 = vlaneseq
    %v1006 = vshrl.u32 %v1005, 7
    %v1007 = vsub.s32 5, %v1006
    %v1008 = vrot.slane %v948, %v1007
    %v1009 = vlaneseq
    %v1010 = vshrl.u32 %v1009, 7
    %v1011 = vsub.s32 6, %v1010
    %v1012 = vrot.slane %v948, %v1011
    %v1013 = vlaneseq
    %v1014 = vshrl.u32 %v1013, 7
    %v1015 = vsub.s32 7, %v1014
    %v1016 = vrot.slane %v948, %v1015
    %v1017 = vlaneseq
    %v1018 = vshrl.u32 %v1017, 7
    %v1019 = vsub.s32 0, %v1018
    %v1020 = vrot.slane %v949, %v1019
    %v1021 = vlaneseq
    %v1022 = vshrl.u32 %v1021, 7
    %v1023 = vsub.s32 1, %v1022
    %v1024 = vrot.slane %v949, %v1023
    %v1046 = vunpack.c.l.b16 %v80
    %v1047 = vunpack.c.h.b16 %v80
    %v1048 = vunpack.c.l.b16 %v81
    %v1049 = vunpack.c.h.b16 %v81
    %v1050 = vunpack.c.l.b16 %v82
    %v1051 = vunpack.c.h.b16 %v82
    %v1052 = vpack.c.b16 %v1046, %v1046
    %v1053 = vpack.c.b16 %v1047, %v1047
    %v1054 = vpack.c.b16 %v1048, %v1048
    %v1055 = vpack.c.b16 %v1049, %v1049
    %v1056 = vpack.c.b16 %v1050, %v1050
    %v1057 = vpack.c.b16 %v1051, %v1051
    %v1928 = vunpack.c.l.b16 %v83
    %v1929 = vunpack.c.h.b16 %v83
    %v1930 = vunpack.c.l.b16 %v84
    %v1931 = vunpack.c.h.b16 %v84
    %v1932 = vunpack.c.l.b16 %v85
    %v1933 = vunpack.c.h.b16 %v85
    %v1934 = vunpack.c.l.b16 %v86
    %v1935 = vunpack.c.h.b16 %v86
    %v1936 = vunpack.c.l.b16 %v87
    %v1937 = vunpack.c.h.b16 %v87
    %v1938 = vunpack.c.l.b16 %v88
    %v1939 = vunpack.c.h.b16 %v88
    %v1940 = vunpack.c.l.b16 %v89
    %v1941 = vunpack.c.h.b16 %v89
    %v1942 = vunpack.c.l.b16 %v90
    %v1943 = vunpack.c.h.b16 %v90
    %v1944 = vunpack.c.l.b16 %v91
    %v1945 = vunpack.c.h.b16 %v91
    %v1946 = vunpack.c.l.b16 %v92
    %v1947 = vunpack.c.h.b16 %v92
    %v1948 = vunpack.c.l.b16 %v93
    %v1949 = vunpack.c.h.b16 %v93
    %v1950 = vunpack.c.l.b16 %v94
    %v1951 = vunpack.c.h.b16 %v94
    %v1952 = vunpack.c.l.b16 %v95
    %v1953 = vunpack.c.h.b16 %v95
    %v1954 = vunpack.c.l.b16 %v96
    %v1955 = vunpack.c.h.b16 %v96
    %v1956 = vunpack.c.l.b16 %v97
    %v1957 = vunpack.c.h.b16 %v97
    %v1958 = vunpack.c.l.b16 %v98
    %v1959 = vunpack.c.h.b16 %v98
    %v1960 = vunpack.c.l.b16 %v99
    %v1961 = vunpack.c.h.b16 %v99
    %v1962 = vunpack.c.l.b16 %v100
    %v1963 = vunpack.c.h.b16 %v100
    %v1964 = vunpack.c.l.b16 %v101
    %v1965 = vunpack.c.h.b16 %v101
    %v1966 = vunpack.c.l.b16 %v102
    %v1967 = vunpack.c.h.b16 %v102
    %v1968 = vunpack.c.l.b16 %v103
    %v1969 = vunpack.c.h.b16 %v103
    %v1970 = vunpack.c.l.b16 %v104
    %v1971 = vunpack.c.h.b16 %v104
    %v1972 = vunpack.c.l.b16 %v105
    %v1973 = vunpack.c.h.b16 %v105
    %v1974 = vunpack.c.l.b16 %v106
    %v1975 = vunpack.c.h.b16 %v106
    %v1976 = vunpack.c.l.b16 %v107
    %v1977 = vunpack.c.h.b16 %v107
    %v1978 = vunpack.c.l.b16 %v108
    %v1979 = vunpack.c.h.b16 %v108
    %v1980 = vunpack.c.l.b16 %v109
    %v1981 = vunpack.c.h.b16 %v109
    %v1982 = vunpack.c.l.b16 %v110
    %v1983 = vunpack.c.h.b16 %v110
    %v1984 = vunpack.c.l.b16 %v111
    %v1985 = vunpack.c.h.b16 %v111
    %v1986 = vunpack.c.l.b16 %v112
    %v1987 = vunpack.c.h.b16 %v112
    %v1988 = vunpack.c.l.b16 %v113
    %v1989 = vunpack.c.h.b16 %v113
    %v1990 = vunpack.c.l.b16 %v114
    %v1991 = vunpack.c.h.b16 %v114
    %v1992 = vunpack.c.l.b16 %v115
    %v1993 = vunpack.c.h.b16 %v115
    %v1994 = vunpack.c.l.b16 %v116
    %v1995 = vunpack.c.h.b16 %v116
    %v1996 = vunpack.c.l.b16 %v117
    %v1997 = vunpack.c.h.b16 %v117
    %v1998 = vunpack.c.l.b16 %v118
    %v1999 = vunpack.c.h.b16 %v118
    %v2000 = vunpack.c.l.b16 %v119
    %v2001 = vunpack.c.h.b16 %v119
    %v2002 = vunpack.c.l.b16 %v120
    %v2003 = vunpack.c.h.b16 %v120
    %v2004 = vunpack.c.l.b16 %v121
    %v2005 = vunpack.c.h.b16 %v121
    %v2006 = vunpack.c.l.b16 %v122
    %v2007 = vunpack.c.h.b16 %v122
    %v2008 = vunpack.c.l.b16 %v123
    %v2009 = vunpack.c.h.b16 %v123
    %v2010 = vunpack.c.l.b16 %v124
    %v2011 = vunpack.c.h.b16 %v124
    %v2012 = vunpack.c.l.b16 %v125
    %v2013 = vunpack.c.h.b16 %v125
    %v2014 = vunpack.c.l.b16 %v126
    %v2015 = vunpack.c.h.b16 %v126
    %v2016 = vunpack.c.l.b16 %v127
    %v2017 = vunpack.c.h.b16 %v127
    %v2018 = vunpack.c.l.b16 %v128
    %v2019 = vunpack.c.h.b16 %v128
    %v2020 = vunpack.c.l.b16 %v129
    %v2021 = vunpack.c.h.b16 %v129
    %v2022 = vunpack.c.l.b16 %v130
    %v2023 = vunpack.c.h.b16 %v130
    %v2024 = vunpack.c.l.b16 %v131
    %v2025 = vunpack.c.h.b16 %v131
    %v2026 = vunpack.c.l.b16 %v132
    %v2027 = vunpack.c.h.b16 %v132
    %v2028 = vunpack.c.l.b16 %v133
    %v2029 = vunpack.c.h.b16 %v133
    %v2030 = vunpack.c.l.b16 %v134
    %v2031 = vunpack.c.h.b16 %v134
    %v2032 = vunpack.c.l.b16 %v135
    %v2033 = vunpack.c.h.b16 %v135
    %v2034 = vunpack.c.l.b16 %v136
    %v2035 = vunpack.c.h.b16 %v136
    %v2036 = vunpack.c.l.b16 %v137
    %v2037 = vunpack.c.h.b16 %v137
    %v2038 = vunpack.c.l.b16 %v138
    %v2039 = vunpack.c.h.b16 %v138
    %v2040 = vunpack.c.l.b16 %v139
    %v2041 = vunpack.c.h.b16 %v139
    %v2042 = vunpack.c.l.b16 %v140
    %v2043 = vunpack.c.h.b16 %v140
    %v2044 = vunpack.c.l.b16 %v141
    %v2045 = vunpack.c.h.b16 %v141
    %v2046 = vunpack.c.l.b16 %v142
    %v2047 = vunpack.c.h.b16 %v142
    %v2048 = vunpack.c.l.b16 %v143
    %v2049 = vunpack.c.h.b16 %v143
    %v2050 = vunpack.c.l.b16 %v144
    %v2051 = vunpack.c.h.b16 %v144
    %v2052 = vunpack.c.l.b16 %v145
    %v2053 = vunpack.c.h.b16 %v145
    %v2054 = vunpack.c.l.b16 %v146
    %v2055 = vunpack.c.h.b16 %v146
    %v2056 = vunpack.c.l.b16 %v147
    %v2057 = vunpack.c.h.b16 %v147
    %v2058 = vunpack.c.l.b16 %v148
    %v2059 = vunpack.c.h.b16 %v148
    %v2060 = vunpack.c.l.b16 %v149
    %v2061 = vunpack.c.h.b16 %v149
    %v2062 = vunpack.c.l.b16 %v150
    %v2063 = vunpack.c.h.b16 %v150
    %v2064 = vunpack.c.l.b16 %v151
    %v2065 = vunpack.c.h.b16 %v151
    %v2066 = vunpack.c.l.b16 %v152
    %v2067 = vunpack.c.h.b16 %v152
    %v2068 = vunpack.c.l.b16 %v153
    %v2069 = vunpack.c.h.b16 %v153
    %v2070 = vunpack.c.l.b16 %v154
    %v2071 = vunpack.c.h.b16 %v154
    %v2072 = vunpack.c.l.b16 %v155
    %v2073 = vunpack.c.h.b16 %v155
    %v2074 = vunpack.c.l.b16 %v156
    %v2075 = vunpack.c.h.b16 %v156
    %v2076 = vunpack.c.l.b16 %v157
    %v2077 = vunpack.c.h.b16 %v157
    %v2078 = vunpack.c.l.b16 %v158
    %v2079 = vunpack.c.h.b16 %v158
    %v2080 = vunpack.c.l.b16 %v159
    %v2081 = vunpack.c.h.b16 %v159
    %v2082 = vunpack.c.l.b16 %v160
    %v2083 = vunpack.c.h.b16 %v160
    %v2084 = vunpack.c.l.b16 %v161
    %v2085 = vunpack.c.h.b16 %v161
    %v2086 = vunpack.c.l.b16 %v162
    %v2087 = vunpack.c.h.b16 %v162
    %v2088 = vunpack.c.l.b16 %v163
    %v2089 = vunpack.c.h.b16 %v163
    %v2090 = vunpack.c.l.b16 %v164
    %v2091 = vunpack.c.h.b16 %v164
    %v2092 = vunpack.c.l.b16 %v165
    %v2093 = vunpack.c.h.b16 %v165
    %v2094 = vunpack.c.l.b16 %v166
    %v2095 = vunpack.c.h.b16 %v166
    %v2096 = vunpack.c.l.b16 %v167
    %v2097 = vunpack.c.h.b16 %v167
    %v2098 = vunpack.c.l.b16 %v168
    %v2099 = vunpack.c.h.b16 %v168
    %v2100 = vunpack.c.l.b16 %v169
    %v2101 = vunpack.c.h.b16 %v169
    %v2102 = vunpack.c.l.b16 %v170
    %v2103 = vunpack.c.h.b16 %v170
    %v2104 = vunpack.c.l.b16 %v171
    %v2105 = vunpack.c.h.b16 %v171
    %v2106 = vunpack.c.l.b16 %v172
    %v2107 = vunpack.c.h.b16 %v172
    %v2108 = vunpack.c.l.b16 %v173
    %v2109 = vunpack.c.h.b16 %v173
    %v2110 = vunpack.c.l.b16 %v174
    %v2111 = vunpack.c.h.b16 %v174
    %v2112 = vunpack.c.l.b16 %v175
    %v2113 = vunpack.c.h.b16 %v175
    %v2114 = vunpack.c.l.b16 %v176
    %v2115 = vunpack.c.h.b16 %v176
    %v2116 = vunpack.c.l.b16 %v177
    %v2117 = vunpack.c.h.b16 %v177
    %v2118 = vunpack.c.l.b16 %v178
    %v2119 = vunpack.c.h.b16 %v178
    %v2120 = vunpack.c.l.b16 %v179
    %v2121 = vunpack.c.h.b16 %v179
    %v2122 = vunpack.c.l.b16 %v180
    %v2123 = vunpack.c.h.b16 %v180
    %v2124 = vunpack.c.l.b16 %v181
    %v2125 = vunpack.c.h.b16 %v181
    %v2126 = vunpack.c.l.b16 %v182
    %v2127 = vunpack.c.h.b16 %v182
    %v2128 = vunpack.c.l.b16 %v183
    %v2129 = vunpack.c.h.b16 %v183
    %v2130 = vunpack.c.l.b16 %v184
    %v2131 = vunpack.c.h.b16 %v184
    %v2132 = vunpack.c.l.b16 %v185
    %v2133 = vunpack.c.h.b16 %v185
    %v2134 = vunpack.c.l.b16 %v186
    %v2135 = vunpack.c.h.b16 %v186
    %v2136 = vunpack.c.l.b16 %v187
    %v2137 = vunpack.c.h.b16 %v187
    %v2138 = vunpack.c.l.b16 %v188
    %v2139 = vunpack.c.h.b16 %v188
    %v2140 = vunpack.c.l.b16 %v189
    %v2141 = vunpack.c.h.b16 %v189
    %v2142 = vunpack.c.l.b16 %v190
    %v2143 = vunpack.c.h.b16 %v190
    %v2144 = vunpack.c.l.b16 %v191
    %v2145 = vunpack.c.h.b16 %v191
    %v2146 = vunpack.c.l.b16 %v192
    %v2147 = vunpack.c.h.b16 %v192
    %v2148 = vunpack.c.l.b16 %v193
    %v2149 = vunpack.c.h.b16 %v193
    %v2150 = vunpack.c.l.b16 %v194
    %v2151 = vunpack.c.h.b16 %v194
    %v2152 = vunpack.c.l.b16 %v195
    %v2153 = vunpack.c.h.b16 %v195
    %v2154 = vunpack.c.l.b16 %v196
    %v2155 = vunpack.c.h.b16 %v196
    %v2156 = vunpack.c.l.b16 %v197
    %v2157 = vunpack.c.h.b16 %v197
    %v2158 = vunpack.c.l.b16 %v198
    %v2159 = vunpack.c.h.b16 %v198
    %v2160 = vunpack.c.l.b16 %v199
    %v2161 = vunpack.c.h.b16 %v199
    %v2162 = vunpack.c.l.b16 %v200
    %v2163 = vunpack.c.h.b16 %v200
    %v2164 = vunpack.c.l.b16 %v201
    %v2165 = vunpack.c.h.b16 %v201
    %v2166 = vunpack.c.l.b16 %v202
    %v2167 = vunpack.c.h.b16 %v202
    %v2168 = vunpack.c.l.b16 %v203
    %v2169 = vunpack.c.h.b16 %v203
    %v2170 = vunpack.c.l.b16 %v204
    %v2171 = vunpack.c.h.b16 %v204
    %v2172 = vunpack.c.l.b16 %v205
    %v2173 = vunpack.c.h.b16 %v205
    %v2174 = vunpack.c.l.b16 %v206
    %v2175 = vunpack.c.h.b16 %v206
    %v2176 = vunpack.c.l.b16 %v207
    %v2177 = vunpack.c.h.b16 %v207
    %v2178 = vunpack.c.l.b16 %v208
    %v2179 = vunpack.c.h.b16 %v208
    %v2180 = vunpack.c.l.b16 %v209
    %v2181 = vunpack.c.h.b16 %v209
    %v2182 = vunpack.c.l.b16 %v210
    %v2183 = vunpack.c.h.b16 %v210
    %v2184 = vunpack.c.l.b16 %v211
    %v2185 = vunpack.c.h.b16 %v211
    %v2186 = vunpack.c.l.b16 %v212
    %v2187 = vunpack.c.h.b16 %v212
    %v2188 = vunpack.c.l.b16 %v213
    %v2189 = vunpack.c.h.b16 %v213
    %v2190 = vunpack.c.l.b16 %v214
    %v2191 = vunpack.c.h.b16 %v214
    %v2192 = vunpack.c.l.b16 %v215
    %v2193 = vunpack.c.h.b16 %v215
    %v2194 = vunpack.c.l.b16 %v216
    %v2195 = vunpack.c.h.b16 %v216
    %v2196 = vunpack.c.l.b16 %v217
    %v2197 = vunpack.c.h.b16 %v217
    %v2198 = vunpack.c.l.b16 %v218
    %v2199 = vunpack.c.h.b16 %v218
    %v2200 = vunpack.c.l.b16 %v219
    %v2201 = vunpack.c.h.b16 %v219
    %v2202 = vunpack.c.l.b16 %v220
    %v2203 = vunpack.c.h.b16 %v220
    %v2204 = vunpack.c.l.b16 %v221
    %v2205 = vunpack.c.h.b16 %v221
    %v2206 = vunpack.c.l.b16 %v222
    %v2207 = vunpack.c.h.b16 %v222
    %v2208 = vunpack.c.l.b16 %v223
    %v2209 = vunpack.c.h.b16 %v223
    %v2210 = vunpack.c.l.b16 %v224
    %v2211 = vunpack.c.h.b16 %v224
    %v2212 = vunpack.c.l.b16 %v225
    %v2213 = vunpack.c.h.b16 %v225
    %v2214 = vunpack.c.l.b16 %v226
    %v2215 = vunpack.c.h.b16 %v226
    %v2216 = vunpack.c.l.b16 %v227
    %v2217 = vunpack.c.h.b16 %v227
    %v2218 = vunpack.c.l.b16 %v228
    %v2219 = vunpack.c.h.b16 %v228
    %v2220 = vunpack.c.l.b16 %v229
    %v2221 = vunpack.c.h.b16 %v229
    %v2222 = vunpack.c.l.b16 %v230
    %v2223 = vunpack.c.h.b16 %v230
    %v2224 = vunpack.c.l.b16 %v231
    %v2225 = vunpack.c.h.b16 %v231
    %v2226 = vunpack.c.l.b16 %v232
    %v2227 = vunpack.c.h.b16 %v232
    %v2228 = vunpack.c.l.b16 %v233
    %v2229 = vunpack.c.h.b16 %v233
    %v2230 = vunpack.c.l.b16 %v234
    %v2231 = vunpack.c.h.b16 %v234
    %v2232 = vunpack.c.l.b16 %v235
    %v2233 = vunpack.c.h.b16 %v235
    %v2234 = vunpack.c.l.b16 %v236
    %v2235 = vunpack.c.h.b16 %v236
    %v2236 = vunpack.c.l.b16 %v237
    %v2237 = vunpack.c.h.b16 %v237
    %v2238 = vunpack.c.l.b16 %v238
    %v2239 = vunpack.c.h.b16 %v238
    %v2240 = vunpack.c.l.b16 %v239
    %v2241 = vunpack.c.h.b16 %v239
    %v2242 = vunpack.c.l.b16 %v240
    %v2243 = vunpack.c.h.b16 %v240
    %v2244 = vunpack.c.l.b16 %v241
    %v2245 = vunpack.c.h.b16 %v241
    %v2246 = vunpack.c.l.b16 %v242
    %v2247 = vunpack.c.h.b16 %v242
    %v2248 = vunpack.c.l.b16 %v243
    %v2249 = vunpack.c.h.b16 %v243
    %v2250 = vunpack.c.l.b16 %v244
    %v2251 = vunpack.c.h.b16 %v244
    %v2252 = vunpack.c.l.b16 %v245
    %v2253 = vunpack.c.h.b16 %v245
    %v2254 = vunpack.c.l.b16 %v246
    %v2255 = vunpack.c.h.b16 %v246
    %v2256 = vunpack.c.l.b16 %v247
    %v2257 = vunpack.c.h.b16 %v247
    %v2258 = vunpack.c.l.b16 %v248
    %v2259 = vunpack.c.h.b16 %v248
    %v2260 = vunpack.c.l.b16 %v249
    %v2261 = vunpack.c.h.b16 %v249
    %v2262 = vunpack.c.l.b16 %v250
    %v2263 = vunpack.c.h.b16 %v250
    %v2264 = vunpack.c.l.b16 %v251
    %v2265 = vunpack.c.h.b16 %v251
    %v2266 = vunpack.c.l.b16 %v252
    %v2267 = vunpack.c.h.b16 %v252
    %v2268 = vunpack.c.l.b16 %v253
    %v2269 = vunpack.c.h.b16 %v253
    %v2270 = vunpack.c.l.b16 %v254
    %v2271 = vunpack.c.h.b16 %v254
    %v2272 = vunpack.c.l.b16 %v255
    %v2273 = vunpack.c.h.b16 %v255
    %v2274 = vunpack.c.l.b16 %v256
    %v2275 = vunpack.c.h.b16 %v256
    %v2276 = vunpack.c.l.b16 %v257
    %v2277 = vunpack.c.h.b16 %v257
    %v2278 = vunpack.c.l.b16 %v258
    %v2279 = vunpack.c.h.b16 %v258
    %v2280 = vunpack.c.l.b16 %v259
    %v2281 = vunpack.c.h.b16 %v259
    %v2282 = vunpack.c.l.b16 %v260
    %v2283 = vunpack.c.h.b16 %v260
    %v2284 = vunpack.c.l.b16 %v261
    %v2285 = vunpack.c.h.b16 %v261
    %v2286 = vunpack.c.l.b16 %v262
    %v2287 = vunpack.c.h.b16 %v262
    %v2288 = vunpack.c.l.b16 %v263
    %v2289 = vunpack.c.h.b16 %v263
    %v2290 = vunpack.c.l.b16 %v264
    %v2291 = vunpack.c.h.b16 %v264
    %v2292 = vunpack.c.l.b16 %v265
    %v2293 = vunpack.c.h.b16 %v265
    %v2294 = vunpack.c.l.b16 %v266
    %v2295 = vunpack.c.h.b16 %v266
    %v2296 = vunpack.c.l.b16 %v267
    %v2297 = vunpack.c.h.b16 %v267
    %v2298 = vunpack.c.l.b16 %v268
    %v2299 = vunpack.c.h.b16 %v268
    %v2300 = vunpack.c.l.b16 %v269
    %v2301 = vunpack.c.h.b16 %v269
    %v2302 = vunpack.c.l.b16 %v270
    %v2303 = vunpack.c.h.b16 %v270
    %v2304 = vunpack.c.l.b16 %v271
    %v2305 = vunpack.c.h.b16 %v271
    %v2306 = vunpack.c.l.b16 %v272
    %v2307 = vunpack.c.h.b16 %v272
    %v2308 = vunpack.c.l.b16 %v273
    %v2309 = vunpack.c.h.b16 %v273
    %v2310 = vunpack.c.l.b16 %v274
    %v2311 = vunpack.c.h.b16 %v274
    %v2312 = vunpack.c.l.b16 %v275
    %v2313 = vunpack.c.h.b16 %v275
    %v2314 = vunpack.c.l.b16 %v276
    %v2315 = vunpack.c.h.b16 %v276
    %v2316 = vunpack.c.l.b16 %v277
    %v2317 = vunpack.c.h.b16 %v277
    %v2318 = vunpack.c.l.b16 %v278
    %v2319 = vunpack.c.h.b16 %v278
    %v2320 = vunpack.c.l.b16 %v279
    %v2321 = vunpack.c.h.b16 %v279
    %v2322 = vunpack.c.l.b16 %v280
    %v2323 = vunpack.c.h.b16 %v280
    %v2324 = vunpack.c.l.b16 %v281
    %v2325 = vunpack.c.h.b16 %v281
    %v2326 = vunpack.c.l.b16 %v282
    %v2327 = vunpack.c.h.b16 %v282
    %v2328 = vunpack.c.l.b16 %v283
    %v2329 = vunpack.c.h.b16 %v283
    %v2330 = vunpack.c.l.b16 %v284
    %v2331 = vunpack.c.h.b16 %v284
    %v2332 = vunpack.c.l.b16 %v285
    %v2333 = vunpack.c.h.b16 %v285
    %v2334 = vunpack.c.l.b16 %v286
    %v2335 = vunpack.c.h.b16 %v286
    %v2336 = vunpack.c.l.b16 %v287
    %v2337 = vunpack.c.h.b16 %v287
    %v2338 = vunpack.c.l.b16 %v288
    %v2339 = vunpack.c.h.b16 %v288
    %v2340 = vunpack.c.l.b16 %v289
    %v2341 = vunpack.c.h.b16 %v289
    %v2342 = vunpack.c.l.b16 %v290
    %v2343 = vunpack.c.h.b16 %v290
    %v2344 = vunpack.c.l.b16 %v291
    %v2345 = vunpack.c.h.b16 %v291
    %v2346 = vunpack.c.l.b16 %v292
    %v2347 = vunpack.c.h.b16 %v292
    %v2348 = vunpack.c.l.b16 %v293
    %v2349 = vunpack.c.h.b16 %v293
    %v2350 = vunpack.c.l.b16 %v294
    %v2351 = vunpack.c.h.b16 %v294
    %v2352 = vunpack.c.l.b16 %v295
    %v2353 = vunpack.c.h.b16 %v295
    %v2354 = vunpack.c.l.b16 %v296
    %v2355 = vunpack.c.h.b16 %v296
    %v2356 = vunpack.c.l.b16 %v297
    %v2357 = vunpack.c.h.b16 %v297
    %v2358 = vunpack.c.l.b16 %v298
    %v2359 = vunpack.c.h.b16 %v298
    %v2360 = vunpack.c.l.b16 %v299
    %v2361 = vunpack.c.h.b16 %v299
    %v2362 = vunpack.c.l.b16 %v300
    %v2363 = vunpack.c.h.b16 %v300
    %v2364 = vunpack.c.l.b16 %v301
    %v2365 = vunpack.c.h.b16 %v301
    %v2366 = vunpack.c.l.b16 %v302
    %v2367 = vunpack.c.h.b16 %v302
    %v2368 = vunpack.c.l.b16 %v303
    %v2369 = vunpack.c.h.b16 %v303
    %v2370 = vunpack.c.l.b16 %v304
    %v2371 = vunpack.c.h.b16 %v304
    %v2372 = vunpack.c.l.b16 %v305
    %v2373 = vunpack.c.h.b16 %v305
    %v2374 = vunpack.c.l.b16 %v306
    %v2375 = vunpack.c.h.b16 %v306
    %v2376 = vunpack.c.l.b16 %v307
    %v2377 = vunpack.c.h.b16 %v307
    %v2378 = vunpack.c.l.b16 %v308
    %v2379 = vunpack.c.h.b16 %v308
    %v2380 = vunpack.c.l.b16 %v309
    %v2381 = vunpack.c.h.b16 %v309
    %v2382 = vunpack.c.l.b16 %v310
    %v2383 = vunpack.c.h.b16 %v310
    %v2384 = vunpack.c.l.b16 %v311
    %v2385 = vunpack.c.h.b16 %v311
    %v2386 = vunpack.c.l.b16 %v312
    %v2387 = vunpack.c.h.b16 %v312
    %v2388 = vunpack.c.l.b16 %v313
    %v2389 = vunpack.c.h.b16 %v313
    %v2390 = vunpack.c.l.b16 %v314
    %v2391 = vunpack.c.h.b16 %v314
    %v2392 = vunpack.c.l.b16 %v315
    %v2393 = vunpack.c.h.b16 %v315
    %v2394 = vunpack.c.l.b16 %v316
    %v2395 = vunpack.c.h.b16 %v316
    %v2396 = vunpack.c.l.b16 %v317
    %v2397 = vunpack.c.h.b16 %v317
    %v2398 = vunpack.c.l.b16 %v318
    %v2399 = vunpack.c.h.b16 %v318
    %v2400 = vunpack.c.l.b16 %v319
    %v2401 = vunpack.c.h.b16 %v319
    %v2402 = vunpack.c.l.b16 %v320
    %v2403 = vunpack.c.h.b16 %v320
    %v2404 = vunpack.c.l.b16 %v321
    %v2405 = vunpack.c.h.b16 %v321
    %v2406 = vunpack.c.l.b16 %v322
    %v2407 = vunpack.c.h.b16 %v322
    %v2408 = vunpack.c.l.b16 %v323
    %v2409 = vunpack.c.h.b16 %v323
    %v2410 = vunpack.c.l.b16 %v324
    %v2411 = vunpack.c.h.b16 %v324
    %v2412 = vunpack.c.l.b16 %v325
    %v2413 = vunpack.c.h.b16 %v325
    %v2414 = vunpack.c.l.b16 %v326
    %v2415 = vunpack.c.h.b16 %v326
    %v2416 = vunpack.c.l.b16 %v327
    %v2417 = vunpack.c.h.b16 %v327
    %v2418 = vunpack.c.l.b16 %v328
    %v2419 = vunpack.c.h.b16 %v328
    %v2420 = vunpack.c.l.b16 %v329
    %v2421 = vunpack.c.h.b16 %v329
    %v2422 = vunpack.c.l.b16 %v330
    %v2423 = vunpack.c.h.b16 %v330
    %v2424 = vunpack.c.l.b16 %v331
    %v2425 = vunpack.c.h.b16 %v331
    %v2426 = vunpack.c.l.b16 %v332
    %v2427 = vunpack.c.h.b16 %v332
    %v2428 = vunpack.c.l.b16 %v333
    %v2429 = vunpack.c.h.b16 %v333
    %v2430 = vunpack.c.l.b16 %v334
    %v2431 = vunpack.c.h.b16 %v334
    %v2432 = vunpack.c.l.b16 %v335
    %v2433 = vunpack.c.h.b16 %v335
    %v2434 = vunpack.c.l.b16 %v336
    %v2435 = vunpack.c.h.b16 %v336
    %v2436 = vunpack.c.l.b16 %v337
    %v2437 = vunpack.c.h.b16 %v337
    %v2438 = vunpack.c.l.b16 %v338
    %v2439 = vunpack.c.h.b16 %v338
    %v2440 = vunpack.c.l.b16 %v339
    %v2441 = vunpack.c.h.b16 %v339
    %v2442 = vunpack.c.l.b16 %v340
    %v2443 = vunpack.c.h.b16 %v340
    %v2444 = vunpack.c.l.b16 %v341
    %v2445 = vunpack.c.h.b16 %v341
    %v2446 = vunpack.c.l.b16 %v342
    %v2447 = vunpack.c.h.b16 %v342
    %v2448 = vunpack.c.l.b16 %v343
    %v2449 = vunpack.c.h.b16 %v343
    %v2450 = vunpack.c.l.b16 %v344
    %v2451 = vunpack.c.h.b16 %v344
    %v2452 = vunpack.c.l.b16 %v345
    %v2453 = vunpack.c.h.b16 %v345
    %v2454 = vunpack.c.l.b16 %v346
    %v2455 = vunpack.c.h.b16 %v346
    %v2456 = vunpack.c.l.b16 %v347
    %v2457 = vunpack.c.h.b16 %v347
    %v2458 = vunpack.c.l.b16 %v348
    %v2459 = vunpack.c.h.b16 %v348
    %v2460 = vunpack.c.l.b16 %v349
    %v2461 = vunpack.c.h.b16 %v349
    %v2462 = vunpack.c.l.b16 %v350
    %v2463 = vunpack.c.h.b16 %v350
    %v2464 = vunpack.c.l.b16 %v351
    %v2465 = vunpack.c.h.b16 %v351
    %v2466 = vunpack.c.l.b16 %v352
    %v2467 = vunpack.c.h.b16 %v352
    %v2468 = vunpack.c.l.b16 %v353
    %v2469 = vunpack.c.h.b16 %v353
    %v2470 = vunpack.c.l.b16 %v354
    %v2471 = vunpack.c.h.b16 %v354
    %v2472 = vunpack.c.l.b16 %v355
    %v2473 = vunpack.c.h.b16 %v355
    %v2474 = vunpack.c.l.b16 %v356
    %v2475 = vunpack.c.h.b16 %v356
    %v2476 = vunpack.c.l.b16 %v357
    %v2477 = vunpack.c.h.b16 %v357
    %v2478 = vunpack.c.l.b16 %v358
    %v2479 = vunpack.c.h.b16 %v358
    %v2480 = vunpack.c.l.b16 %v359
    %v2481 = vunpack.c.h.b16 %v359
    %v2482 = vunpack.c.l.b16 %v360
    %v2483 = vunpack.c.h.b16 %v360
    %v2484 = vunpack.c.l.b16 %v361
    %v2485 = vunpack.c.h.b16 %v361
    %v2486 = vunpack.c.l.b16 %v362
    %v2487 = vunpack.c.h.b16 %v362
    %v2488 = vunpack.c.l.b16 %v363
    %v2489 = vunpack.c.h.b16 %v363
    %v2490 = vunpack.c.l.b16 %v364
    %v2491 = vunpack.c.h.b16 %v364
    %v2492 = vunpack.c.l.b16 %v365
    %v2493 = vunpack.c.h.b16 %v365
    %v2494 = vunpack.c.l.b16 %v366
    %v2495 = vunpack.c.h.b16 %v366
    %v2496 = vunpack.c.l.b16 %v367
    %v2497 = vunpack.c.h.b16 %v367
    %v2498 = vunpack.c.l.b16 %v368
    %v2499 = vunpack.c.h.b16 %v368
    %v2500 = vunpack.c.l.b16 %v369
    %v2501 = vunpack.c.h.b16 %v369
    %v2502 = vunpack.c.l.b16 %v370
    %v2503 = vunpack.c.h.b16 %v370
    %v2504 = vunpack.c.l.b16 %v371
    %v2505 = vunpack.c.h.b16 %v371
    %v2506 = vunpack.c.l.b16 %v372
    %v2507 = vunpack.c.h.b16 %v372
    %v2508 = vunpack.c.l.b16 %v373
    %v2509 = vunpack.c.h.b16 %v373
    %v2510 = vunpack.c.l.b16 %v374
    %v2511 = vunpack.c.h.b16 %v374
    %v2512 = vunpack.c.l.b16 %v375
    %v2513 = vunpack.c.h.b16 %v375
    %v2514 = vunpack.c.l.b16 %v376
    %v2515 = vunpack.c.h.b16 %v376
    %v2516 = vunpack.c.l.b16 %v377
    %v2517 = vunpack.c.h.b16 %v377
    %v2518 = vunpack.c.l.b16 %v378
    %v2519 = vunpack.c.h.b16 %v378
    %v2520 = vunpack.c.l.b16 %v379
    %v2521 = vunpack.c.h.b16 %v379
    %v2522 = vunpack.c.l.b16 %v380
    %v2523 = vunpack.c.h.b16 %v380
    %v2524 = vunpack.c.l.b16 %v381
    %v2525 = vunpack.c.h.b16 %v381
    %v2526 = vunpack.c.l.b16 %v382
    %v2527 = vunpack.c.h.b16 %v382
    %v2528 = vunpack.c.l.b16 %v383
    %v2529 = vunpack.c.h.b16 %v383
    %v2530 = vunpack.c.l.b16 %v384
    %v2531 = vunpack.c.h.b16 %v384
    %v2532 = vunpack.c.l.b16 %v385
    %v2533 = vunpack.c.h.b16 %v385
    %v2534 = vunpack.c.l.b16 %v386
    %v2535 = vunpack.c.h.b16 %v386
    %v2536 = vunpack.c.l.b16 %v387
    %v2537 = vunpack.c.h.b16 %v387
    %v2538 = vunpack.c.l.b16 %v388
    %v2539 = vunpack.c.h.b16 %v388
    %v2540 = vunpack.c.l.b16 %v389
    %v2541 = vunpack.c.h.b16 %v389
    %v2542 = vunpack.c.l.b16 %v390
    %v2543 = vunpack.c.h.b16 %v390
    %v2544 = vunpack.c.l.b16 %v391
    %v2545 = vunpack.c.h.b16 %v391
    %v2546 = vunpack.c.l.b16 %v392
    %v2547 = vunpack.c.h.b16 %v392
    %v2548 = vunpack.c.l.b16 %v393
    %v2549 = vunpack.c.h.b16 %v393
    %v2550 = vunpack.c.l.b16 %v394
    %v2551 = vunpack.c.h.b16 %v394
    %v2552 = vunpack.c.l.b16 %v395
    %v2553 = vunpack.c.h.b16 %v395
    %v2554 = vunpack.c.l.b16 %v396
    %v2555 = vunpack.c.h.b16 %v396
    %v2556 = vunpack.c.l.b16 %v397
    %v2557 = vunpack.c.h.b16 %v397
    %v2558 = vunpack.c.l.b16 %v398
    %v2559 = vunpack.c.h.b16 %v398
    %v2560 = vunpack.c.l.b16 %v399
    %v2561 = vunpack.c.h.b16 %v399
    %v2562 = vunpack.c.l.b16 %v400
    %v2563 = vunpack.c.h.b16 %v400
    %v2564 = vunpack.c.l.b16 %v401
    %v2565 = vunpack.c.h.b16 %v401
    %v2566 = vunpack.c.l.b16 %v402
    %v2567 = vunpack.c.h.b16 %v402
    %v2568 = vunpack.c.l.b16 %v403
    %v2569 = vunpack.c.h.b16 %v403
    %v2570 = vunpack.c.l.b16 %v404
    %v2571 = vunpack.c.h.b16 %v404
    %v2572 = vunpack.c.l.b16 %v405
    %v2573 = vunpack.c.h.b16 %v405
    %v2574 = vunpack.c.l.b16 %v406
    %v2575 = vunpack.c.h.b16 %v406
    %v2576 = vunpack.c.l.b16 %v407
    %v2577 = vunpack.c.h.b16 %v407
    %v2578 = vunpack.c.l.b16 %v408
    %v2579 = vunpack.c.h.b16 %v408
    %v2580 = vunpack.c.l.b16 %v409
    %v2581 = vunpack.c.h.b16 %v409
    %v2582 = vunpack.c.l.b16 %v410
    %v2583 = vunpack.c.h.b16 %v410
    %v2584 = vunpack.c.l.b16 %v411
    %v2585 = vunpack.c.h.b16 %v411
    %v2586 = vunpack.c.l.b16 %v412
    %v2587 = vunpack.c.h.b16 %v412
    %v2588 = vunpack.c.l.b16 %v413
    %v2589 = vunpack.c.h.b16 %v413
    %v2590 = vunpack.c.l.b16 %v414
    %v2591 = vunpack.c.h.b16 %v414
    %v2592 = vunpack.c.l.b16 %v415
    %v2593 = vunpack.c.h.b16 %v415
    %v2594 = vunpack.c.l.b16 %v416
    %v2595 = vunpack.c.h.b16 %v416
    %v2596 = vunpack.c.l.b16 %v417
    %v2597 = vunpack.c.h.b16 %v417
    %v2598 = vunpack.c.l.b16 %v418
    %v2599 = vunpack.c.h.b16 %v418
    %v2600 = vunpack.c.l.b16 %v419
    %v2601 = vunpack.c.h.b16 %v419
    %v2602 = vunpack.c.l.b16 %v420
    %v2603 = vunpack.c.h.b16 %v420
    %v2604 = vunpack.c.l.b16 %v421
    %v2605 = vunpack.c.h.b16 %v421
    %v2606 = vunpack.c.l.b16 %v422
    %v2607 = vunpack.c.h.b16 %v422
    %v2608 = vunpack.c.l.b16 %v423
    %v2609 = vunpack.c.h.b16 %v423
    %v2610 = vunpack.c.l.b16 %v424
    %v2611 = vunpack.c.h.b16 %v424
    %v2612 = vunpack.c.l.b16 %v425
    %v2613 = vunpack.c.h.b16 %v425
    %v2614 = vunpack.c.l.b16 %v426
    %v2615 = vunpack.c.h.b16 %v426
    %v2616 = vunpack.c.l.b16 %v427
    %v2617 = vunpack.c.h.b16 %v427
    %v2618 = vunpack.c.l.b16 %v428
    %v2619 = vunpack.c.h.b16 %v428
    %v2620 = vunpack.c.l.b16 %v429
    %v2621 = vunpack.c.h.b16 %v429
    %v2622 = vunpack.c.l.b16 %v430
    %v2623 = vunpack.c.h.b16 %v430
    %v2624 = vunpack.c.l.b16 %v431
    %v2625 = vunpack.c.h.b16 %v431
    %v2626 = vunpack.c.l.b16 %v432
    %v2627 = vunpack.c.h.b16 %v432
    %v2628 = vunpack.c.l.b16 %v433
    %v2629 = vunpack.c.h.b16 %v433
    %v2630 = vunpack.c.l.b16 %v434
    %v2631 = vunpack.c.h.b16 %v434
    %v2632 = vunpack.c.l.b16 %v435
    %v2633 = vunpack.c.h.b16 %v435
    %v2634 = vunpack.c.l.b16 %v436
    %v2635 = vunpack.c.h.b16 %v436
    %v2636 = vunpack.c.l.b16 %v437
    %v2637 = vunpack.c.h.b16 %v437
    %v2638 = vunpack.c.l.b16 %v438
    %v2639 = vunpack.c.h.b16 %v438
    %v2640 = vunpack.c.l.b16 %v439
    %v2641 = vunpack.c.h.b16 %v439
    %v2642 = vunpack.c.l.b16 %v440
    %v2643 = vunpack.c.h.b16 %v440
    %v2644 = vunpack.c.l.b16 %v441
    %v2645 = vunpack.c.h.b16 %v441
    %v2646 = vunpack.c.l.b16 %v442
    %v2647 = vunpack.c.h.b16 %v442
    %v2648 = vunpack.c.l.b16 %v443
    %v2649 = vunpack.c.h.b16 %v443
    %v2650 = vunpack.c.l.b16 %v444
    %v2651 = vunpack.c.h.b16 %v444
    %v2652 = vunpack.c.l.b16 %v445
    %v2653 = vunpack.c.h.b16 %v445
    %v2654 = vunpack.c.l.b16 %v446
    %v2655 = vunpack.c.h.b16 %v446
    %v2656 = vunpack.c.l.b16 %v447
    %v2657 = vunpack.c.h.b16 %v447
    %v2658 = vunpack.c.l.b16 %v448
    %v2659 = vunpack.c.h.b16 %v448
    %v2660 = vunpack.c.l.b16 %v449
    %v2661 = vunpack.c.h.b16 %v449
    %v2662 = vunpack.c.l.b16 %v450
    %v2663 = vunpack.c.h.b16 %v450
    %v2664 = vunpack.c.l.b16 %v451
    %v2665 = vunpack.c.h.b16 %v451
    %v2666 = vunpack.c.l.b16 %v452
    %v2667 = vunpack.c.h.b16 %v452
    %v2668 = vunpack.c.l.b16 %v453
    %v2669 = vunpack.c.h.b16 %v453
    %v2670 = vunpack.c.l.b16 %v454
    %v2671 = vunpack.c.h.b16 %v454
    %v2672 = vunpack.c.l.b16 %v455
    %v2673 = vunpack.c.h.b16 %v455
    %v2674 = vunpack.c.l.b16 %v456
    %v2675 = vunpack.c.h.b16 %v456
    %v2676 = vunpack.c.l.b16 %v457
    %v2677 = vunpack.c.h.b16 %v457
    %v2678 = vunpack.c.l.b16 %v458
    %v2679 = vunpack.c.h.b16 %v458
    %v2680 = vunpack.c.l.b16 %v459
    %v2681 = vunpack.c.h.b16 %v459
    %v2682 = vunpack.c.l.b16 %v460
    %v2683 = vunpack.c.h.b16 %v460
    %v2684 = vunpack.c.l.b16 %v461
    %v2685 = vunpack.c.h.b16 %v461
    %v2686 = vunpack.c.l.b16 %v462
    %v2687 = vunpack.c.h.b16 %v462
    %v2688 = vunpack.c.l.b16 %v463
    %v2689 = vunpack.c.h.b16 %v463
    %v2690 = vunpack.c.l.b16 %v464
    %v2691 = vunpack.c.h.b16 %v464
    %v2692 = vunpack.c.l.b16 %v465
    %v2693 = vunpack.c.h.b16 %v465
    %v2694 = vunpack.c.l.b16 %v466
    %v2695 = vunpack.c.h.b16 %v466
    %v2696 = vunpack.c.l.b16 %v467
    %v2697 = vunpack.c.h.b16 %v467
    %v2698 = vunpack.c.l.b16 %v468
    %v2699 = vunpack.c.h.b16 %v468
    %v2700 = vunpack.c.l.b16 %v469
    %v2701 = vunpack.c.h.b16 %v469
    %v2702 = vunpack.c.l.b16 %v470
    %v2703 = vunpack.c.h.b16 %v470
    %v2704 = vunpack.c.l.b16 %v471
    %v2705 = vunpack.c.h.b16 %v471
    %v2706 = vunpack.c.l.b16 %v472
    %v2707 = vunpack.c.h.b16 %v472
    %v2708 = vunpack.c.l.b16 %v473
    %v2709 = vunpack.c.h.b16 %v473
    %v2710 = vunpack.c.l.b16 %v474
    %v2711 = vunpack.c.h.b16 %v474
    %v2712 = vunpack.c.l.b16 %v475
    %v2713 = vunpack.c.h.b16 %v475
    %v2714 = vunpack.c.l.b16 %v476
    %v2715 = vunpack.c.h.b16 %v476
    %v2716 = vunpack.c.l.b16 %v477
    %v2717 = vunpack.c.h.b16 %v477
    %v2718 = vunpack.c.l.b16 %v478
    %v2719 = vunpack.c.h.b16 %v478
    %v2720 = vunpack.c.l.b16 %v479
    %v2721 = vunpack.c.h.b16 %v479
    %v2722 = vunpack.c.l.b16 %v480
    %v2723 = vunpack.c.h.b16 %v480
    %v2724 = vunpack.c.l.b16 %v481
    %v2725 = vunpack.c.h.b16 %v481
    %v2726 = vunpack.c.l.b16 %v482
    %v2727 = vunpack.c.h.b16 %v482
    %v2728 = vunpack.c.l.b16 %v483
    %v2729 = vunpack.c.h.b16 %v483
    %v2730 = vunpack.c.l.b16 %v484
    %v2731 = vunpack.c.h.b16 %v484
    %v2732 = vunpack.c.l.b16 %v485
    %v2733 = vunpack.c.h.b16 %v485
    %v2734 = vunpack.c.l.b16 %v486
    %v2735 = vunpack.c.h.b16 %v486
    %v2736 = vunpack.c.l.b16 %v487
    %v2737 = vunpack.c.h.b16 %v487
    %v2738 = vunpack.c.l.b16 %v488
    %v2739 = vunpack.c.h.b16 %v488
    %v2740 = vunpack.c.l.b16 %v489
    %v2741 = vunpack.c.h.b16 %v489
    %v2742 = vunpack.c.l.b16 %v490
    %v2743 = vunpack.c.h.b16 %v490
    %v2744 = vunpack.c.l.b16 %v491
    %v2745 = vunpack.c.h.b16 %v491
    %v2746 = vunpack.c.l.b16 %v492
    %v2747 = vunpack.c.h.b16 %v492
    %v2748 = vunpack.c.l.b16 %v493
    %v2749 = vunpack.c.h.b16 %v493
    %v2750 = vunpack.c.l.b16 %v494
    %v2751 = vunpack.c.h.b16 %v494
    %v2752 = vunpack.c.l.b16 %v495
    %v2753 = vunpack.c.h.b16 %v495
    %v2754 = vunpack.c.l.b16 %v496
    %v2755 = vunpack.c.h.b16 %v496
    %v2756 = vunpack.c.l.b16 %v497
    %v2757 = vunpack.c.h.b16 %v497
    %v2758 = vunpack.c.l.b16 %v498
    %v2759 = vunpack.c.h.b16 %v498
    %v2760 = vunpack.c.l.b16 %v499
    %v2761 = vunpack.c.h.b16 %v499
    %v2762 = vunpack.c.l.b16 %v500
    %v2763 = vunpack.c.h.b16 %v500
    %v2764 = vunpack.c.l.b16 %v501
    %v2765 = vunpack.c.h.b16 %v501
    %v2766 = vunpack.c.l.b16 %v502
    %v2767 = vunpack.c.h.b16 %v502
    %v2768 = vunpack.c.l.b16 %v503
    %v2769 = vunpack.c.h.b16 %v503
    %v2770 = vunpack.c.l.b16 %v504
    %v2771 = vunpack.c.h.b16 %v504
    %v2772 = vunpack.c.l.b16 %v505
    %v2773 = vunpack.c.h.b16 %v505
    %v2774 = vunpack.c.l.b16 %v506
    %v2775 = vunpack.c.h.b16 %v506
    %v2776 = vunpack.c.l.b16 %v507
    %v2777 = vunpack.c.h.b16 %v507
    %v2778 = vunpack.c.l.b16 %v508
    %v2779 = vunpack.c.h.b16 %v508
    %v2780 = vunpack.c.l.b16 %v509
    %v2781 = vunpack.c.h.b16 %v509
    %v2782 = vunpack.c.l.b16 %v510
    %v2783 = vunpack.c.h.b16 %v510
    %v2784 = vunpack.c.l.b16 %v511
    %v2785 = vunpack.c.h.b16 %v511
    %v2786 = vunpack.c.l.b16 %v512
    %v2787 = vunpack.c.h.b16 %v512
    %v2788 = vunpack.c.l.b16 %v513
    %v2789 = vunpack.c.h.b16 %v513
    %v2790 = vunpack.c.l.b16 %v514
    %v2791 = vunpack.c.h.b16 %v514
    %v2792 = vunpack.c.l.b16 %v515
    %v2793 = vunpack.c.h.b16 %v515
    %v2794 = vunpack.c.l.b16 %v516
    %v2795 = vunpack.c.h.b16 %v516
    %v2796 = vunpack.c.l.b16 %v517
    %v2797 = vunpack.c.h.b16 %v517
    %v2798 = vunpack.c.l.b16 %v518
    %v2799 = vunpack.c.h.b16 %v518
    %v2800 = vunpack.c.l.b16 %v519
    %v2801 = vunpack.c.h.b16 %v519
    %v2802 = vunpack.c.l.b16 %v520
    %v2803 = vunpack.c.h.b16 %v520
    %v2804 = vunpack.c.l.b16 %v521
    %v2805 = vunpack.c.h.b16 %v521
    %v2806 = vunpack.c.l.b16 %v522
    %v2807 = vunpack.c.h.b16 %v522
    %v2808 = vunpack.c.l.b16 %v523
    %v2809 = vunpack.c.h.b16 %v523
    %v2810 = vunpack.c.l.b16 %v524
    %v2811 = vunpack.c.h.b16 %v524
    %v2812 = vunpack.c.l.b16 %v525
    %v2813 = vunpack.c.h.b16 %v525
    %v2814 = vunpack.c.l.b16 %v526
    %v2815 = vunpack.c.h.b16 %v526
    %v2816 = vunpack.c.l.b16 %v527
    %v2817 = vunpack.c.h.b16 %v527
    %v2818 = vunpack.c.l.b16 %v528
    %v2819 = vunpack.c.h.b16 %v528
    %v2820 = vunpack.c.l.b16 %v529
    %v2821 = vunpack.c.h.b16 %v529
    %v2822 = vunpack.c.l.b16 %v530
    %v2823 = vunpack.c.h.b16 %v530
    %v2824 = vunpack.c.l.b16 %v531
    %v2825 = vunpack.c.h.b16 %v531
    %v2826 = vunpack.c.l.b16 %v532
    %v2827 = vunpack.c.h.b16 %v532
    %v2828 = vunpack.c.l.b16 %v533
    %v2829 = vunpack.c.h.b16 %v533
    %v2830 = vunpack.c.l.b16 %v534
    %v2831 = vunpack.c.h.b16 %v534
    %v2832 = vunpack.c.l.b16 %v535
    %v2833 = vunpack.c.h.b16 %v535
    %v2834 = vunpack.c.l.b16 %v536
    %v2835 = vunpack.c.h.b16 %v536
    %v2836 = vunpack.c.l.b16 %v537
    %v2837 = vunpack.c.h.b16 %v537
    %v2838 = vunpack.c.l.b16 %v538
    %v2839 = vunpack.c.h.b16 %v538
    %v2840 = vunpack.c.l.b16 %v539
    %v2841 = vunpack.c.h.b16 %v539
    %v2842 = vunpack.c.l.b16 %v540
    %v2843 = vunpack.c.h.b16 %v540
    %v2844 = vunpack.c.l.b16 %v541
    %v2845 = vunpack.c.h.b16 %v541
    %v2846 = vunpack.c.l.b16 %v542
    %v2847 = vunpack.c.h.b16 %v542
    %v2848 = vunpack.c.l.b16 %v543
    %v2849 = vunpack.c.h.b16 %v543
    %v2850 = vunpack.c.l.b16 %v544
    %v2851 = vunpack.c.h.b16 %v544
    %v2852 = vunpack.c.l.b16 %v545
    %v2853 = vunpack.c.h.b16 %v545
    %v2854 = vunpack.c.l.b16 %v546
    %v2855 = vunpack.c.h.b16 %v546
    %v2856 = vunpack.c.l.b16 %v547
    %v2857 = vunpack.c.h.b16 %v547
    %v2858 = vunpack.c.l.b16 %v548
    %v2859 = vunpack.c.h.b16 %v548
    %v2860 = vunpack.c.l.b16 %v549
    %v2861 = vunpack.c.h.b16 %v549
    %v2862 = vunpack.c.l.b16 %v550
    %v2863 = vunpack.c.h.b16 %v550
    %v2864 = vunpack.c.l.b16 %v551
    %v2865 = vunpack.c.h.b16 %v551
    %v2866 = vunpack.c.l.b16 %v552
    %v2867 = vunpack.c.h.b16 %v552
    %v2868 = vunpack.c.l.b16 %v553
    %v2869 = vunpack.c.h.b16 %v553
    %v2870 = vunpack.c.l.b16 %v554
    %v2871 = vunpack.c.h.b16 %v554
    %v2872 = vunpack.c.l.b16 %v555
    %v2873 = vunpack.c.h.b16 %v555
    %v2874 = vunpack.c.l.b16 %v556
    %v2875 = vunpack.c.h.b16 %v556
    %v2876 = vunpack.c.l.b16 %v557
    %v2877 = vunpack.c.h.b16 %v557
    %v2878 = vunpack.c.l.b16 %v558
    %v2879 = vunpack.c.h.b16 %v558
    %v2880 = vunpack.c.l.b16 %v559
    %v2881 = vunpack.c.h.b16 %v559
    %v2882 = vunpack.c.l.b16 %v560
    %v2883 = vunpack.c.h.b16 %v560
    %v2884 = vunpack.c.l.b16 %v561
    %v2885 = vunpack.c.h.b16 %v561
    %v2886 = vunpack.c.l.b16 %v562
    %v2887 = vunpack.c.h.b16 %v562
    %v2888 = vunpack.c.l.b16 %v563
    %v2889 = vunpack.c.h.b16 %v563
    %v2890 = vunpack.c.l.b16 %v564
    %v2891 = vunpack.c.h.b16 %v564
    %v2892 = vunpack.c.l.b16 %v565
    %v2893 = vunpack.c.h.b16 %v565
    %v2894 = vunpack.c.l.b16 %v566
    %v2895 = vunpack.c.h.b16 %v566
    %v2896 = vunpack.c.l.b16 %v567
    %v2897 = vunpack.c.h.b16 %v567
    %v2898 = vunpack.c.l.b16 %v568
    %v2899 = vunpack.c.h.b16 %v568
    %v2900 = vunpack.c.l.b16 %v569
    %v2901 = vunpack.c.h.b16 %v569
    %v2902 = vunpack.c.l.b16 %v570
    %v2903 = vunpack.c.h.b16 %v570
    %v2904 = vunpack.c.l.b16 %v571
    %v2905 = vunpack.c.h.b16 %v571
    %v2906 = vunpack.c.l.b16 %v572
    %v2907 = vunpack.c.h.b16 %v572
    %v2908 = vunpack.c.l.b16 %v573
    %v2909 = vunpack.c.h.b16 %v573
    %v2910 = vunpack.c.l.b16 %v574
    %v2911 = vunpack.c.h.b16 %v574
    %v2912 = vunpack.c.l.b16 %v575
    %v2913 = vunpack.c.h.b16 %v575
    %v2914 = vunpack.c.l.b16 %v576
    %v2915 = vunpack.c.h.b16 %v576
    %v2916 = vunpack.c.l.b16 %v577
    %v2917 = vunpack.c.h.b16 %v577
    %v2918 = vunpack.c.l.b16 %v578
    %v2919 = vunpack.c.h.b16 %v578
    %v2920 = vunpack.c.l.b16 %v579
    %v2921 = vunpack.c.h.b16 %v579
    %v2922 = vunpack.c.l.b16 %v580
    %v2923 = vunpack.c.h.b16 %v580
    %v2924 = vunpack.c.l.b16 %v581
    %v2925 = vunpack.c.h.b16 %v581
    %v2926 = vunpack.c.l.b16 %v582
    %v2927 = vunpack.c.h.b16 %v582
    %v2928 = vunpack.c.l.b16 %v583
    %v2929 = vunpack.c.h.b16 %v583
    %v2930 = vunpack.c.l.b16 %v584
    %v2931 = vunpack.c.h.b16 %v584
    %v2932 = vunpack.c.l.b16 %v585
    %v2933 = vunpack.c.h.b16 %v585
    %v2934 = vunpack.c.l.b16 %v586
    %v2935 = vunpack.c.h.b16 %v586
    %v2936 = vunpack.c.l.b16 %v587
    %v2937 = vunpack.c.h.b16 %v587
    %v2938 = vunpack.c.l.b16 %v588
    %v2939 = vunpack.c.h.b16 %v588
    %v2940 = vunpack.c.l.b16 %v589
    %v2941 = vunpack.c.h.b16 %v589
    %v2942 = vunpack.c.l.b16 %v590
    %v2943 = vunpack.c.h.b16 %v590
    %v2944 = vunpack.c.l.b16 %v591
    %v2945 = vunpack.c.h.b16 %v591
    %v2946 = vunpack.c.l.b16 %v592
    %v2947 = vunpack.c.h.b16 %v592
    %v2948 = vunpack.c.l.b16 %v593
    %v2949 = vunpack.c.h.b16 %v593
    %v2950 = vunpack.c.l.b16 %v594
    %v2951 = vunpack.c.h.b16 %v594
    %v2952 = vunpack.c.l.b16 %v595
    %v2953 = vunpack.c.h.b16 %v595
    %v2954 = vunpack.c.l.b16 %v596
    %v2955 = vunpack.c.h.b16 %v596
    %v2956 = vunpack.c.l.b16 %v597
    %v2957 = vunpack.c.h.b16 %v597
    %v2958 = vunpack.c.l.b16 %v598
    %v2959 = vunpack.c.h.b16 %v598
    %v2960 = vunpack.c.l.b16 %v599
    %v2961 = vunpack.c.h.b16 %v599
    %v2962 = vunpack.c.l.b16 %v600
    %v2963 = vunpack.c.h.b16 %v600
    %v2964 = vunpack.c.l.b16 %v601
    %v2965 = vunpack.c.h.b16 %v601
    %v2966 = vunpack.c.l.b16 %v602
    %v2967 = vunpack.c.h.b16 %v602
    %v2968 = vunpack.c.l.b16 %v603
    %v2969 = vunpack.c.h.b16 %v603
    %v2970 = vunpack.c.l.b16 %v604
    %v2971 = vunpack.c.h.b16 %v604
    %v2972 = vunpack.c.l.b16 %v605
    %v2973 = vunpack.c.h.b16 %v605
    %v2974 = vunpack.c.l.b16 %v606
    %v2975 = vunpack.c.h.b16 %v606
    %v2976 = vunpack.c.l.b16 %v607
    %v2977 = vunpack.c.h.b16 %v607
    %v2978 = vunpack.c.l.b16 %v608
    %v2979 = vunpack.c.h.b16 %v608
    %v2980 = vunpack.c.l.b16 %v609
    %v2981 = vunpack.c.h.b16 %v609
    %v2982 = vunpack.c.l.b16 %v610
    %v2983 = vunpack.c.h.b16 %v610
    %v2984 = vunpack.c.l.b16 %v611
    %v2985 = vunpack.c.h.b16 %v611
    %v2986 = vunpack.c.l.b16 %v612
    %v2987 = vunpack.c.h.b16 %v612
    %v2988 = vunpack.c.l.b16 %v613
    %v2989 = vunpack.c.h.b16 %v613
    %v2990 = vunpack.c.l.b16 %v614
    %v2991 = vunpack.c.h.b16 %v614
    %v2992 = vunpack.c.l.b16 %v615
    %v2993 = vunpack.c.h.b16 %v615
    %v2994 = vunpack.c.l.b16 %v616
    %v2995 = vunpack.c.h.b16 %v616
    %v2996 = vunpack.c.l.b16 %v617
    %v2997 = vunpack.c.h.b16 %v617
    %v2998 = vunpack.c.l.b16 %v618
    %v2999 = vunpack.c.h.b16 %v618
    %v3000 = vunpack.c.l.b16 %v619
    %v3001 = vunpack.c.h.b16 %v619
    %v3002 = vunpack.c.l.b16 %v620
    %v3003 = vunpack.c.h.b16 %v620
    %v3004 = vunpack.c.l.b16 %v621
    %v3005 = vunpack.c.h.b16 %v621
    %v3006 = vunpack.c.l.b16 %v622
    %v3007 = vunpack.c.h.b16 %v622
    %v3008 = vunpack.c.l.b16 %v623
    %v3009 = vunpack.c.h.b16 %v623
    %v3010 = vunpack.c.l.b16 %v624
    %v3011 = vunpack.c.h.b16 %v624
    %v3012 = vunpack.c.l.b16 %v625
    %v3013 = vunpack.c.h.b16 %v625
    %v3014 = vunpack.c.l.b16 %v626
    %v3015 = vunpack.c.h.b16 %v626
    %v3016 = vunpack.c.l.b16 %v627
    %v3017 = vunpack.c.h.b16 %v627
    %v3018 = vunpack.c.l.b16 %v628
    %v3019 = vunpack.c.h.b16 %v628
    %v3020 = vunpack.c.l.b16 %v629
    %v3021 = vunpack.c.h.b16 %v629
    %v3022 = vunpack.c.l.b16 %v630
    %v3023 = vunpack.c.h.b16 %v630
    %v3024 = vunpack.c.l.b16 %v631
    %v3025 = vunpack.c.h.b16 %v631
    %v3026 = vunpack.c.l.b16 %v632
    %v3027 = vunpack.c.h.b16 %v632
    %v3028 = vunpack.c.l.b16 %v633
    %v3029 = vunpack.c.h.b16 %v633
    %v3030 = vunpack.c.l.b16 %v634
    %v3031 = vunpack.c.h.b16 %v634
    %v3032 = vunpack.c.l.b16 %v635
    %v3033 = vunpack.c.h.b16 %v635
    %v3034 = vunpack.c.l.b16 %v636
    %v3035 = vunpack.c.h.b16 %v636
    %v3036 = vunpack.c.l.b16 %v637
    %v3037 = vunpack.c.h.b16 %v637
    %v3038 = vunpack.c.l.b16 %v638
    %v3039 = vunpack.c.h.b16 %v638
    %v3040 = vunpack.c.l.b16 %v639
    %v3041 = vunpack.c.h.b16 %v639
    %v3042 = vunpack.c.l.b16 %v640
    %v3043 = vunpack.c.h.b16 %v640
    %v3044 = vunpack.c.l.b16 %v641
    %v3045 = vunpack.c.h.b16 %v641
    %v3046 = vunpack.c.l.b16 %v642
    %v3047 = vunpack.c.h.b16 %v642
    %v3048 = vunpack.c.l.b16 %v643
    %v3049 = vunpack.c.h.b16 %v643
    %v3050 = vunpack.c.l.b16 %v644
    %v3051 = vunpack.c.h.b16 %v644
    %v3052 = vunpack.c.l.b16 %v645
    %v3053 = vunpack.c.h.b16 %v645
    %v3054 = vunpack.c.l.b16 %v646
    %v3055 = vunpack.c.h.b16 %v646
    %v3056 = vunpack.c.l.b16 %v647
    %v3057 = vunpack.c.h.b16 %v647
    %v3058 = vunpack.c.l.b16 %v648
    %v3059 = vunpack.c.h.b16 %v648
    %v3060 = vunpack.c.l.b16 %v649
    %v3061 = vunpack.c.h.b16 %v649
    %v3062 = vunpack.c.l.b16 %v650
    %v3063 = vunpack.c.h.b16 %v650
    %v3064 = vunpack.c.l.b16 %v651
    %v3065 = vunpack.c.h.b16 %v651
    %v3066 = vunpack.c.l.b16 %v652
    %v3067 = vunpack.c.h.b16 %v652
    %v3068 = vunpack.c.l.b16 %v653
    %v3069 = vunpack.c.h.b16 %v653
    %v3070 = vunpack.c.l.b16 %v654
    %v3071 = vunpack.c.h.b16 %v654
    %v3072 = vunpack.c.l.b16 %v655
    %v3073 = vunpack.c.h.b16 %v655
    %v3074 = vunpack.c.l.b16 %v656
    %v3075 = vunpack.c.h.b16 %v656
    %v3076 = vunpack.c.l.b16 %v657
    %v3077 = vunpack.c.h.b16 %v657
    %v3078 = vunpack.c.l.b16 %v658
    %v3079 = vunpack.c.h.b16 %v658
    %v3080 = vunpack.c.l.b16 %v659
    %v3081 = vunpack.c.h.b16 %v659
    %v3082 = vunpack.c.l.b16 %v660
    %v3083 = vunpack.c.h.b16 %v660
    %v3084 = vunpack.c.l.b16 %v661
    %v3085 = vunpack.c.h.b16 %v661
    %v3086 = vunpack.c.l.b16 %v662
    %v3087 = vunpack.c.h.b16 %v662
    %v3088 = vunpack.c.l.b16 %v663
    %v3089 = vunpack.c.h.b16 %v663
    %v3090 = vunpack.c.l.b16 %v664
    %v3091 = vunpack.c.h.b16 %v664
    %v3092 = vunpack.c.l.b16 %v665
    %v3093 = vunpack.c.h.b16 %v665
    %v3094 = vunpack.c.l.b16 %v666
    %v3095 = vunpack.c.h.b16 %v666
    %v3096 = vunpack.c.l.b16 %v667
    %v3097 = vunpack.c.h.b16 %v667
    %v3098 = vunpack.c.l.b16 %v668
    %v3099 = vunpack.c.h.b16 %v668
    %v3100 = vunpack.c.l.b16 %v669
    %v3101 = vunpack.c.h.b16 %v669
    %v3102 = vunpack.c.l.b16 %v670
    %v3103 = vunpack.c.h.b16 %v670
    %v3104 = vunpack.c.l.b16 %v671
    %v3105 = vunpack.c.h.b16 %v671
    %v3106 = vunpack.c.l.b16 %v672
    %v3107 = vunpack.c.h.b16 %v672
    %v3108 = vunpack.c.l.b16 %v673
    %v3109 = vunpack.c.h.b16 %v673
    %v3110 = vunpack.c.l.b16 %v674
    %v3111 = vunpack.c.h.b16 %v674
    %v3112 = vunpack.c.l.b16 %v675
    %v3113 = vunpack.c.h.b16 %v675
    %v3114 = vunpack.c.l.b16 %v676
    %v3115 = vunpack.c.h.b16 %v676
    %v3116 = vunpack.c.l.b16 %v677
    %v3117 = vunpack.c.h.b16 %v677
    %v3118 = vunpack.c.l.b16 %v678
    %v3119 = vunpack.c.h.b16 %v678
    %v3120 = vunpack.c.l.b16 %v679
    %v3121 = vunpack.c.h.b16 %v679
    %v3122 = vunpack.c.l.b16 %v680
    %v3123 = vunpack.c.h.b16 %v680
    %v3124 = vunpack.c.l.b16 %v681
    %v3125 = vunpack.c.h.b16 %v681
    %v3126 = vunpack.c.l.b16 %v682
    %v3127 = vunpack.c.h.b16 %v682
    %v3128 = vunpack.c.l.b16 %v683
    %v3129 = vunpack.c.h.b16 %v683
    %v3130 = vunpack.c.l.b16 %v684
    %v3131 = vunpack.c.h.b16 %v684
    %v3132 = vunpack.c.l.b16 %v685
    %v3133 = vunpack.c.h.b16 %v685
    %v3134 = vunpack.c.l.b16 %v686
    %v3135 = vunpack.c.h.b16 %v686
    %v3136 = vunpack.c.l.b16 %v687
    %v3137 = vunpack.c.h.b16 %v687
    %v3138 = vunpack.c.l.b16 %v688
    %v3139 = vunpack.c.h.b16 %v688
    %v3140 = vunpack.c.l.b16 %v689
    %v3141 = vunpack.c.h.b16 %v689
    %v3142 = vunpack.c.l.b16 %v690
    %v3143 = vunpack.c.h.b16 %v690
    %v3144 = vunpack.c.l.b16 %v691
    %v3145 = vunpack.c.h.b16 %v691
    %v3146 = vunpack.c.l.b16 %v692
    %v3147 = vunpack.c.h.b16 %v692
    %v3148 = vunpack.c.l.b16 %v693
    %v3149 = vunpack.c.h.b16 %v693
    %v3150 = vunpack.c.l.b16 %v694
    %v3151 = vunpack.c.h.b16 %v694
    %v3152 = vunpack.c.l.b16 %v695
    %v3153 = vunpack.c.h.b16 %v695
    %v3154 = vunpack.c.l.b16 %v696
    %v3155 = vunpack.c.h.b16 %v696
    %v3156 = vunpack.c.l.b16 %v697
    %v3157 = vunpack.c.h.b16 %v697
    %v3158 = vunpack.c.l.b16 %v698
    %v3159 = vunpack.c.h.b16 %v698
    %v3160 = vunpack.c.l.b16 %v699
    %v3161 = vunpack.c.h.b16 %v699
    %v3162 = vunpack.c.l.b16 %v700
    %v3163 = vunpack.c.h.b16 %v700
    %v3164 = vunpack.c.l.b16 %v701
    %v3165 = vunpack.c.h.b16 %v701
    %v3166 = vunpack.c.l.b16 %v702
    %v3167 = vunpack.c.h.b16 %v702
    %v3168 = vunpack.c.l.b16 %v703
    %v3169 = vunpack.c.h.b16 %v703
    %v3170 = vunpack.c.l.b16 %v704
    %v3171 = vunpack.c.h.b16 %v704
    %v3172 = vunpack.c.l.b16 %v705
    %v3173 = vunpack.c.h.b16 %v705
    %v3174 = vunpack.c.l.b16 %v706
    %v3175 = vunpack.c.h.b16 %v706
    %v3176 = vunpack.c.l.b16 %v707
    %v3177 = vunpack.c.h.b16 %v707
    %v3178 = vunpack.c.l.b16 %v708
    %v3179 = vunpack.c.h.b16 %v708
    %v3180 = vunpack.c.l.b16 %v709
    %v3181 = vunpack.c.h.b16 %v709
    %v3182 = vunpack.c.l.b16 %v710
    %v3183 = vunpack.c.h.b16 %v710
    %v3184 = vunpack.c.l.b16 %v711
    %v3185 = vunpack.c.h.b16 %v711
    %v3186 = vunpack.c.l.b16 %v712
    %v3187 = vunpack.c.h.b16 %v712
    %v3188 = vunpack.c.l.b16 %v713
    %v3189 = vunpack.c.h.b16 %v713
    %v3190 = vunpack.c.l.b16 %v714
    %v3191 = vunpack.c.h.b16 %v714
    %v3192 = vunpack.c.l.b16 %v715
    %v3193 = vunpack.c.h.b16 %v715
    %v3194 = vunpack.c.l.b16 %v716
    %v3195 = vunpack.c.h.b16 %v716
    %v3196 = vunpack.c.l.b16 %v717
    %v3197 = vunpack.c.h.b16 %v717
    %v3198 = vunpack.c.l.b16 %v718
    %v3199 = vunpack.c.h.b16 %v718
    %v3200 = vunpack.c.l.b16 %v719
    %v3201 = vunpack.c.h.b16 %v719
    %v3202 = vunpack.c.l.b16 %v720
    %v3203 = vunpack.c.h.b16 %v720
    %v3204 = vunpack.c.l.b16 %v721
    %v3205 = vunpack.c.h.b16 %v721
    %v3206 = vunpack.c.l.b16 %v722
    %v3207 = vunpack.c.h.b16 %v722
    %v3208 = vunpack.c.l.b16 %v723
    %v3209 = vunpack.c.h.b16 %v723
    %v3210 = vunpack.c.l.b16 %v724
    %v3211 = vunpack.c.h.b16 %v724
    %v3212 = vunpack.c.l.b16 %v725
    %v3213 = vunpack.c.h.b16 %v725
    %v3214 = vunpack.c.l.b16 %v726
    %v3215 = vunpack.c.h.b16 %v726
    %v3216 = vunpack.c.l.b16 %v727
    %v3217 = vunpack.c.h.b16 %v727
    %v3218 = vunpack.c.l.b16 %v728
    %v3219 = vunpack.c.h.b16 %v728
    %v3220 = vunpack.c.l.b16 %v729
    %v3221 = vunpack.c.h.b16 %v729
    %v3222 = vunpack.c.l.b16 %v730
    %v3223 = vunpack.c.h.b16 %v730
    %v3224 = vunpack.c.l.b16 %v731
    %v3225 = vunpack.c.h.b16 %v731
    %v3226 = vunpack.c.l.b16 %v732
    %v3227 = vunpack.c.h.b16 %v732
    %v3228 = vunpack.c.l.b16 %v733
    %v3229 = vunpack.c.h.b16 %v733
    %v3230 = vunpack.c.l.b16 %v734
    %v3231 = vunpack.c.h.b16 %v734
    %v3232 = vunpack.c.l.b16 %v735
    %v3233 = vunpack.c.h.b16 %v735
    %v3234 = vunpack.c.l.b16 %v736
    %v3235 = vunpack.c.h.b16 %v736
    %v3236 = vunpack.c.l.b16 %v737
    %v3237 = vunpack.c.h.b16 %v737
    %v3238 = vunpack.c.l.b16 %v738
    %v3239 = vunpack.c.h.b16 %v738
    %v3240 = vunpack.c.l.b16 %v739
    %v3241 = vunpack.c.h.b16 %v739
    %v3242 = vunpack.c.l.b16 %v740
    %v3243 = vunpack.c.h.b16 %v740
    %v3244 = vunpack.c.l.b16 %v741
    %v3245 = vunpack.c.h.b16 %v741
    %v3246 = vunpack.c.l.b16 %v742
    %v3247 = vunpack.c.h.b16 %v742
    %v3248 = vunpack.c.l.b16 %v743
    %v3249 = vunpack.c.h.b16 %v743
    %v3250 = vunpack.c.l.b16 %v744
    %v3251 = vunpack.c.h.b16 %v744
    %v3252 = vunpack.c.l.b16 %v745
    %v3253 = vunpack.c.h.b16 %v745
    %v3254 = vunpack.c.l.b16 %v746
    %v3255 = vunpack.c.h.b16 %v746
    %v3256 = vunpack.c.l.b16 %v747
    %v3257 = vunpack.c.h.b16 %v747
    %v3258 = vunpack.c.l.b16 %v748
    %v3259 = vunpack.c.h.b16 %v748
    %v3260 = vunpack.c.l.b16 %v749
    %v3261 = vunpack.c.h.b16 %v749
    %v3262 = vunpack.c.l.b16 %v750
    %v3263 = vunpack.c.h.b16 %v750
    %v3264 = vunpack.c.l.b16 %v751
    %v3265 = vunpack.c.h.b16 %v751
    %v3266 = vunpack.c.l.b16 %v752
    %v3267 = vunpack.c.h.b16 %v752
    %v3268 = vunpack.c.l.b16 %v753
    %v3269 = vunpack.c.h.b16 %v753
    %v3270 = vunpack.c.l.b16 %v754
    %v3271 = vunpack.c.h.b16 %v754
    %v3272 = vunpack.c.l.b16 %v755
    %v3273 = vunpack.c.h.b16 %v755
    %v3274 = vunpack.c.l.b16 %v756
    %v3275 = vunpack.c.h.b16 %v756
    %v3276 = vunpack.c.l.b16 %v757
    %v3277 = vunpack.c.h.b16 %v757
    %v3278 = vunpack.c.l.b16 %v758
    %v3279 = vunpack.c.h.b16 %v758
    %v3280 = vunpack.c.l.b16 %v759
    %v3281 = vunpack.c.h.b16 %v759
    %v3282 = vunpack.c.l.b16 %v760
    %v3283 = vunpack.c.h.b16 %v760
    %v3284 = vunpack.c.l.b16 %v761
    %v3285 = vunpack.c.h.b16 %v761
    %v3286 = vunpack.c.l.b16 %v762
    %v3287 = vunpack.c.h.b16 %v762
    %v3288 = vunpack.c.l.b16 %v763
    %v3289 = vunpack.c.h.b16 %v763
    %v3290 = vunpack.c.l.b16 %v764
    %v3291 = vunpack.c.h.b16 %v764
    %v3292 = vunpack.c.l.b16 %v765
    %v3293 = vunpack.c.h.b16 %v765
    %v3294 = vunpack.c.l.b16 %v766
    %v3295 = vunpack.c.h.b16 %v766
    %v3296 = vunpack.c.l.b16 %v767
    %v3297 = vunpack.c.h.b16 %v767
    %v3298 = vunpack.c.l.b16 %v768
    %v3299 = vunpack.c.h.b16 %v768
    %v3300 = vunpack.c.l.b16 %v769
    %v3301 = vunpack.c.h.b16 %v769
    %v3302 = vunpack.c.l.b16 %v770
    %v3303 = vunpack.c.h.b16 %v770
    %v3304 = vunpack.c.l.b16 %v771
    %v3305 = vunpack.c.h.b16 %v771
    %v3306 = vunpack.c.l.b16 %v772
    %v3307 = vunpack.c.h.b16 %v772
    %v3308 = vunpack.c.l.b16 %v773
    %v3309 = vunpack.c.h.b16 %v773
    %v3310 = vunpack.c.l.b16 %v774
    %v3311 = vunpack.c.h.b16 %v774
    %v3312 = vunpack.c.l.b16 %v775
    %v3313 = vunpack.c.h.b16 %v775
    %v3314 = vunpack.c.l.b16 %v776
    %v3315 = vunpack.c.h.b16 %v776
    %v3316 = vunpack.c.l.b16 %v777
    %v3317 = vunpack.c.h.b16 %v777
    %v3318 = vunpack.c.l.b16 %v778
    %v3319 = vunpack.c.h.b16 %v778
    %v3320 = vunpack.c.l.b16 %v779
    %v3321 = vunpack.c.h.b16 %v779
    %v3322 = vunpack.c.l.b16 %v780
    %v3323 = vunpack.c.h.b16 %v780
    %v3324 = vunpack.c.l.b16 %v781
    %v3325 = vunpack.c.h.b16 %v781
    %v3326 = vunpack.c.l.b16 %v782
    %v3327 = vunpack.c.h.b16 %v782
    %v3328 = vunpack.c.l.b16 %v783
    %v3329 = vunpack.c.h.b16 %v783
    %v3330 = vunpack.c.l.b16 %v784
    %v3331 = vunpack.c.h.b16 %v784
    %v3332 = vunpack.c.l.b16 %v785
    %v3333 = vunpack.c.h.b16 %v785
    %v3334 = vunpack.c.l.b16 %v786
    %v3335 = vunpack.c.h.b16 %v786
    %v3336 = vunpack.c.l.b16 %v787
    %v3337 = vunpack.c.h.b16 %v787
    %v3338 = vunpack.c.l.b16 %v788
    %v3339 = vunpack.c.h.b16 %v788
    %v3340 = vunpack.c.l.b16 %v789
    %v3341 = vunpack.c.h.b16 %v789
    %v3342 = vunpack.c.l.b16 %v790
    %v3343 = vunpack.c.h.b16 %v790
    %v3344 = vunpack.c.l.b16 %v791
    %v3345 = vunpack.c.h.b16 %v791
    %v3346 = vunpack.c.l.b16 %v792
    %v3347 = vunpack.c.h.b16 %v792
    %v3348 = vunpack.c.l.b16 %v793
    %v3349 = vunpack.c.h.b16 %v793
    %v3350 = vunpack.c.l.b16 %v794
    %v3351 = vunpack.c.h.b16 %v794
    %v3352 = vunpack.c.l.b16 %v795
    %v3353 = vunpack.c.h.b16 %v795
    %v3354 = vunpack.c.l.b16 %v796
    %v3355 = vunpack.c.h.b16 %v796
    %v3356 = vunpack.c.l.b16 %v797
    %v3357 = vunpack.c.h.b16 %v797
    %v3358 = vunpack.c.l.b16 %v798
    %v3359 = vunpack.c.h.b16 %v798
    %v3360 = vunpack.c.l.b16 %v799
    %v3361 = vunpack.c.h.b16 %v799
    %v3362 = vunpack.c.l.b16 %v800
    %v3363 = vunpack.c.h.b16 %v800
    %v3364 = vunpack.c.l.b16 %v801
    %v3365 = vunpack.c.h.b16 %v801
    %v3366 = vunpack.c.l.b16 %v802
    %v3367 = vunpack.c.h.b16 %v802
    %v3368 = vunpack.c.l.b16 %v803
    %v3369 = vunpack.c.h.b16 %v803
    %v3370 = vunpack.c.l.b16 %v804
    %v3371 = vunpack.c.h.b16 %v804
    %v3372 = vunpack.c.l.b16 %v805
    %v3373 = vunpack.c.h.b16 %v805
    %v3374 = vunpack.c.l.b16 %v806
    %v3375 = vunpack.c.h.b16 %v806
    %v3376 = vunpack.c.l.b16 %v807
    %v3377 = vunpack.c.h.b16 %v807
    %v3378 = vunpack.c.l.b16 %v808
    %v3379 = vunpack.c.h.b16 %v808
    %v3380 = vunpack.c.l.b16 %v809
    %v3381 = vunpack.c.h.b16 %v809
    %v3382 = vunpack.c.l.b16 %v810
    %v3383 = vunpack.c.h.b16 %v810
    %v3384 = vunpack.c.l.b16 %v811
    %v3385 = vunpack.c.h.b16 %v811
    %v3386 = vunpack.c.l.b16 %v812
    %v3387 = vunpack.c.h.b16 %v812
    %v3388 = vunpack.c.l.b16 %v813
    %v3389 = vunpack.c.h.b16 %v813
    %v3390 = vunpack.c.l.b16 %v814
    %v3391 = vunpack.c.h.b16 %v814
    %v3392 = vunpack.c.l.b16 %v815
    %v3393 = vunpack.c.h.b16 %v815
    %v3394 = vunpack.c.l.b16 %v816
    %v3395 = vunpack.c.h.b16 %v816
    %v3396 = vunpack.c.l.b16 %v817
    %v3397 = vunpack.c.h.b16 %v817
    %v3398 = vunpack.c.l.b16 %v818
    %v3399 = vunpack.c.h.b16 %v818
    %v3400 = vunpack.c.l.b16 %v819
    %v3401 = vunpack.c.h.b16 %v819
    %v3402 = vunpack.c.l.b16 %v820
    %v3403 = vunpack.c.h.b16 %v820
    %v3404 = vunpack.c.l.b16 %v821
    %v3405 = vunpack.c.h.b16 %v821
    %v3406 = vunpack.c.l.b16 %v822
    %v3407 = vunpack.c.h.b16 %v822
    %v3408 = vunpack.c.l.b16 %v823
    %v3409 = vunpack.c.h.b16 %v823
    %v3410 = vunpack.c.l.b16 %v824
    %v3411 = vunpack.c.h.b16 %v824
    %v3412 = vunpack.c.l.b16 %v825
    %v3413 = vunpack.c.h.b16 %v825
    %v3414 = vunpack.c.l.b16 %v826
    %v3415 = vunpack.c.h.b16 %v826
    %v3416 = vunpack.c.l.b16 %v827
    %v3417 = vunpack.c.h.b16 %v827
    %v3418 = vunpack.c.l.b16 %v828
    %v3419 = vunpack.c.h.b16 %v828
    %v3420 = vunpack.c.l.b16 %v829
    %v3421 = vunpack.c.h.b16 %v829
    %v3422 = vunpack.c.l.b16 %v830
    %v3423 = vunpack.c.h.b16 %v830
    %v3424 = vunpack.c.l.b16 %v831
    %v3425 = vunpack.c.h.b16 %v831
    %v3426 = vunpack.c.l.b16 %v832
    %v3427 = vunpack.c.h.b16 %v832
    %v3428 = vunpack.c.l.b16 %v833
    %v3429 = vunpack.c.h.b16 %v833
    %v3430 = vunpack.c.l.b16 %v834
    %v3431 = vunpack.c.h.b16 %v834
    %v3432 = vunpack.c.l.b16 %v835
    %v3433 = vunpack.c.h.b16 %v835
    %v3434 = vunpack.c.l.b16 %v836
    %v3435 = vunpack.c.h.b16 %v836
    %v3436 = vunpack.c.l.b16 %v837
    %v3437 = vunpack.c.h.b16 %v837
    %v3438 = vunpack.c.l.b16 %v838
    %v3439 = vunpack.c.h.b16 %v838
    %v3440 = vunpack.c.l.b16 %v839
    %v3441 = vunpack.c.h.b16 %v839
    %v3442 = vunpack.c.l.b16 %v840
    %v3443 = vunpack.c.h.b16 %v840
    %v3444 = vunpack.c.l.b16 %v841
    %v3445 = vunpack.c.h.b16 %v841
    %v3446 = vunpack.c.l.b16 %v842
    %v3447 = vunpack.c.h.b16 %v842
    %v3448 = vunpack.c.l.b16 %v843
    %v3449 = vunpack.c.h.b16 %v843
    %v3450 = vunpack.c.l.b16 %v844
    %v3451 = vunpack.c.h.b16 %v844
    %v3452 = vunpack.c.l.b16 %v845
    %v3453 = vunpack.c.h.b16 %v845
    %v3454 = vunpack.c.l.b16 %v846
    %v3455 = vunpack.c.h.b16 %v846
    %v3456 = vunpack.c.l.b16 %v847
    %v3457 = vunpack.c.h.b16 %v847
    %v3458 = vunpack.c.l.b16 %v848
    %v3459 = vunpack.c.h.b16 %v848
    %v3460 = vunpack.c.l.b16 %v849
    %v3461 = vunpack.c.h.b16 %v849
    %v3462 = vunpack.c.l.b16 %v850
    %v3463 = vunpack.c.h.b16 %v850
    %v3464 = vunpack.c.l.b16 %v851
    %v3465 = vunpack.c.h.b16 %v851
    %v3466 = vunpack.c.l.b16 %v852
    %v3467 = vunpack.c.h.b16 %v852
    %v3468 = vunpack.c.l.b16 %v853
    %v3469 = vunpack.c.h.b16 %v853
    %v3470 = vunpack.c.l.b16 %v854
    %v3471 = vunpack.c.h.b16 %v854
    %v3472 = vunpack.c.l.b16 %v855
    %v3473 = vunpack.c.h.b16 %v855
    %v3474 = vunpack.c.l.b16 %v856
    %v3475 = vunpack.c.h.b16 %v856
    %v3476 = vunpack.c.l.b16 %v857
    %v3477 = vunpack.c.h.b16 %v857
    %v3478 = vunpack.c.l.b16 %v858
    %v3479 = vunpack.c.h.b16 %v858
    %v3480 = vunpack.c.l.b16 %v859
    %v3481 = vunpack.c.h.b16 %v859
    %v3482 = vunpack.c.l.b16 %v860
    %v3483 = vunpack.c.h.b16 %v860
    %v3484 = vunpack.c.l.b16 %v861
    %v3485 = vunpack.c.h.b16 %v861
    %v3486 = vunpack.c.l.b16 %v862
    %v3487 = vunpack.c.h.b16 %v862
    %v3488 = vunpack.c.l.b16 %v863
    %v3489 = vunpack.c.h.b16 %v863
    %v3490 = vunpack.c.l.b16 %v864
    %v3491 = vunpack.c.h.b16 %v864
    %v3492 = vunpack.c.l.b16 %v865
    %v3493 = vunpack.c.h.b16 %v865
    %v3494 = vunpack.c.l.b16 %v866
    %v3495 = vunpack.c.h.b16 %v866
    %v3496 = vunpack.c.l.b16 %v867
    %v3497 = vunpack.c.h.b16 %v867
    %v3498 = vunpack.c.l.b16 %v868
    %v3499 = vunpack.c.h.b16 %v868
    %v3500 = vunpack.c.l.b16 %v869
    %v3501 = vunpack.c.h.b16 %v869
    %v3502 = vunpack.c.l.b16 %v870
    %v3503 = vunpack.c.h.b16 %v870
    %v3504 = vunpack.c.l.b16 %v871
    %v3505 = vunpack.c.h.b16 %v871
    %v3506 = vunpack.c.l.b16 %v872
    %v3507 = vunpack.c.h.b16 %v872
    %v3508 = vunpack.c.l.b16 %v873
    %v3509 = vunpack.c.h.b16 %v873
    %v3510 = vunpack.c.l.b16 %v874
    %v3511 = vunpack.c.h.b16 %v874
    %v3512 = vunpack.c.l.b16 %v875
    %v3513 = vunpack.c.h.b16 %v875
    %v3514 = vunpack.c.l.b16 %v876
    %v3515 = vunpack.c.h.b16 %v876
    %v3516 = vunpack.c.l.b16 %v877
    %v3517 = vunpack.c.h.b16 %v877
    %v3518 = vunpack.c.l.b16 %v878
    %v3519 = vunpack.c.h.b16 %v878
    %v3520 = vunpack.c.l.b16 %v879
    %v3521 = vunpack.c.h.b16 %v879
    %v3522 = vunpack.c.l.b16 %v880
    %v3523 = vunpack.c.h.b16 %v880
    %v3524 = vunpack.c.l.b16 %v881
    %v3525 = vunpack.c.h.b16 %v881
    %v3526 = vunpack.c.l.b16 %v882
    %v3527 = vunpack.c.h.b16 %v882
    %v3528 = vunpack.c.l.b16 %v883
    %v3529 = vunpack.c.h.b16 %v883
    %v3530 = vunpack.c.l.b16 %v884
    %v3531 = vunpack.c.h.b16 %v884
    %v3532 = vunpack.c.l.b16 %v885
    %v3533 = vunpack.c.h.b16 %v885
    %v3534 = vunpack.c.l.b16 %v886
    %v3535 = vunpack.c.h.b16 %v886
    %v3536 = vunpack.c.l.b16 %v887
    %v3537 = vunpack.c.h.b16 %v887
    %v3538 = vunpack.c.l.b16 %v888
    %v3539 = vunpack.c.h.b16 %v888
    %v3540 = vunpack.c.l.b16 %v889
    %v3541 = vunpack.c.h.b16 %v889
    %v3542 = vunpack.c.l.b16 %v890
    %v3543 = vunpack.c.h.b16 %v890
    %v3544 = vunpack.c.l.b16 %v891
    %v3545 = vunpack.c.h.b16 %v891
    %v3546 = vunpack.c.l.b16 %v892
    %v3547 = vunpack.c.h.b16 %v892
    %v3548 = vunpack.c.l.b16 %v893
    %v3549 = vunpack.c.h.b16 %v893
    %v3550 = vunpack.c.l.b16 %v894
    %v3551 = vunpack.c.h.b16 %v894
    %v3552 = vunpack.c.l.b16 %v895
    %v3553 = vunpack.c.h.b16 %v895
    %v3554 = vunpack.c.l.b16 %v896
    %v3555 = vunpack.c.h.b16 %v896
    %v3556 = vunpack.c.l.b16 %v897
    %v3557 = vunpack.c.h.b16 %v897
    %v3558 = vunpack.c.l.b16 %v898
    %v3559 = vunpack.c.h.b16 %v898
    %v3560 = vunpack.c.l.b16 %v899
    %v3561 = vunpack.c.h.b16 %v899
    %v3562 = vunpack.c.l.b16 %v900
    %v3563 = vunpack.c.h.b16 %v900
    %v3564 = vunpack.c.l.b16 %v901
    %v3565 = vunpack.c.h.b16 %v901
    %v3566 = vunpack.c.l.b16 %v902
    %v3567 = vunpack.c.h.b16 %v902
    %v3568 = vunpack.c.l.b16 %v903
    %v3569 = vunpack.c.h.b16 %v903
    %v3570 = vunpack.c.l.b16 %v904
    %v3571 = vunpack.c.h.b16 %v904
    %v3572 = vunpack.c.l.b16 %v905
    %v3573 = vunpack.c.h.b16 %v905
    %v3574 = vunpack.c.l.b16 %v906
    %v3575 = vunpack.c.h.b16 %v906
    %v3576 = vunpack.c.l.b16 %v907
    %v3577 = vunpack.c.h.b16 %v907
    %v3578 = vunpack.c.l.b16 %v908
    %v3579 = vunpack.c.h.b16 %v908
    %v3580 = vunpack.c.l.b16 %v909
    %v3581 = vunpack.c.h.b16 %v909
    %v3582 = vunpack.c.l.b16 %v910
    %v3583 = vunpack.c.h.b16 %v910
    %v3584 = vunpack.c.l.b16 %v911
    %v3585 = vunpack.c.h.b16 %v911
    %v3586 = vunpack.c.l.b16 %v912
    %v3587 = vunpack.c.h.b16 %v912
    %v3588 = vunpack.c.l.b16 %v913
    %v3589 = vunpack.c.h.b16 %v913
    %v3590 = vunpack.c.l.b16 %v914
    %v3591 = vunpack.c.h.b16 %v914
    %v3592 = vunpack.c.l.b16 %v915
    %v3593 = vunpack.c.h.b16 %v915
    %v3594 = vunpack.c.l.b16 %v916
    %v3595 = vunpack.c.h.b16 %v916
    %v3596 = vunpack.c.l.b16 %v917
    %v3597 = vunpack.c.h.b16 %v917
    %v3598 = vunpack.c.l.b16 %v918
    %v3599 = vunpack.c.h.b16 %v918
    %v3600 = vunpack.c.l.b16 %v919
    %v3601 = vunpack.c.h.b16 %v919
    %v3602 = vunpack.c.l.b16 %v920
    %v3603 = vunpack.c.h.b16 %v920
    %v3604 = vunpack.c.l.b16 %v921
    %v3605 = vunpack.c.h.b16 %v921
    %v3606 = vunpack.c.l.b16 %v922
    %v3607 = vunpack.c.h.b16 %v922
    %v3608 = vunpack.c.l.b16 %v923
    %v3609 = vunpack.c.h.b16 %v923
    %v3610 = vunpack.c.l.b16 %v924
    %v3611 = vunpack.c.h.b16 %v924
    %v3612 = vunpack.c.l.b16 %v925
    %v3613 = vunpack.c.h.b16 %v925
    %v3614 = vunpack.c.l.b16 %v926
    %v3615 = vunpack.c.h.b16 %v926
    %v3616 = vunpack.c.l.b16 %v927
    %v3617 = vunpack.c.h.b16 %v927
    %v3618 = vunpack.c.l.b16 %v928
    %v3619 = vunpack.c.h.b16 %v928
    %v3620 = vunpack.c.l.b16 %v929
    %v3621 = vunpack.c.h.b16 %v929
    %v3622 = vunpack.c.l.b16 %v930
    %v3623 = vunpack.c.h.b16 %v930
    %v3624 = vunpack.c.l.b16 %v931
    %v3625 = vunpack.c.h.b16 %v931
    %v3626 = vunpack.c.l.b16 %v932
    %v3627 = vunpack.c.h.b16 %v932
    %v3628 = vunpack.c.l.b16 %v933
    %v3629 = vunpack.c.h.b16 %v933
    %v3630 = vunpack.c.l.b16 %v934
    %v3631 = vunpack.c.h.b16 %v934
    %v3632 = vunpack.c.l.b16 %v935
    %v3633 = vunpack.c.h.b16 %v935
    %v3634 = vunpack.c.l.b16 %v936
    %v3635 = vunpack.c.h.b16 %v936
    %v3636 = vunpack.c.l.b16 %v937
    %v3637 = vunpack.c.h.b16 %v937
    %v3638 = vunpack.c.l.b16 %v938
    %v3639 = vunpack.c.h.b16 %v938
    %v3640 = vunpack.c.l.b16 %v939
    %v3641 = vunpack.c.h.b16 %v939
    %v3642 = vunpack.c.l.b16 %v940
    %v3643 = vunpack.c.h.b16 %v940
    %v3644 = vunpack.c.l.b16 %v941
    %v3645 = vunpack.c.h.b16 %v941
    %v3646 = vunpack.c.l.b16 %v942
    %v3647 = vunpack.c.h.b16 %v942
    %v3648 = vunpack.c.l.b16 %v943
    %v3649 = vunpack.c.h.b16 %v943
    %v3650 = vunpack.c.l.b16 %v944
    %v3651 = vunpack.c.h.b16 %v944
    %v3652 = vunpack.c.l.b16 %v945
    %v3653 = vunpack.c.h.b16 %v945
    %v3654 = vunpack.c.l.b16 %v946
    %v3655 = vunpack.c.h.b16 %v946
    %v3656 = vpack.c.b16 %v1946, %v1928
    %v3657 = vpack.c.b16 %v1947, %v1929
    %v3658 = vpack.c.b16 %v1948, %v1930
    %v3659 = vpack.c.b16 %v1949, %v1931
    %v3660 = vpack.c.b16 %v1950, %v1932
    %v3661 = vpack.c.b16 %v1951, %v1933
    %v3662 = vpack.c.b16 %v1952, %v1934
    %v3663 = vpack.c.b16 %v1953, %v1935
    %v3664 = vpack.c.b16 %v1954, %v1936
    %v3665 = vpack.c.b16 %v1955, %v1937
    %v3666 = vpack.c.b16 %v1956, %v1938
    %v3667 = vpack.c.b16 %v1957, %v1939
    %v3668 = vpack.c.b16 %v1958, %v1940
    %v3669 = vpack.c.b16 %v1959, %v1941
    %v3670 = vpack.c.b16 %v1960, %v1942
    %v3671 = vpack.c.b16 %v1961, %v1943
    %v3672 = vpack.c.b16 %v1962, %v1944
    %v3673 = vpack.c.b16 %v1963, %v1945
    %v3674 = vpack.c.b16 %v1982, %v1964
    %v3675 = vpack.c.b16 %v1983, %v1965
    %v3676 = vpack.c.b16 %v1984, %v1966
    %v3677 = vpack.c.b16 %v1985, %v1967
    %v3678 = vpack.c.b16 %v1986, %v1968
    %v3679 = vpack.c.b16 %v1987, %v1969
    %v3680 = vpack.c.b16 %v1988, %v1970
    %v3681 = vpack.c.b16 %v1989, %v1971
    %v3682 = vpack.c.b16 %v1990, %v1972
    %v3683 = vpack.c.b16 %v1991, %v1973
    %v3684 = vpack.c.b16 %v1992, %v1974
    %v3685 = vpack.c.b16 %v1993, %v1975
    %v3686 = vpack.c.b16 %v1994, %v1976
    %v3687 = vpack.c.b16 %v1995, %v1977
    %v3688 = vpack.c.b16 %v1996, %v1978
    %v3689 = vpack.c.b16 %v1997, %v1979
    %v3690 = vpack.c.b16 %v1998, %v1980
    %v3691 = vpack.c.b16 %v1999, %v1981
    %v3692 = vpack.c.b16 %v2018, %v2000
    %v3693 = vpack.c.b16 %v2019, %v2001
    %v3694 = vpack.c.b16 %v2020, %v2002
    %v3695 = vpack.c.b16 %v2021, %v2003
    %v3696 = vpack.c.b16 %v2022, %v2004
    %v3697 = vpack.c.b16 %v2023, %v2005
    %v3698 = vpack.c.b16 %v2024, %v2006
    %v3699 = vpack.c.b16 %v2025, %v2007
    %v3700 = vpack.c.b16 %v2026, %v2008
    %v3701 = vpack.c.b16 %v2027, %v2009
    %v3702 = vpack.c.b16 %v2028, %v2010
    %v3703 = vpack.c.b16 %v2029, %v2011
    %v3704 = vpack.c.b16 %v2030, %v2012
    %v3705 = vpack.c.b16 %v2031, %v2013
    %v3706 = vpack.c.b16 %v2032, %v2014
    %v3707 = vpack.c.b16 %v2033, %v2015
    %v3708 = vpack.c.b16 %v2034, %v2016
    %v3709 = vpack.c.b16 %v2035, %v2017
    %v3710 = vpack.c.b16 %v2054, %v2036
    %v3711 = vpack.c.b16 %v2055, %v2037
    %v3712 = vpack.c.b16 %v2056, %v2038
    %v3713 = vpack.c.b16 %v2057, %v2039
    %v3714 = vpack.c.b16 %v2058, %v2040
    %v3715 = vpack.c.b16 %v2059, %v2041
    %v3716 = vpack.c.b16 %v2060, %v2042
    %v3717 = vpack.c.b16 %v2061, %v2043
    %v3718 = vpack.c.b16 %v2062, %v2044
    %v3719 = vpack.c.b16 %v2063, %v2045
    %v3720 = vpack.c.b16 %v2064, %v2046
    %v3721 = vpack.c.b16 %v2065, %v2047
    %v3722 = vpack.c.b16 %v2066, %v2048
    %v3723 = vpack.c.b16 %v2067, %v2049
    %v3724 = vpack.c.b16 %v2068, %v2050
    %v3725 = vpack.c.b16 %v2069, %v2051
    %v3726 = vpack.c.b16 %v2070, %v2052
    %v3727 = vpack.c.b16 %v2071, %v2053
    %v3728 = vpack.c.b16 %v2090, %v2072
    %v3729 = vpack.c.b16 %v2091, %v2073
    %v3730 = vpack.c.b16 %v2092, %v2074
    %v3731 = vpack.c.b16 %v2093, %v2075
    %v3732 = vpack.c.b16 %v2094, %v2076
    %v3733 = vpack.c.b16 %v2095, %v2077
    %v3734 = vpack.c.b16 %v2096, %v2078
    %v3735 = vpack.c.b16 %v2097, %v2079
    %v3736 = vpack.c.b16 %v2098, %v2080
    %v3737 = vpack.c.b16 %v2099, %v2081
    %v3738 = vpack.c.b16 %v2100, %v2082
    %v3739 = vpack.c.b16 %v2101, %v2083
    %v3740 = vpack.c.b16 %v2102, %v2084
    %v3741 = vpack.c.b16 %v2103, %v2085
    %v3742 = vpack.c.b16 %v2104, %v2086
    %v3743 = vpack.c.b16 %v2105, %v2087
    %v3744 = vpack.c.b16 %v2106, %v2088
    %v3745 = vpack.c.b16 %v2107, %v2089
    %v3746 = vpack.c.b16 %v2126, %v2108
    %v3747 = vpack.c.b16 %v2127, %v2109
    %v3748 = vpack.c.b16 %v2128, %v2110
    %v3749 = vpack.c.b16 %v2129, %v2111
    %v3750 = vpack.c.b16 %v2130, %v2112
    %v3751 = vpack.c.b16 %v2131, %v2113
    %v3752 = vpack.c.b16 %v2132, %v2114
    %v3753 = vpack.c.b16 %v2133, %v2115
    %v3754 = vpack.c.b16 %v2134, %v2116
    %v3755 = vpack.c.b16 %v2135, %v2117
    %v3756 = vpack.c.b16 %v2136, %v2118
    %v3757 = vpack.c.b16 %v2137, %v2119
    %v3758 = vpack.c.b16 %v2138, %v2120
    %v3759 = vpack.c.b16 %v2139, %v2121
    %v3760 = vpack.c.b16 %v2140, %v2122
    %v3761 = vpack.c.b16 %v2141, %v2123
    %v3762 = vpack.c.b16 %v2142, %v2124
    %v3763 = vpack.c.b16 %v2143, %v2125
    %v3764 = vpack.c.b16 %v2162, %v2144
    %v3765 = vpack.c.b16 %v2163, %v2145
    %v3766 = vpack.c.b16 %v2164, %v2146
    %v3767 = vpack.c.b16 %v2165, %v2147
    %v3768 = vpack.c.b16 %v2166, %v2148
    %v3769 = vpack.c.b16 %v2167, %v2149
    %v3770 = vpack.c.b16 %v2168, %v2150
    %v3771 = vpack.c.b16 %v2169, %v2151
    %v3772 = vpack.c.b16 %v2170, %v2152
    %v3773 = vpack.c.b16 %v2171, %v2153
    %v3774 = vpack.c.b16 %v2172, %v2154
    %v3775 = vpack.c.b16 %v2173, %v2155
    %v3776 = vpack.c.b16 %v2174, %v2156
    %v3777 = vpack.c.b16 %v2175, %v2157
    %v3778 = vpack.c.b16 %v2176, %v2158
    %v3779 = vpack.c.b16 %v2177, %v2159
    %v3780 = vpack.c.b16 %v2178, %v2160
    %v3781 = vpack.c.b16 %v2179, %v2161
    %v3782 = vpack.c.b16 %v2198, %v2180
    %v3783 = vpack.c.b16 %v2199, %v2181
    %v3784 = vpack.c.b16 %v2200, %v2182
    %v3785 = vpack.c.b16 %v2201, %v2183
    %v3786 = vpack.c.b16 %v2202, %v2184
    %v3787 = vpack.c.b16 %v2203, %v2185
    %v3788 = vpack.c.b16 %v2204, %v2186
    %v3789 = vpack.c.b16 %v2205, %v2187
    %v3790 = vpack.c.b16 %v2206, %v2188
    %v3791 = vpack.c.b16 %v2207, %v2189
    %v3792 = vpack.c.b16 %v2208, %v2190
    %v3793 = vpack.c.b16 %v2209, %v2191
    %v3794 = vpack.c.b16 %v2210, %v2192
    %v3795 = vpack.c.b16 %v2211, %v2193
    %v3796 = vpack.c.b16 %v2212, %v2194
    %v3797 = vpack.c.b16 %v2213, %v2195
    %v3798 = vpack.c.b16 %v2214, %v2196
    %v3799 = vpack.c.b16 %v2215, %v2197
    %v3800 = vpack.c.b16 %v2234, %v2216
    %v3801 = vpack.c.b16 %v2235, %v2217
    %v3802 = vpack.c.b16 %v2236, %v2218
    %v3803 = vpack.c.b16 %v2237, %v2219
    %v3804 = vpack.c.b16 %v2238, %v2220
    %v3805 = vpack.c.b16 %v2239, %v2221
    %v3806 = vpack.c.b16 %v2240, %v2222
    %v3807 = vpack.c.b16 %v2241, %v2223
    %v3808 = vpack.c.b16 %v2242, %v2224
    %v3809 = vpack.c.b16 %v2243, %v2225
    %v3810 = vpack.c.b16 %v2244, %v2226
    %v3811 = vpack.c.b16 %v2245, %v2227
    %v3812 = vpack.c.b16 %v2246, %v2228
    %v3813 = vpack.c.b16 %v2247, %v2229
    %v3814 = vpack.c.b16 %v2248, %v2230
    %v3815 = vpack.c.b16 %v2249, %v2231
    %v3816 = vpack.c.b16 %v2250, %v2232
    %v3817 = vpack.c.b16 %v2251, %v2233
    %v3818 = vpack.c.b16 %v2270, %v2252
    %v3819 = vpack.c.b16 %v2271, %v2253
    %v3820 = vpack.c.b16 %v2272, %v2254
    %v3821 = vpack.c.b16 %v2273, %v2255
    %v3822 = vpack.c.b16 %v2274, %v2256
    %v3823 = vpack.c.b16 %v2275, %v2257
    %v3824 = vpack.c.b16 %v2276, %v2258
    %v3825 = vpack.c.b16 %v2277, %v2259
    %v3826 = vpack.c.b16 %v2278, %v2260
    %v3827 = vpack.c.b16 %v2279, %v2261
    %v3828 = vpack.c.b16 %v2280, %v2262
    %v3829 = vpack.c.b16 %v2281, %v2263
    %v3830 = vpack.c.b16 %v2282, %v2264
    %v3831 = vpack.c.b16 %v2283, %v2265
    %v3832 = vpack.c.b16 %v2284, %v2266
    %v3833 = vpack.c.b16 %v2285, %v2267
    %v3834 = vpack.c.b16 %v2286, %v2268
    %v3835 = vpack.c.b16 %v2287, %v2269
    %v3836 = vpack.c.b16 %v2306, %v2288
    %v3837 = vpack.c.b16 %v2307, %v2289
    %v3838 = vpack.c.b16 %v2308, %v2290
    %v3839 = vpack.c.b16 %v2309, %v2291
    %v3840 = vpack.c.b16 %v2310, %v2292
    %v3841 = vpack.c.b16 %v2311, %v2293
    %v3842 = vpack.c.b16 %v2312, %v2294
    %v3843 = vpack.c.b16 %v2313, %v2295
    %v3844 = vpack.c.b16 %v2314, %v2296
    %v3845 = vpack.c.b16 %v2315, %v2297
    %v3846 = vpack.c.b16 %v2316, %v2298
    %v3847 = vpack.c.b16 %v2317, %v2299
    %v3848 = vpack.c.b16 %v2318, %v2300
    %v3849 = vpack.c.b16 %v2319, %v2301
    %v3850 = vpack.c.b16 %v2320, %v2302
    %v3851 = vpack.c.b16 %v2321, %v2303
    %v3852 = vpack.c.b16 %v2322, %v2304
    %v3853 = vpack.c.b16 %v2323, %v2305
    %v3854 = vpack.c.b16 %v2342, %v2324
    %v3855 = vpack.c.b16 %v2343, %v2325
    %v3856 = vpack.c.b16 %v2344, %v2326
    %v3857 = vpack.c.b16 %v2345, %v2327
    %v3858 = vpack.c.b16 %v2346, %v2328
    %v3859 = vpack.c.b16 %v2347, %v2329
    %v3860 = vpack.c.b16 %v2348, %v2330
    %v3861 = vpack.c.b16 %v2349, %v2331
    %v3862 = vpack.c.b16 %v2350, %v2332
    %v3863 = vpack.c.b16 %v2351, %v2333
    %v3864 = vpack.c.b16 %v2352, %v2334
    %v3865 = vpack.c.b16 %v2353, %v2335
    %v3866 = vpack.c.b16 %v2354, %v2336
    %v3867 = vpack.c.b16 %v2355, %v2337
    %v3868 = vpack.c.b16 %v2356, %v2338
    %v3869 = vpack.c.b16 %v2357, %v2339
    %v3870 = vpack.c.b16 %v2358, %v2340
    %v3871 = vpack.c.b16 %v2359, %v2341
    %v3872 = vpack.c.b16 %v2378, %v2360
    %v3873 = vpack.c.b16 %v2379, %v2361
    %v3874 = vpack.c.b16 %v2380, %v2362
    %v3875 = vpack.c.b16 %v2381, %v2363
    %v3876 = vpack.c.b16 %v2382, %v2364
    %v3877 = vpack.c.b16 %v2383, %v2365
    %v3878 = vpack.c.b16 %v2384, %v2366
    %v3879 = vpack.c.b16 %v2385, %v2367
    %v3880 = vpack.c.b16 %v2386, %v2368
    %v3881 = vpack.c.b16 %v2387, %v2369
    %v3882 = vpack.c.b16 %v2388, %v2370
    %v3883 = vpack.c.b16 %v2389, %v2371
    %v3884 = vpack.c.b16 %v2390, %v2372
    %v3885 = vpack.c.b16 %v2391, %v2373
    %v3886 = vpack.c.b16 %v2392, %v2374
    %v3887 = vpack.c.b16 %v2393, %v2375
    %v3888 = vpack.c.b16 %v2394, %v2376
    %v3889 = vpack.c.b16 %v2395, %v2377
    %v3890 = vpack.c.b16 %v2414, %v2396
    %v3891 = vpack.c.b16 %v2415, %v2397
    %v3892 = vpack.c.b16 %v2416, %v2398
    %v3893 = vpack.c.b16 %v2417, %v2399
    %v3894 = vpack.c.b16 %v2418, %v2400
    %v3895 = vpack.c.b16 %v2419, %v2401
    %v3896 = vpack.c.b16 %v2420, %v2402
    %v3897 = vpack.c.b16 %v2421, %v2403
    %v3898 = vpack.c.b16 %v2422, %v2404
    %v3899 = vpack.c.b16 %v2423, %v2405
    %v3900 = vpack.c.b16 %v2424, %v2406
    %v3901 = vpack.c.b16 %v2425, %v2407
    %v3902 = vpack.c.b16 %v2426, %v2408
    %v3903 = vpack.c.b16 %v2427, %v2409
    %v3904 = vpack.c.b16 %v2428, %v2410
    %v3905 = vpack.c.b16 %v2429, %v2411
    %v3906 = vpack.c.b16 %v2430, %v2412
    %v3907 = vpack.c.b16 %v2431, %v2413
    %v3908 = vpack.c.b16 %v2450, %v2432
    %v3909 = vpack.c.b16 %v2451, %v2433
    %v3910 = vpack.c.b16 %v2452, %v2434
    %v3911 = vpack.c.b16 %v2453, %v2435
    %v3912 = vpack.c.b16 %v2454, %v2436
    %v3913 = vpack.c.b16 %v2455, %v2437
    %v3914 = vpack.c.b16 %v2456, %v2438
    %v3915 = vpack.c.b16 %v2457, %v2439
    %v3916 = vpack.c.b16 %v2458, %v2440
    %v3917 = vpack.c.b16 %v2459, %v2441
    %v3918 = vpack.c.b16 %v2460, %v2442
    %v3919 = vpack.c.b16 %v2461, %v2443
    %v3920 = vpack.c.b16 %v2462, %v2444
    %v3921 = vpack.c.b16 %v2463, %v2445
    %v3922 = vpack.c.b16 %v2464, %v2446
    %v3923 = vpack.c.b16 %v2465, %v2447
    %v3924 = vpack.c.b16 %v2466, %v2448
    %v3925 = vpack.c.b16 %v2467, %v2449
    %v3926 = vpack.c.b16 %v2486, %v2468
    %v3927 = vpack.c.b16 %v2487, %v2469
    %v3928 = vpack.c.b16 %v2488, %v2470
    %v3929 = vpack.c.b16 %v2489, %v2471
    %v3930 = vpack.c.b16 %v2490, %v2472
    %v3931 = vpack.c.b16 %v2491, %v2473
    %v3932 = vpack.c.b16 %v2492, %v2474
    %v3933 = vpack.c.b16 %v2493, %v2475
    %v3934 = vpack.c.b16 %v2494, %v2476
    %v3935 = vpack.c.b16 %v2495, %v2477
    %v3936 = vpack.c.b16 %v2496, %v2478
    %v3937 = vpack.c.b16 %v2497, %v2479
    %v3938 = vpack.c.b16 %v2498, %v2480
    %v3939 = vpack.c.b16 %v2499, %v2481
    %v3940 = vpack.c.b16 %v2500, %v2482
    %v3941 = vpack.c.b16 %v2501, %v2483
    %v3942 = vpack.c.b16 %v2502, %v2484
    %v3943 = vpack.c.b16 %v2503, %v2485
    %v3944 = vpack.c.b16 %v2522, %v2504
    %v3945 = vpack.c.b16 %v2523, %v2505
    %v3946 = vpack.c.b16 %v2524, %v2506
    %v3947 = vpack.c.b16 %v2525, %v2507
    %v3948 = vpack.c.b16 %v2526, %v2508
    %v3949 = vpack.c.b16 %v2527, %v2509
    %v3950 = vpack.c.b16 %v2528, %v2510
    %v3951 = vpack.c.b16 %v2529, %v2511
    %v3952 = vpack.c.b16 %v2530, %v2512
    %v3953 = vpack.c.b16 %v2531, %v2513
    %v3954 = vpack.c.b16 %v2532, %v2514
    %v3955 = vpack.c.b16 %v2533, %v2515
    %v3956 = vpack.c.b16 %v2534, %v2516
    %v3957 = vpack.c.b16 %v2535, %v2517
    %v3958 = vpack.c.b16 %v2536, %v2518
    %v3959 = vpack.c.b16 %v2537, %v2519
    %v3960 = vpack.c.b16 %v2538, %v2520
    %v3961 = vpack.c.b16 %v2539, %v2521
    %v3962 = vpack.c.b16 %v2558, %v2540
    %v3963 = vpack.c.b16 %v2559, %v2541
    %v3964 = vpack.c.b16 %v2560, %v2542
    %v3965 = vpack.c.b16 %v2561, %v2543
    %v3966 = vpack.c.b16 %v2562, %v2544
    %v3967 = vpack.c.b16 %v2563, %v2545
    %v3968 = vpack.c.b16 %v2564, %v2546
    %v3969 = vpack.c.b16 %v2565, %v2547
    %v3970 = vpack.c.b16 %v2566, %v2548
    %v3971 = vpack.c.b16 %v2567, %v2549
    %v3972 = vpack.c.b16 %v2568, %v2550
    %v3973 = vpack.c.b16 %v2569, %v2551
    %v3974 = vpack.c.b16 %v2570, %v2552
    %v3975 = vpack.c.b16 %v2571, %v2553
    %v3976 = vpack.c.b16 %v2572, %v2554
    %v3977 = vpack.c.b16 %v2573, %v2555
    %v3978 = vpack.c.b16 %v2574, %v2556
    %v3979 = vpack.c.b16 %v2575, %v2557
    %v3980 = vpack.c.b16 %v2594, %v2576
    %v3981 = vpack.c.b16 %v2595, %v2577
    %v3982 = vpack.c.b16 %v2596, %v2578
    %v3983 = vpack.c.b16 %v2597, %v2579
    %v3984 = vpack.c.b16 %v2598, %v2580
    %v3985 = vpack.c.b16 %v2599, %v2581
    %v3986 = vpack.c.b16 %v2600, %v2582
    %v3987 = vpack.c.b16 %v2601, %v2583
    %v3988 = vpack.c.b16 %v2602, %v2584
    %v3989 = vpack.c.b16 %v2603, %v2585
    %v3990 = vpack.c.b16 %v2604, %v2586
    %v3991 = vpack.c.b16 %v2605, %v2587
    %v3992 = vpack.c.b16 %v2606, %v2588
    %v3993 = vpack.c.b16 %v2607, %v2589
    %v3994 = vpack.c.b16 %v2608, %v2590
    %v3995 = vpack.c.b16 %v2609, %v2591
    %v3996 = vpack.c.b16 %v2610, %v2592
    %v3997 = vpack.c.b16 %v2611, %v2593
    %v3998 = vpack.c.b16 %v2630, %v2612
    %v3999 = vpack.c.b16 %v2631, %v2613
    %v4000 = vpack.c.b16 %v2632, %v2614
    %v4001 = vpack.c.b16 %v2633, %v2615
    %v4002 = vpack.c.b16 %v2634, %v2616
    %v4003 = vpack.c.b16 %v2635, %v2617
    %v4004 = vpack.c.b16 %v2636, %v2618
    %v4005 = vpack.c.b16 %v2637, %v2619
    %v4006 = vpack.c.b16 %v2638, %v2620
    %v4007 = vpack.c.b16 %v2639, %v2621
    %v4008 = vpack.c.b16 %v2640, %v2622
    %v4009 = vpack.c.b16 %v2641, %v2623
    %v4010 = vpack.c.b16 %v2642, %v2624
    %v4011 = vpack.c.b16 %v2643, %v2625
    %v4012 = vpack.c.b16 %v2644, %v2626
    %v4013 = vpack.c.b16 %v2645, %v2627
    %v4014 = vpack.c.b16 %v2646, %v2628
    %v4015 = vpack.c.b16 %v2647, %v2629
    %v4016 = vpack.c.b16 %v2666, %v2648
    %v4017 = vpack.c.b16 %v2667, %v2649
    %v4018 = vpack.c.b16 %v2668, %v2650
    %v4019 = vpack.c.b16 %v2669, %v2651
    %v4020 = vpack.c.b16 %v2670, %v2652
    %v4021 = vpack.c.b16 %v2671, %v2653
    %v4022 = vpack.c.b16 %v2672, %v2654
    %v4023 = vpack.c.b16 %v2673, %v2655
    %v4024 = vpack.c.b16 %v2674, %v2656
    %v4025 = vpack.c.b16 %v2675, %v2657
    %v4026 = vpack.c.b16 %v2676, %v2658
    %v4027 = vpack.c.b16 %v2677, %v2659
    %v4028 = vpack.c.b16 %v2678, %v2660
    %v4029 = vpack.c.b16 %v2679, %v2661
    %v4030 = vpack.c.b16 %v2680, %v2662
    %v4031 = vpack.c.b16 %v2681, %v2663
    %v4032 = vpack.c.b16 %v2682, %v2664
    %v4033 = vpack.c.b16 %v2683, %v2665
    %v4034 = vpack.c.b16 %v2702, %v2684
    %v4035 = vpack.c.b16 %v2703, %v2685
    %v4036 = vpack.c.b16 %v2704, %v2686
    %v4037 = vpack.c.b16 %v2705, %v2687
    %v4038 = vpack.c.b16 %v2706, %v2688
    %v4039 = vpack.c.b16 %v2707, %v2689
    %v4040 = vpack.c.b16 %v2708, %v2690
    %v4041 = vpack.c.b16 %v2709, %v2691
    %v4042 = vpack.c.b16 %v2710, %v2692
    %v4043 = vpack.c.b16 %v2711, %v2693
    %v4044 = vpack.c.b16 %v2712, %v2694
    %v4045 = vpack.c.b16 %v2713, %v2695
    %v4046 = vpack.c.b16 %v2714, %v2696
    %v4047 = vpack.c.b16 %v2715, %v2697
    %v4048 = vpack.c.b16 %v2716, %v2698
    %v4049 = vpack.c.b16 %v2717, %v2699
    %v4050 = vpack.c.b16 %v2718, %v2700
    %v4051 = vpack.c.b16 %v2719, %v2701
    %v4052 = vpack.c.b16 %v2738, %v2720
    %v4053 = vpack.c.b16 %v2739, %v2721
    %v4054 = vpack.c.b16 %v2740, %v2722
    %v4055 = vpack.c.b16 %v2741, %v2723
    %v4056 = vpack.c.b16 %v2742, %v2724
    %v4057 = vpack.c.b16 %v2743, %v2725
    %v4058 = vpack.c.b16 %v2744, %v2726
    %v4059 = vpack.c.b16 %v2745, %v2727
    %v4060 = vpack.c.b16 %v2746, %v2728
    %v4061 = vpack.c.b16 %v2747, %v2729
    %v4062 = vpack.c.b16 %v2748, %v2730
    %v4063 = vpack.c.b16 %v2749, %v2731
    %v4064 = vpack.c.b16 %v2750, %v2732
    %v4065 = vpack.c.b16 %v2751, %v2733
    %v4066 = vpack.c.b16 %v2752, %v2734
    %v4067 = vpack.c.b16 %v2753, %v2735
    %v4068 = vpack.c.b16 %v2754, %v2736
    %v4069 = vpack.c.b16 %v2755, %v2737
    %v4070 = vpack.c.b16 %v2774, %v2756
    %v4071 = vpack.c.b16 %v2775, %v2757
    %v4072 = vpack.c.b16 %v2776, %v2758
    %v4073 = vpack.c.b16 %v2777, %v2759
    %v4074 = vpack.c.b16 %v2778, %v2760
    %v4075 = vpack.c.b16 %v2779, %v2761
    %v4076 = vpack.c.b16 %v2780, %v2762
    %v4077 = vpack.c.b16 %v2781, %v2763
    %v4078 = vpack.c.b16 %v2782, %v2764
    %v4079 = vpack.c.b16 %v2783, %v2765
    %v4080 = vpack.c.b16 %v2784, %v2766
    %v4081 = vpack.c.b16 %v2785, %v2767
    %v4082 = vpack.c.b16 %v2786, %v2768
    %v4083 = vpack.c.b16 %v2787, %v2769
    %v4084 = vpack.c.b16 %v2788, %v2770
    %v4085 = vpack.c.b16 %v2789, %v2771
    %v4086 = vpack.c.b16 %v2790, %v2772
    %v4087 = vpack.c.b16 %v2791, %v2773
    %v4088 = vpack.c.b16 %v2810, %v2792
    %v4089 = vpack.c.b16 %v2811, %v2793
    %v4090 = vpack.c.b16 %v2812, %v2794
    %v4091 = vpack.c.b16 %v2813, %v2795
    %v4092 = vpack.c.b16 %v2814, %v2796
    %v4093 = vpack.c.b16 %v2815, %v2797
    %v4094 = vpack.c.b16 %v2816, %v2798
    %v4095 = vpack.c.b16 %v2817, %v2799
    %v4096 = vpack.c.b16 %v2818, %v2800
    %v4097 = vpack.c.b16 %v2819, %v2801
    %v4098 = vpack.c.b16 %v2820, %v2802
    %v4099 = vpack.c.b16 %v2821, %v2803
    %v4100 = vpack.c.b16 %v2822, %v2804
    %v4101 = vpack.c.b16 %v2823, %v2805
    %v4102 = vpack.c.b16 %v2824, %v2806
    %v4103 = vpack.c.b16 %v2825, %v2807
    %v4104 = vpack.c.b16 %v2826, %v2808
    %v4105 = vpack.c.b16 %v2827, %v2809
    %v4106 = vpack.c.b16 %v2846, %v2828
    %v4107 = vpack.c.b16 %v2847, %v2829
    %v4108 = vpack.c.b16 %v2848, %v2830
    %v4109 = vpack.c.b16 %v2849, %v2831
    %v4110 = vpack.c.b16 %v2850, %v2832
    %v4111 = vpack.c.b16 %v2851, %v2833
    %v4112 = vpack.c.b16 %v2852, %v2834
    %v4113 = vpack.c.b16 %v2853, %v2835
    %v4114 = vpack.c.b16 %v2854, %v2836
    %v4115 = vpack.c.b16 %v2855, %v2837
    %v4116 = vpack.c.b16 %v2856, %v2838
    %v4117 = vpack.c.b16 %v2857, %v2839
    %v4118 = vpack.c.b16 %v2858, %v2840
    %v4119 = vpack.c.b16 %v2859, %v2841
    %v4120 = vpack.c.b16 %v2860, %v2842
    %v4121 = vpack.c.b16 %v2861, %v2843
    %v4122 = vpack.c.b16 %v2862, %v2844
    %v4123 = vpack.c.b16 %v2863, %v2845
    %v4124 = vpack.c.b16 %v2882, %v2864
    %v4125 = vpack.c.b16 %v2883, %v2865
    %v4126 = vpack.c.b16 %v2884, %v2866
    %v4127 = vpack.c.b16 %v2885, %v2867
    %v4128 = vpack.c.b16 %v2886, %v2868
    %v4129 = vpack.c.b16 %v2887, %v2869
    %v4130 = vpack.c.b16 %v2888, %v2870
    %v4131 = vpack.c.b16 %v2889, %v2871
    %v4132 = vpack.c.b16 %v2890, %v2872
    %v4133 = vpack.c.b16 %v2891, %v2873
    %v4134 = vpack.c.b16 %v2892, %v2874
    %v4135 = vpack.c.b16 %v2893, %v2875
    %v4136 = vpack.c.b16 %v2894, %v2876
    %v4137 = vpack.c.b16 %v2895, %v2877
    %v4138 = vpack.c.b16 %v2896, %v2878
    %v4139 = vpack.c.b16 %v2897, %v2879
    %v4140 = vpack.c.b16 %v2898, %v2880
    %v4141 = vpack.c.b16 %v2899, %v2881
    %v4142 = vpack.c.b16 %v2918, %v2900
    %v4143 = vpack.c.b16 %v2919, %v2901
    %v4144 = vpack.c.b16 %v2920, %v2902
    %v4145 = vpack.c.b16 %v2921, %v2903
    %v4146 = vpack.c.b16 %v2922, %v2904
    %v4147 = vpack.c.b16 %v2923, %v2905
    %v4148 = vpack.c.b16 %v2924, %v2906
    %v4149 = vpack.c.b16 %v2925, %v2907
    %v4150 = vpack.c.b16 %v2926, %v2908
    %v4151 = vpack.c.b16 %v2927, %v2909
    %v4152 = vpack.c.b16 %v2928, %v2910
    %v4153 = vpack.c.b16 %v2929, %v2911
    %v4154 = vpack.c.b16 %v2930, %v2912
    %v4155 = vpack.c.b16 %v2931, %v2913
    %v4156 = vpack.c.b16 %v2932, %v2914
    %v4157 = vpack.c.b16 %v2933, %v2915
    %v4158 = vpack.c.b16 %v2934, %v2916
    %v4159 = vpack.c.b16 %v2935, %v2917
    %v4160 = vpack.c.b16 %v2954, %v2936
    %v4161 = vpack.c.b16 %v2955, %v2937
    %v4162 = vpack.c.b16 %v2956, %v2938
    %v4163 = vpack.c.b16 %v2957, %v2939
    %v4164 = vpack.c.b16 %v2958, %v2940
    %v4165 = vpack.c.b16 %v2959, %v2941
    %v4166 = vpack.c.b16 %v2960, %v2942
    %v4167 = vpack.c.b16 %v2961, %v2943
    %v4168 = vpack.c.b16 %v2962, %v2944
    %v4169 = vpack.c.b16 %v2963, %v2945
    %v4170 = vpack.c.b16 %v2964, %v2946
    %v4171 = vpack.c.b16 %v2965, %v2947
    %v4172 = vpack.c.b16 %v2966, %v2948
    %v4173 = vpack.c.b16 %v2967, %v2949
    %v4174 = vpack.c.b16 %v2968, %v2950
    %v4175 = vpack.c.b16 %v2969, %v2951
    %v4176 = vpack.c.b16 %v2970, %v2952
    %v4177 = vpack.c.b16 %v2971, %v2953
    %v4178 = vpack.c.b16 %v2990, %v2972
    %v4179 = vpack.c.b16 %v2991, %v2973
    %v4180 = vpack.c.b16 %v2992, %v2974
    %v4181 = vpack.c.b16 %v2993, %v2975
    %v4182 = vpack.c.b16 %v2994, %v2976
    %v4183 = vpack.c.b16 %v2995, %v2977
    %v4184 = vpack.c.b16 %v2996, %v2978
    %v4185 = vpack.c.b16 %v2997, %v2979
    %v4186 = vpack.c.b16 %v2998, %v2980
    %v4187 = vpack.c.b16 %v2999, %v2981
    %v4188 = vpack.c.b16 %v3000, %v2982
    %v4189 = vpack.c.b16 %v3001, %v2983
    %v4190 = vpack.c.b16 %v3002, %v2984
    %v4191 = vpack.c.b16 %v3003, %v2985
    %v4192 = vpack.c.b16 %v3004, %v2986
    %v4193 = vpack.c.b16 %v3005, %v2987
    %v4194 = vpack.c.b16 %v3006, %v2988
    %v4195 = vpack.c.b16 %v3007, %v2989
    %v4196 = vpack.c.b16 %v3026, %v3008
    %v4197 = vpack.c.b16 %v3027, %v3009
    %v4198 = vpack.c.b16 %v3028, %v3010
    %v4199 = vpack.c.b16 %v3029, %v3011
    %v4200 = vpack.c.b16 %v3030, %v3012
    %v4201 = vpack.c.b16 %v3031, %v3013
    %v4202 = vpack.c.b16 %v3032, %v3014
    %v4203 = vpack.c.b16 %v3033, %v3015
    %v4204 = vpack.c.b16 %v3034, %v3016
    %v4205 = vpack.c.b16 %v3035, %v3017
    %v4206 = vpack.c.b16 %v3036, %v3018
    %v4207 = vpack.c.b16 %v3037, %v3019
    %v4208 = vpack.c.b16 %v3038, %v3020
    %v4209 = vpack.c.b16 %v3039, %v3021
    %v4210 = vpack.c.b16 %v3040, %v3022
    %v4211 = vpack.c.b16 %v3041, %v3023
    %v4212 = vpack.c.b16 %v3042, %v3024
    %v4213 = vpack.c.b16 %v3043, %v3025
    %v4214 = vpack.c.b16 %v3062, %v3044
    %v4215 = vpack.c.b16 %v3063, %v3045
    %v4216 = vpack.c.b16 %v3064, %v3046
    %v4217 = vpack.c.b16 %v3065, %v3047
    %v4218 = vpack.c.b16 %v3066, %v3048
    %v4219 = vpack.c.b16 %v3067, %v3049
    %v4220 = vpack.c.b16 %v3068, %v3050
    %v4221 = vpack.c.b16 %v3069, %v3051
    %v4222 = vpack.c.b16 %v3070, %v3052
    %v4223 = vpack.c.b16 %v3071, %v3053
    %v4224 = vpack.c.b16 %v3072, %v3054
    %v4225 = vpack.c.b16 %v3073, %v3055
    %v4226 = vpack.c.b16 %v3074, %v3056
    %v4227 = vpack.c.b16 %v3075, %v3057
    %v4228 = vpack.c.b16 %v3076, %v3058
    %v4229 = vpack.c.b16 %v3077, %v3059
    %v4230 = vpack.c.b16 %v3078, %v3060
    %v4231 = vpack.c.b16 %v3079, %v3061
    %v4232 = vpack.c.b16 %v3098, %v3080
    %v4233 = vpack.c.b16 %v3099, %v3081
    %v4234 = vpack.c.b16 %v3100, %v3082
    %v4235 = vpack.c.b16 %v3101, %v3083
    %v4236 = vpack.c.b16 %v3102, %v3084
    %v4237 = vpack.c.b16 %v3103, %v3085
    %v4238 = vpack.c.b16 %v3104, %v3086
    %v4239 = vpack.c.b16 %v3105, %v3087
    %v4240 = vpack.c.b16 %v3106, %v3088
    %v4241 = vpack.c.b16 %v3107, %v3089
    %v4242 = vpack.c.b16 %v3108, %v3090
    %v4243 = vpack.c.b16 %v3109, %v3091
    %v4244 = vpack.c.b16 %v3110, %v3092
    %v4245 = vpack.c.b16 %v3111, %v3093
    %v4246 = vpack.c.b16 %v3112, %v3094
    %v4247 = vpack.c.b16 %v3113, %v3095
    %v4248 = vpack.c.b16 %v3114, %v3096
    %v4249 = vpack.c.b16 %v3115, %v3097
    %v4250 = vpack.c.b16 %v3134, %v3116
    %v4251 = vpack.c.b16 %v3135, %v3117
    %v4252 = vpack.c.b16 %v3136, %v3118
    %v4253 = vpack.c.b16 %v3137, %v3119
    %v4254 = vpack.c.b16 %v3138, %v3120
    %v4255 = vpack.c.b16 %v3139, %v3121
    %v4256 = vpack.c.b16 %v3140, %v3122
    %v4257 = vpack.c.b16 %v3141, %v3123
    %v4258 = vpack.c.b16 %v3142, %v3124
    %v4259 = vpack.c.b16 %v3143, %v3125
    %v4260 = vpack.c.b16 %v3144, %v3126
    %v4261 = vpack.c.b16 %v3145, %v3127
    %v4262 = vpack.c.b16 %v3146, %v3128
    %v4263 = vpack.c.b16 %v3147, %v3129
    %v4264 = vpack.c.b16 %v3148, %v3130
    %v4265 = vpack.c.b16 %v3149, %v3131
    %v4266 = vpack.c.b16 %v3150, %v3132
    %v4267 = vpack.c.b16 %v3151, %v3133
    %v4268 = vpack.c.b16 %v3170, %v3152
    %v4269 = vpack.c.b16 %v3171, %v3153
    %v4270 = vpack.c.b16 %v3172, %v3154
    %v4271 = vpack.c.b16 %v3173, %v3155
    %v4272 = vpack.c.b16 %v3174, %v3156
    %v4273 = vpack.c.b16 %v3175, %v3157
    %v4274 = vpack.c.b16 %v3176, %v3158
    %v4275 = vpack.c.b16 %v3177, %v3159
    %v4276 = vpack.c.b16 %v3178, %v3160
    %v4277 = vpack.c.b16 %v3179, %v3161
    %v4278 = vpack.c.b16 %v3180, %v3162
    %v4279 = vpack.c.b16 %v3181, %v3163
    %v4280 = vpack.c.b16 %v3182, %v3164
    %v4281 = vpack.c.b16 %v3183, %v3165
    %v4282 = vpack.c.b16 %v3184, %v3166
    %v4283 = vpack.c.b16 %v3185, %v3167
    %v4284 = vpack.c.b16 %v3186, %v3168
    %v4285 = vpack.c.b16 %v3187, %v3169
    %v4286 = vpack.c.b16 %v3206, %v3188
    %v4287 = vpack.c.b16 %v3207, %v3189
    %v4288 = vpack.c.b16 %v3208, %v3190
    %v4289 = vpack.c.b16 %v3209, %v3191
    %v4290 = vpack.c.b16 %v3210, %v3192
    %v4291 = vpack.c.b16 %v3211, %v3193
    %v4292 = vpack.c.b16 %v3212, %v3194
    %v4293 = vpack.c.b16 %v3213, %v3195
    %v4294 = vpack.c.b16 %v3214, %v3196
    %v4295 = vpack.c.b16 %v3215, %v3197
    %v4296 = vpack.c.b16 %v3216, %v3198
    %v4297 = vpack.c.b16 %v3217, %v3199
    %v4298 = vpack.c.b16 %v3218, %v3200
    %v4299 = vpack.c.b16 %v3219, %v3201
    %v4300 = vpack.c.b16 %v3220, %v3202
    %v4301 = vpack.c.b16 %v3221, %v3203
    %v4302 = vpack.c.b16 %v3222, %v3204
    %v4303 = vpack.c.b16 %v3223, %v3205
    %v4304 = vpack.c.b16 %v3242, %v3224
    %v4305 = vpack.c.b16 %v3243, %v3225
    %v4306 = vpack.c.b16 %v3244, %v3226
    %v4307 = vpack.c.b16 %v3245, %v3227
    %v4308 = vpack.c.b16 %v3246, %v3228
    %v4309 = vpack.c.b16 %v3247, %v3229
    %v4310 = vpack.c.b16 %v3248, %v3230
    %v4311 = vpack.c.b16 %v3249, %v3231
    %v4312 = vpack.c.b16 %v3250, %v3232
    %v4313 = vpack.c.b16 %v3251, %v3233
    %v4314 = vpack.c.b16 %v3252, %v3234
    %v4315 = vpack.c.b16 %v3253, %v3235
    %v4316 = vpack.c.b16 %v3254, %v3236
    %v4317 = vpack.c.b16 %v3255, %v3237
    %v4318 = vpack.c.b16 %v3256, %v3238
    %v4319 = vpack.c.b16 %v3257, %v3239
    %v4320 = vpack.c.b16 %v3258, %v3240
    %v4321 = vpack.c.b16 %v3259, %v3241
    %v4322 = vpack.c.b16 %v3278, %v3260
    %v4323 = vpack.c.b16 %v3279, %v3261
    %v4324 = vpack.c.b16 %v3280, %v3262
    %v4325 = vpack.c.b16 %v3281, %v3263
    %v4326 = vpack.c.b16 %v3282, %v3264
    %v4327 = vpack.c.b16 %v3283, %v3265
    %v4328 = vpack.c.b16 %v3284, %v3266
    %v4329 = vpack.c.b16 %v3285, %v3267
    %v4330 = vpack.c.b16 %v3286, %v3268
    %v4331 = vpack.c.b16 %v3287, %v3269
    %v4332 = vpack.c.b16 %v3288, %v3270
    %v4333 = vpack.c.b16 %v3289, %v3271
    %v4334 = vpack.c.b16 %v3290, %v3272
    %v4335 = vpack.c.b16 %v3291, %v3273
    %v4336 = vpack.c.b16 %v3292, %v3274
    %v4337 = vpack.c.b16 %v3293, %v3275
    %v4338 = vpack.c.b16 %v3294, %v3276
    %v4339 = vpack.c.b16 %v3295, %v3277
    %v4340 = vpack.c.b16 %v3314, %v3296
    %v4341 = vpack.c.b16 %v3315, %v3297
    %v4342 = vpack.c.b16 %v3316, %v3298
    %v4343 = vpack.c.b16 %v3317, %v3299
    %v4344 = vpack.c.b16 %v3318, %v3300
    %v4345 = vpack.c.b16 %v3319, %v3301
    %v4346 = vpack.c.b16 %v3320, %v3302
    %v4347 = vpack.c.b16 %v3321, %v3303
    %v4348 = vpack.c.b16 %v3322, %v3304
    %v4349 = vpack.c.b16 %v3323, %v3305
    %v4350 = vpack.c.b16 %v3324, %v3306
    %v4351 = vpack.c.b16 %v3325, %v3307
    %v4352 = vpack.c.b16 %v3326, %v3308
    %v4353 = vpack.c.b16 %v3327, %v3309
    %v4354 = vpack.c.b16 %v3328, %v3310
    %v4355 = vpack.c.b16 %v3329, %v3311
    %v4356 = vpack.c.b16 %v3330, %v3312
    %v4357 = vpack.c.b16 %v3331, %v3313
    %v4358 = vpack.c.b16 %v3350, %v3332
    %v4359 = vpack.c.b16 %v3351, %v3333
    %v4360 = vpack.c.b16 %v3352, %v3334
    %v4361 = vpack.c.b16 %v3353, %v3335
    %v4362 = vpack.c.b16 %v3354, %v3336
    %v4363 = vpack.c.b16 %v3355, %v3337
    %v4364 = vpack.c.b16 %v3356, %v3338
    %v4365 = vpack.c.b16 %v3357, %v3339
    %v4366 = vpack.c.b16 %v3358, %v3340
    %v4367 = vpack.c.b16 %v3359, %v3341
    %v4368 = vpack.c.b16 %v3360, %v3342
    %v4369 = vpack.c.b16 %v3361, %v3343
    %v4370 = vpack.c.b16 %v3362, %v3344
    %v4371 = vpack.c.b16 %v3363, %v3345
    %v4372 = vpack.c.b16 %v3364, %v3346
    %v4373 = vpack.c.b16 %v3365, %v3347
    %v4374 = vpack.c.b16 %v3366, %v3348
    %v4375 = vpack.c.b16 %v3367, %v3349
    %v4376 = vpack.c.b16 %v3386, %v3368
    %v4377 = vpack.c.b16 %v3387, %v3369
    %v4378 = vpack.c.b16 %v3388, %v3370
    %v4379 = vpack.c.b16 %v3389, %v3371
    %v4380 = vpack.c.b16 %v3390, %v3372
    %v4381 = vpack.c.b16 %v3391, %v3373
    %v4382 = vpack.c.b16 %v3392, %v3374
    %v4383 = vpack.c.b16 %v3393, %v3375
    %v4384 = vpack.c.b16 %v3394, %v3376
    %v4385 = vpack.c.b16 %v3395, %v3377
    %v4386 = vpack.c.b16 %v3396, %v3378
    %v4387 = vpack.c.b16 %v3397, %v3379
    %v4388 = vpack.c.b16 %v3398, %v3380
    %v4389 = vpack.c.b16 %v3399, %v3381
    %v4390 = vpack.c.b16 %v3400, %v3382
    %v4391 = vpack.c.b16 %v3401, %v3383
    %v4392 = vpack.c.b16 %v3402, %v3384
    %v4393 = vpack.c.b16 %v3403, %v3385
    %v4394 = vpack.c.b16 %v3422, %v3404
    %v4395 = vpack.c.b16 %v3423, %v3405
    %v4396 = vpack.c.b16 %v3424, %v3406
    %v4397 = vpack.c.b16 %v3425, %v3407
    %v4398 = vpack.c.b16 %v3426, %v3408
    %v4399 = vpack.c.b16 %v3427, %v3409
    %v4400 = vpack.c.b16 %v3428, %v3410
    %v4401 = vpack.c.b16 %v3429, %v3411
    %v4402 = vpack.c.b16 %v3430, %v3412
    %v4403 = vpack.c.b16 %v3431, %v3413
    %v4404 = vpack.c.b16 %v3432, %v3414
    %v4405 = vpack.c.b16 %v3433, %v3415
    %v4406 = vpack.c.b16 %v3434, %v3416
    %v4407 = vpack.c.b16 %v3435, %v3417
    %v4408 = vpack.c.b16 %v3436, %v3418
    %v4409 = vpack.c.b16 %v3437, %v3419
    %v4410 = vpack.c.b16 %v3438, %v3420
    %v4411 = vpack.c.b16 %v3439, %v3421
    %v4412 = vpack.c.b16 %v3458, %v3440
    %v4413 = vpack.c.b16 %v3459, %v3441
    %v4414 = vpack.c.b16 %v3460, %v3442
    %v4415 = vpack.c.b16 %v3461, %v3443
    %v4416 = vpack.c.b16 %v3462, %v3444
    %v4417 = vpack.c.b16 %v3463, %v3445
    %v4418 = vpack.c.b16 %v3464, %v3446
    %v4419 = vpack.c.b16 %v3465, %v3447
    %v4420 = vpack.c.b16 %v3466, %v3448
    %v4421 = vpack.c.b16 %v3467, %v3449
    %v4422 = vpack.c.b16 %v3468, %v3450
    %v4423 = vpack.c.b16 %v3469, %v3451
    %v4424 = vpack.c.b16 %v3470, %v3452
    %v4425 = vpack.c.b16 %v3471, %v3453
    %v4426 = vpack.c.b16 %v3472, %v3454
    %v4427 = vpack.c.b16 %v3473, %v3455
    %v4428 = vpack.c.b16 %v3474, %v3456
    %v4429 = vpack.c.b16 %v3475, %v3457
    %v4430 = vpack.c.b16 %v3494, %v3476
    %v4431 = vpack.c.b16 %v3495, %v3477
    %v4432 = vpack.c.b16 %v3496, %v3478
    %v4433 = vpack.c.b16 %v3497, %v3479
    %v4434 = vpack.c.b16 %v3498, %v3480
    %v4435 = vpack.c.b16 %v3499, %v3481
    %v4436 = vpack.c.b16 %v3500, %v3482
    %v4437 = vpack.c.b16 %v3501, %v3483
    %v4438 = vpack.c.b16 %v3502, %v3484
    %v4439 = vpack.c.b16 %v3503, %v3485
    %v4440 = vpack.c.b16 %v3504, %v3486
    %v4441 = vpack.c.b16 %v3505, %v3487
    %v4442 = vpack.c.b16 %v3506, %v3488
    %v4443 = vpack.c.b16 %v3507, %v3489
    %v4444 = vpack.c.b16 %v3508, %v3490
    %v4445 = vpack.c.b16 %v3509, %v3491
    %v4446 = vpack.c.b16 %v3510, %v3492
    %v4447 = vpack.c.b16 %v3511, %v3493
    %v4448 = vpack.c.b16 %v3530, %v3512
    %v4449 = vpack.c.b16 %v3531, %v3513
    %v4450 = vpack.c.b16 %v3532, %v3514
    %v4451 = vpack.c.b16 %v3533, %v3515
    %v4452 = vpack.c.b16 %v3534, %v3516
    %v4453 = vpack.c.b16 %v3535, %v3517
    %v4454 = vpack.c.b16 %v3536, %v3518
    %v4455 = vpack.c.b16 %v3537, %v3519
    %v4456 = vpack.c.b16 %v3538, %v3520
    %v4457 = vpack.c.b16 %v3539, %v3521
    %v4458 = vpack.c.b16 %v3540, %v3522
    %v4459 = vpack.c.b16 %v3541, %v3523
    %v4460 = vpack.c.b16 %v3542, %v3524
    %v4461 = vpack.c.b16 %v3543, %v3525
    %v4462 = vpack.c.b16 %v3544, %v3526
    %v4463 = vpack.c.b16 %v3545, %v3527
    %v4464 = vpack.c.b16 %v3546, %v3528
    %v4465 = vpack.c.b16 %v3547, %v3529
    %v4466 = vpack.c.b16 %v3566, %v3548
    %v4467 = vpack.c.b16 %v3567, %v3549
    %v4468 = vpack.c.b16 %v3568, %v3550
    %v4469 = vpack.c.b16 %v3569, %v3551
    %v4470 = vpack.c.b16 %v3570, %v3552
    %v4471 = vpack.c.b16 %v3571, %v3553
    %v4472 = vpack.c.b16 %v3572, %v3554
    %v4473 = vpack.c.b16 %v3573, %v3555
    %v4474 = vpack.c.b16 %v3574, %v3556
    %v4475 = vpack.c.b16 %v3575, %v3557
    %v4476 = vpack.c.b16 %v3576, %v3558
    %v4477 = vpack.c.b16 %v3577, %v3559
    %v4478 = vpack.c.b16 %v3578, %v3560
    %v4479 = vpack.c.b16 %v3579, %v3561
    %v4480 = vpack.c.b16 %v3580, %v3562
    %v4481 = vpack.c.b16 %v3581, %v3563
    %v4482 = vpack.c.b16 %v3582, %v3564
    %v4483 = vpack.c.b16 %v3583, %v3565
    %v4484 = vpack.c.b16 %v3602, %v3584
    %v4485 = vpack.c.b16 %v3603, %v3585
    %v4486 = vpack.c.b16 %v3604, %v3586
    %v4487 = vpack.c.b16 %v3605, %v3587
    %v4488 = vpack.c.b16 %v3606, %v3588
    %v4489 = vpack.c.b16 %v3607, %v3589
    %v4490 = vpack.c.b16 %v3608, %v3590
    %v4491 = vpack.c.b16 %v3609, %v3591
    %v4492 = vpack.c.b16 %v3610, %v3592
    %v4493 = vpack.c.b16 %v3611, %v3593
    %v4494 = vpack.c.b16 %v3612, %v3594
    %v4495 = vpack.c.b16 %v3613, %v3595
    %v4496 = vpack.c.b16 %v3614, %v3596
    %v4497 = vpack.c.b16 %v3615, %v3597
    %v4498 = vpack.c.b16 %v3616, %v3598
    %v4499 = vpack.c.b16 %v3617, %v3599
    %v4500 = vpack.c.b16 %v3618, %v3600
    %v4501 = vpack.c.b16 %v3619, %v3601
    %v4502 = vpack.c.b16 %v3638, %v3620
    %v4503 = vpack.c.b16 %v3639, %v3621
    %v4504 = vpack.c.b16 %v3640, %v3622
    %v4505 = vpack.c.b16 %v3641, %v3623
    %v4506 = vpack.c.b16 %v3642, %v3624
    %v4507 = vpack.c.b16 %v3643, %v3625
    %v4508 = vpack.c.b16 %v3644, %v3626
    %v4509 = vpack.c.b16 %v3645, %v3627
    %v4510 = vpack.c.b16 %v3646, %v3628
    %v4511 = vpack.c.b16 %v3647, %v3629
    %v4512 = vpack.c.b16 %v3648, %v3630
    %v4513 = vpack.c.b16 %v3649, %v3631
    %v4514 = vpack.c.b16 %v3650, %v3632
    %v4515 = vpack.c.b16 %v3651, %v3633
    %v4516 = vpack.c.b16 %v3652, %v3634
    %v4517 = vpack.c.b16 %v3653, %v3635
    %v4518 = vpack.c.b16 %v3654, %v3636
    %v4519 = vpack.c.b16 %v3655, %v3637
    %5384 = vmatprep.subr.bf16.mxu0 %v3657
    %5385 = vmatpush1.bf16.msra.mxu0 %v3656
    %5386 = vmatprep.subr.bf16.mxu0 %v3675
    %5387 = vmatpush1.bf16.msra.mxu0 %v3674
    %5388 = vmatprep.subr.bf16.mxu0 %v3693
    %5389 = vmatpush1.bf16.msra.mxu0 %v3692
    %5390 = vmatprep.subr.bf16.mxu0 %v3711
    %5391 = vmatpush1.bf16.msra.mxu0 %v3710
    %5392 = vmatprep.subr.bf16.mxu0 %v3729
    %5393 = vmatpush1.bf16.msra.mxu0 %v3728
    %5394 = vmatprep.subr.bf16.mxu0 %v3747
    %5395 = vmatpush1.bf16.msra.mxu0 %v3746
    %5396 = vmatprep.subr.bf16.mxu0 %v3765
    %5397 = vmatpush1.bf16.msra.mxu0 %v3764
    %5398 = vmatprep.subr.bf16.mxu0 %v3783
    %5399 = vmatpush1.bf16.msra.mxu0 %v3782
    %5400 = vmatprep.subr.bf16.mxu0 %v3801
    %5401 = vmatpush1.bf16.msra.mxu0 %v3800
    %5402 = vmatprep.subr.bf16.mxu0 %v3819
    %5403 = vmatpush1.bf16.msra.mxu0 %v3818
    %5404 = vmatprep.subr.bf16.mxu0 %v3837
    %5405 = vmatpush1.bf16.msra.mxu0 %v3836
    %5406 = vmatprep.subr.bf16.mxu0 %v3855
    %5407 = vmatpush1.bf16.msra.mxu0 %v3854
    %5408 = vmatprep.subr.bf16.mxu0 %v3873
    %5409 = vmatpush1.bf16.msra.mxu0 %v3872
    %5410 = vmatprep.subr.bf16.mxu0 %v3891
    %5411 = vmatpush1.bf16.msra.mxu0 %v3890
    %5412 = vmatprep.subr.bf16.mxu0 %v3909
    %5413 = vmatpush1.bf16.msra.mxu0 %v3908
    %5414 = vmatprep.subr.bf16.mxu0 %v3927
    %5415 = vmatpush1.bf16.msra.mxu0 %v3926
    %5416 = vmatprep.mubr.bf16.mxu0 %v1053
    %5417 = vmatmul.mubr.bf16.gmra.mrb[0].mxu0 %v1052
    %v5418 = vpop.f32.mrb[0].mxu0
    %v5419 = vadd.f32 %v956, %v5418
    %v5420 = vpop.f32.mrb[0].mxu0
    %v5421 = vadd.f32 %v960, %v5420
    %v5422 = vpop.f32.mrb[0].mxu0
    %v5423 = vpop.f32.mrb[0].mxu0
    %5424 = vdwg.mxu0
    %5425 = vmatprep.subr.bf16.mxu0 %v3945
    %5426 = vmatpush1.bf16.msra.mxu0 %v3944
    %5427 = vmatprep.subr.bf16.mxu0 %v3963
    %5428 = vmatpush1.bf16.msra.mxu0 %v3962
    %5429 = vmatprep.subr.bf16.mxu0 %v3981
    %5430 = vmatpush1.bf16.msra.mxu0 %v3980
    %5431 = vmatprep.subr.bf16.mxu0 %v3999
    %5432 = vmatpush1.bf16.msra.mxu0 %v3998
    %5433 = vmatprep.subr.bf16.mxu0 %v4017
    %5434 = vmatpush1.bf16.msra.mxu0 %v4016
    %5435 = vmatprep.subr.bf16.mxu0 %v4035
    %5436 = vmatpush1.bf16.msra.mxu0 %v4034
    %5437 = vmatprep.subr.bf16.mxu0 %v4053
    %5438 = vmatpush1.bf16.msra.mxu0 %v4052
    %5439 = vmatprep.subr.bf16.mxu0 %v4071
    %5440 = vmatpush1.bf16.msra.mxu0 %v4070
    %5441 = vmatprep.subr.bf16.mxu0 %v4089
    %5442 = vmatpush1.bf16.msra.mxu0 %v4088
    %5443 = vmatprep.subr.bf16.mxu0 %v4107
    %5444 = vmatpush1.bf16.msra.mxu0 %v4106
    %5445 = vmatprep.subr.bf16.mxu0 %v4125
    %5446 = vmatpush1.bf16.msra.mxu0 %v4124
    %5447 = vmatprep.subr.bf16.mxu0 %v4143
    %5448 = vmatpush1.bf16.msra.mxu0 %v4142
    %5449 = vmatprep.subr.bf16.mxu0 %v4161
    %5450 = vmatpush1.bf16.msra.mxu0 %v4160
    %5451 = vmatprep.subr.bf16.mxu0 %v4179
    %5452 = vmatpush1.bf16.msra.mxu0 %v4178
    %5453 = vmatprep.subr.bf16.mxu0 %v4197
    %5454 = vmatpush1.bf16.msra.mxu0 %v4196
    %5455 = vmatprep.subr.bf16.mxu0 %v4215
    %5456 = vmatpush1.bf16.msra.mxu0 %v4214
    %5457 = vmatprep.mubr.bf16.mxu0 %v1055
    %5458 = vmatmul.mubr.bf16.gmra.mrb[0].mxu0 %v1054
    %v5459 = vpop.f32.mrb[0].mxu0
    %v5460 = vadd.f32 %v5419, %v5459
    %v5461 = vpop.f32.mrb[0].mxu0
    %v5462 = vadd.f32 %v5421, %v5461
    %v5463 = vpop.f32.mrb[0].mxu0
    %v5464 = vpop.f32.mrb[0].mxu0
    %5465 = vdwg.mxu0
    %5466 = vmatprep.subr.bf16.mxu0 %v4233
    %5467 = vmatpush1.bf16.msra.mxu0 %v4232
    %5468 = vmatprep.subr.bf16.mxu0 %v4251
    %5469 = vmatpush1.bf16.msra.mxu0 %v4250
    %5470 = vmatprep.subr.bf16.mxu0 %v4269
    %5471 = vmatpush1.bf16.msra.mxu0 %v4268
    %5472 = vmatprep.subr.bf16.mxu0 %v4287
    %5473 = vmatpush1.bf16.msra.mxu0 %v4286
    %5474 = vmatprep.subr.bf16.mxu0 %v4305
    %5475 = vmatpush1.bf16.msra.mxu0 %v4304
    %5476 = vmatprep.subr.bf16.mxu0 %v4323
    %5477 = vmatpush1.bf16.msra.mxu0 %v4322
    %5478 = vmatprep.subr.bf16.mxu0 %v4341
    %5479 = vmatpush1.bf16.msra.mxu0 %v4340
    %5480 = vmatprep.subr.bf16.mxu0 %v4359
    %5481 = vmatpush1.bf16.msra.mxu0 %v4358
    %5482 = vmatprep.subr.bf16.mxu0 %v4377
    %5483 = vmatpush1.bf16.msra.mxu0 %v4376
    %5484 = vmatprep.subr.bf16.mxu0 %v4395
    %5485 = vmatpush1.bf16.msra.mxu0 %v4394
    %5486 = vmatprep.subr.bf16.mxu0 %v4413
    %5487 = vmatpush1.bf16.msra.mxu0 %v4412
    %5488 = vmatprep.subr.bf16.mxu0 %v4431
    %5489 = vmatpush1.bf16.msra.mxu0 %v4430
    %5490 = vmatprep.subr.bf16.mxu0 %v4449
    %5491 = vmatpush1.bf16.msra.mxu0 %v4448
    %5492 = vmatprep.subr.bf16.mxu0 %v4467
    %5493 = vmatpush1.bf16.msra.mxu0 %v4466
    %5494 = vmatprep.subr.bf16.mxu0 %v4485
    %5495 = vmatpush1.bf16.msra.mxu0 %v4484
    %5496 = vmatprep.subr.bf16.mxu0 %v4503
    %5497 = vmatpush1.bf16.msra.mxu0 %v4502
    %5498 = vmatprep.mubr.bf16.mxu0 %v1057
    %5499 = vmatmul.mubr.bf16.gmra.mrb[0].mxu0 %v1056
    %v5500 = vpop.f32.mrb[0].mxu0
    %v5501 = vadd.f32 %v5460, %v5500
    %v5502 = vpop.f32.mrb[0].mxu0
    %v5503 = vadd.f32 %v5462, %v5502
    %v5504 = vpop.f32.mrb[0].mxu0
    %v5505 = vpop.f32.mrb[0].mxu0
    %5506 = vdwg.mxu0
    %5507 = vmatprep.subr.bf16.mxu0 %v3659
    %5508 = vmatpush1.bf16.msra.mxu0 %v3658
    %5509 = vmatprep.subr.bf16.mxu0 %v3677
    %5510 = vmatpush1.bf16.msra.mxu0 %v3676
    %5511 = vmatprep.subr.bf16.mxu0 %v3695
    %5512 = vmatpush1.bf16.msra.mxu0 %v3694
    %5513 = vmatprep.subr.bf16.mxu0 %v3713
    %5514 = vmatpush1.bf16.msra.mxu0 %v3712
    %5515 = vmatprep.subr.bf16.mxu0 %v3731
    %5516 = vmatpush1.bf16.msra.mxu0 %v3730
    %5517 = vmatprep.subr.bf16.mxu0 %v3749
    %5518 = vmatpush1.bf16.msra.mxu0 %v3748
    %5519 = vmatprep.subr.bf16.mxu0 %v3767
    %5520 = vmatpush1.bf16.msra.mxu0 %v3766
    %5521 = vmatprep.subr.bf16.mxu0 %v3785
    %5522 = vmatpush1.bf16.msra.mxu0 %v3784
    %5523 = vmatprep.subr.bf16.mxu0 %v3803
    %5524 = vmatpush1.bf16.msra.mxu0 %v3802
    %5525 = vmatprep.subr.bf16.mxu0 %v3821
    %5526 = vmatpush1.bf16.msra.mxu0 %v3820
    %5527 = vmatprep.subr.bf16.mxu0 %v3839
    %5528 = vmatpush1.bf16.msra.mxu0 %v3838
    %5529 = vmatprep.subr.bf16.mxu0 %v3857
    %5530 = vmatpush1.bf16.msra.mxu0 %v3856
    %5531 = vmatprep.subr.bf16.mxu0 %v3875
    %5532 = vmatpush1.bf16.msra.mxu0 %v3874
    %5533 = vmatprep.subr.bf16.mxu0 %v3893
    %5534 = vmatpush1.bf16.msra.mxu0 %v3892
    %5535 = vmatprep.subr.bf16.mxu0 %v3911
    %5536 = vmatpush1.bf16.msra.mxu0 %v3910
    %5537 = vmatprep.subr.bf16.mxu0 %v3929
    %5538 = vmatpush1.bf16.msra.mxu0 %v3928
    %5539 = vmatprep.mubr.bf16.mxu0 %v1053
    %5540 = vmatmul.mubr.bf16.gmra.mrb[0].mxu0 %v1052
    %v5541 = vpop.f32.mrb[0].mxu0
    %v5542 = vadd.f32 %v964, %v5541
    %v5543 = vpop.f32.mrb[0].mxu0
    %v5544 = vadd.f32 %v968, %v5543
    %v5545 = vpop.f32.mrb[0].mxu0
    %v5546 = vpop.f32.mrb[0].mxu0
    %5547 = vdwg.mxu0
    %5548 = vmatprep.subr.bf16.mxu0 %v3947
    %5549 = vmatpush1.bf16.msra.mxu0 %v3946
    %5550 = vmatprep.subr.bf16.mxu0 %v3965
    %5551 = vmatpush1.bf16.msra.mxu0 %v3964
    %5552 = vmatprep.subr.bf16.mxu0 %v3983
    %5553 = vmatpush1.bf16.msra.mxu0 %v3982
    %5554 = vmatprep.subr.bf16.mxu0 %v4001
    %5555 = vmatpush1.bf16.msra.mxu0 %v4000
    %5556 = vmatprep.subr.bf16.mxu0 %v4019
    %5557 = vmatpush1.bf16.msra.mxu0 %v4018
    %5558 = vmatprep.subr.bf16.mxu0 %v4037
    %5559 = vmatpush1.bf16.msra.mxu0 %v4036
    %5560 = vmatprep.subr.bf16.mxu0 %v4055
    %5561 = vmatpush1.bf16.msra.mxu0 %v4054
    %5562 = vmatprep.subr.bf16.mxu0 %v4073
    %5563 = vmatpush1.bf16.msra.mxu0 %v4072
    %5564 = vmatprep.subr.bf16.mxu0 %v4091
    %5565 = vmatpush1.bf16.msra.mxu0 %v4090
    %5566 = vmatprep.subr.bf16.mxu0 %v4109
    %5567 = vmatpush1.bf16.msra.mxu0 %v4108
    %5568 = vmatprep.subr.bf16.mxu0 %v4127
    %5569 = vmatpush1.bf16.msra.mxu0 %v4126
    %5570 = vmatprep.subr.bf16.mxu0 %v4145
    %5571 = vmatpush1.bf16.msra.mxu0 %v4144
    %5572 = vmatprep.subr.bf16.mxu0 %v4163
    %5573 = vmatpush1.bf16.msra.mxu0 %v4162
    %5574 = vmatprep.subr.bf16.mxu0 %v4181
    %5575 = vmatpush1.bf16.msra.mxu0 %v4180
    %5576 = vmatprep.subr.bf16.mxu0 %v4199
    %5577 = vmatpush1.bf16.msra.mxu0 %v4198
    %5578 = vmatprep.subr.bf16.mxu0 %v4217
    %5579 = vmatpush1.bf16.msra.mxu0 %v4216
    %5580 = vmatprep.mubr.bf16.mxu0 %v1055
    %5581 = vmatmul.mubr.bf16.gmra.mrb[0].mxu0 %v1054
    %v5582 = vpop.f32.mrb[0].mxu0
    %v5583 = vadd.f32 %v5542, %v5582
    %v5584 = vpop.f32.mrb[0].mxu0
    %v5585 = vadd.f32 %v5544, %v5584
    %v5586 = vpop.f32.mrb[0].mxu0
    %v5587 = vpop.f32.mrb[0].mxu0
    %5588 = vdwg.mxu0
    %5589 = vmatprep.subr.bf16.mxu0 %v4235
    %5590 = vmatpush1.bf16.msra.mxu0 %v4234
    %5591 = vmatprep.subr.bf16.mxu0 %v4253
    %5592 = vmatpush1.bf16.msra.mxu0 %v4252
    %5593 = vmatprep.subr.bf16.mxu0 %v4271
    %5594 = vmatpush1.bf16.msra.mxu0 %v4270
    %5595 = vmatprep.subr.bf16.mxu0 %v4289
    %5596 = vmatpush1.bf16.msra.mxu0 %v4288
    %5597 = vmatprep.subr.bf16.mxu0 %v4307
    %5598 = vmatpush1.bf16.msra.mxu0 %v4306
    %5599 = vmatprep.subr.bf16.mxu0 %v4325
    %5600 = vmatpush1.bf16.msra.mxu0 %v4324
    %5601 = vmatprep.subr.bf16.mxu0 %v4343
    %5602 = vmatpush1.bf16.msra.mxu0 %v4342
    %5603 = vmatprep.subr.bf16.mxu0 %v4361
    %5604 = vmatpush1.bf16.msra.mxu0 %v4360
    %5605 = vmatprep.subr.bf16.mxu0 %v4379
    %5606 = vmatpush1.bf16.msra.mxu0 %v4378
    %5607 = vmatprep.subr.bf16.mxu0 %v4397
    %5608 = vmatpush1.bf16.msra.mxu0 %v4396
    %5609 = vmatprep.subr.bf16.mxu0 %v4415
    %5610 = vmatpush1.bf16.msra.mxu0 %v4414
    %5611 = vmatprep.subr.bf16.mxu0 %v4433
    %5612 = vmatpush1.bf16.msra.mxu0 %v4432
    %5613 = vmatprep.subr.bf16.mxu0 %v4451
    %5614 = vmatpush1.bf16.msra.mxu0 %v4450
    %5615 = vmatprep.subr.bf16.mxu0 %v4469
    %5616 = vmatpush1.bf16.msra.mxu0 %v4468
    %5617 = vmatprep.subr.bf16.mxu0 %v4487
    %5618 = vmatpush1.bf16.msra.mxu0 %v4486
    %5619 = vmatprep.subr.bf16.mxu0 %v4505
    %5620 = vmatpush1.bf16.msra.mxu0 %v4504
    %5621 = vmatprep.mubr.bf16.mxu0 %v1057
    %5622 = vmatmul.mubr.bf16.gmra.mrb[0].mxu0 %v1056
    %v5623 = vpop.f32.mrb[0].mxu0
    %v5624 = vadd.f32 %v5583, %v5623
    %v5625 = vpop.f32.mrb[0].mxu0
    %v5626 = vadd.f32 %v5585, %v5625
    %v5627 = vpop.f32.mrb[0].mxu0
    %v5628 = vpop.f32.mrb[0].mxu0
    %5629 = vdwg.mxu0
    %5630 = vmatprep.subr.bf16.mxu0 %v3661
    %5631 = vmatpush1.bf16.msra.mxu0 %v3660
    %5632 = vmatprep.subr.bf16.mxu0 %v3679
    %5633 = vmatpush1.bf16.msra.mxu0 %v3678
    %5634 = vmatprep.subr.bf16.mxu0 %v3697
    %5635 = vmatpush1.bf16.msra.mxu0 %v3696
    %5636 = vmatprep.subr.bf16.mxu0 %v3715
    %5637 = vmatpush1.bf16.msra.mxu0 %v3714
    %5638 = vmatprep.subr.bf16.mxu0 %v3733
    %5639 = vmatpush1.bf16.msra.mxu0 %v3732
    %5640 = vmatprep.subr.bf16.mxu0 %v3751
    %5641 = vmatpush1.bf16.msra.mxu0 %v3750
    %5642 = vmatprep.subr.bf16.mxu0 %v3769
    %5643 = vmatpush1.bf16.msra.mxu0 %v3768
    %5644 = vmatprep.subr.bf16.mxu0 %v3787
    %5645 = vmatpush1.bf16.msra.mxu0 %v3786
    %5646 = vmatprep.subr.bf16.mxu0 %v3805
    %5647 = vmatpush1.bf16.msra.mxu0 %v3804
    %5648 = vmatprep.subr.bf16.mxu0 %v3823
    %5649 = vmatpush1.bf16.msra.mxu0 %v3822
    %5650 = vmatprep.subr.bf16.mxu0 %v3841
    %5651 = vmatpush1.bf16.msra.mxu0 %v3840
    %5652 = vmatprep.subr.bf16.mxu0 %v3859
    %5653 = vmatpush1.bf16.msra.mxu0 %v3858
    %5654 = vmatprep.subr.bf16.mxu0 %v3877
    %5655 = vmatpush1.bf16.msra.mxu0 %v3876
    %5656 = vmatprep.subr.bf16.mxu0 %v3895
    %5657 = vmatpush1.bf16.msra.mxu0 %v3894
    %5658 = vmatprep.subr.bf16.mxu0 %v3913
    %5659 = vmatpush1.bf16.msra.mxu0 %v3912
    %5660 = vmatprep.subr.bf16.mxu0 %v3931
    %5661 = vmatpush1.bf16.msra.mxu0 %v3930
    %5662 = vmatprep.mubr.bf16.mxu0 %v1053
    %5663 = vmatmul.mubr.bf16.gmra.mrb[0].mxu0 %v1052
    %v5664 = vpop.f32.mrb[0].mxu0
    %v5665 = vadd.f32 %v972, %v5664
    %v5666 = vpop.f32.mrb[0].mxu0
    %v5667 = vadd.f32 %v976, %v5666
    %v5668 = vpop.f32.mrb[0].mxu0
    %v5669 = vpop.f32.mrb[0].mxu0
    %5670 = vdwg.mxu0
    %5671 = vmatprep.subr.bf16.mxu0 %v3949
    %5672 = vmatpush1.bf16.msra.mxu0 %v3948
    %5673 = vmatprep.subr.bf16.mxu0 %v3967
    %5674 = vmatpush1.bf16.msra.mxu0 %v3966
    %5675 = vmatprep.subr.bf16.mxu0 %v3985
    %5676 = vmatpush1.bf16.msra.mxu0 %v3984
    %5677 = vmatprep.subr.bf16.mxu0 %v4003
    %5678 = vmatpush1.bf16.msra.mxu0 %v4002
    %5679 = vmatprep.subr.bf16.mxu0 %v4021
    %5680 = vmatpush1.bf16.msra.mxu0 %v4020
    %5681 = vmatprep.subr.bf16.mxu0 %v4039
    %5682 = vmatpush1.bf16.msra.mxu0 %v4038
    %5683 = vmatprep.subr.bf16.mxu0 %v4057
    %5684 = vmatpush1.bf16.msra.mxu0 %v4056
    %5685 = vmatprep.subr.bf16.mxu0 %v4075
    %5686 = vmatpush1.bf16.msra.mxu0 %v4074
    %5687 = vmatprep.subr.bf16.mxu0 %v4093
    %5688 = vmatpush1.bf16.msra.mxu0 %v4092
    %5689 = vmatprep.subr.bf16.mxu0 %v4111
    %5690 = vmatpush1.bf16.msra.mxu0 %v4110
    %5691 = vmatprep.subr.bf16.mxu0 %v4129
    %5692 = vmatpush1.bf16.msra.mxu0 %v4128
    %5693 = vmatprep.subr.bf16.mxu0 %v4147
    %5694 = vmatpush1.bf16.msra.mxu0 %v4146
    %5695 = vmatprep.subr.bf16.mxu0 %v4165
    %5696 = vmatpush1.bf16.msra.mxu0 %v4164
    %5697 = vmatprep.subr.bf16.mxu0 %v4183
    %5698 = vmatpush1.bf16.msra.mxu0 %v4182
    %5699 = vmatprep.subr.bf16.mxu0 %v4201
    %5700 = vmatpush1.bf16.msra.mxu0 %v4200
    %5701 = vmatprep.subr.bf16.mxu0 %v4219
    %5702 = vmatpush1.bf16.msra.mxu0 %v4218
    %5703 = vmatprep.mubr.bf16.mxu0 %v1055
    %5704 = vmatmul.mubr.bf16.gmra.mrb[0].mxu0 %v1054
    %v5705 = vpop.f32.mrb[0].mxu0
    %v5706 = vadd.f32 %v5665, %v5705
    %v5707 = vpop.f32.mrb[0].mxu0
    %v5708 = vadd.f32 %v5667, %v5707
    %v5709 = vpop.f32.mrb[0].mxu0
    %v5710 = vpop.f32.mrb[0].mxu0
    %5711 = vdwg.mxu0
    %5712 = vmatprep.subr.bf16.mxu0 %v4237
    %5713 = vmatpush1.bf16.msra.mxu0 %v4236
    %5714 = vmatprep.subr.bf16.mxu0 %v4255
    %5715 = vmatpush1.bf16.msra.mxu0 %v4254
    %5716 = vmatprep.subr.bf16.mxu0 %v4273
    %5717 = vmatpush1.bf16.msra.mxu0 %v4272
    %5718 = vmatprep.subr.bf16.mxu0 %v4291
    %5719 = vmatpush1.bf16.msra.mxu0 %v4290
    %5720 = vmatprep.subr.bf16.mxu0 %v4309
    %5721 = vmatpush1.bf16.msra.mxu0 %v4308
    %5722 = vmatprep.subr.bf16.mxu0 %v4327
    %5723 = vmatpush1.bf16.msra.mxu0 %v4326
    %5724 = vmatprep.subr.bf16.mxu0 %v4345
    %5725 = vmatpush1.bf16.msra.mxu0 %v4344
    %5726 = vmatprep.subr.bf16.mxu0 %v4363
    %5727 = vmatpush1.bf16.msra.mxu0 %v4362
    %5728 = vmatprep.subr.bf16.mxu0 %v4381
    %5729 = vmatpush1.bf16.msra.mxu0 %v4380
    %5730 = vmatprep.subr.bf16.mxu0 %v4399
    %5731 = vmatpush1.bf16.msra.mxu0 %v4398
    %5732 = vmatprep.subr.bf16.mxu0 %v4417
    %5733 = vmatpush1.bf16.msra.mxu0 %v4416
    %5734 = vmatprep.subr.bf16.mxu0 %v4435
    %5735 = vmatpush1.bf16.msra.mxu0 %v4434
    %5736 = vmatprep.subr.bf16.mxu0 %v4453
    %5737 = vmatpush1.bf16.msra.mxu0 %v4452
    %5738 = vmatprep.subr.bf16.mxu0 %v4471
    %5739 = vmatpush1.bf16.msra.mxu0 %v4470
    %5740 = vmatprep.subr.bf16.mxu0 %v4489
    %5741 = vmatpush1.bf16.msra.mxu0 %v4488
    %5742 = vmatprep.subr.bf16.mxu0 %v4507
    %5743 = vmatpush1.bf16.msra.mxu0 %v4506
    %5744 = vmatprep.mubr.bf16.mxu0 %v1057
    %5745 = vmatmul.mubr.bf16.gmra.mrb[0].mxu0 %v1056
    %v5746 = vpop.f32.mrb[0].mxu0
    %v5747 = vadd.f32 %v5706, %v5746
    %v5748 = vpop.f32.mrb[0].mxu0
    %v5749 = vadd.f32 %v5708, %v5748
    %v5750 = vpop.f32.mrb[0].mxu0
    %v5751 = vpop.f32.mrb[0].mxu0
    %5752 = vdwg.mxu0
    %5753 = vmatprep.subr.bf16.mxu0 %v3663
    %5754 = vmatpush1.bf16.msra.mxu0 %v3662
    %5755 = vmatprep.subr.bf16.mxu0 %v3681
    %5756 = vmatpush1.bf16.msra.mxu0 %v3680
    %5757 = vmatprep.subr.bf16.mxu0 %v3699
    %5758 = vmatpush1.bf16.msra.mxu0 %v3698
    %5759 = vmatprep.subr.bf16.mxu0 %v3717
    %5760 = vmatpush1.bf16.msra.mxu0 %v3716
    %5761 = vmatprep.subr.bf16.mxu0 %v3735
    %5762 = vmatpush1.bf16.msra.mxu0 %v3734
    %5763 = vmatprep.subr.bf16.mxu0 %v3753
    %5764 = vmatpush1.bf16.msra.mxu0 %v3752
    %5765 = vmatprep.subr.bf16.mxu0 %v3771
    %5766 = vmatpush1.bf16.msra.mxu0 %v3770
    %5767 = vmatprep.subr.bf16.mxu0 %v3789
    %5768 = vmatpush1.bf16.msra.mxu0 %v3788
    %5769 = vmatprep.subr.bf16.mxu0 %v3807
    %5770 = vmatpush1.bf16.msra.mxu0 %v3806
    %5771 = vmatprep.subr.bf16.mxu0 %v3825
    %5772 = vmatpush1.bf16.msra.mxu0 %v3824
    %5773 = vmatprep.subr.bf16.mxu0 %v3843
    %5774 = vmatpush1.bf16.msra.mxu0 %v3842
    %5775 = vmatprep.subr.bf16.mxu0 %v3861
    %5776 = vmatpush1.bf16.msra.mxu0 %v3860
    %5777 = vmatprep.subr.bf16.mxu0 %v3879
    %5778 = vmatpush1.bf16.msra.mxu0 %v3878
    %5779 = vmatprep.subr.bf16.mxu0 %v3897
    %5780 = vmatpush1.bf16.msra.mxu0 %v3896
    %5781 = vmatprep.subr.bf16.mxu0 %v3915
    %5782 = vmatpush1.bf16.msra.mxu0 %v3914
    %5783 = vmatprep.subr.bf16.mxu0 %v3933
    %5784 = vmatpush1.bf16.msra.mxu0 %v3932
    %5785 = vmatprep.mubr.bf16.mxu0 %v1053
    %5786 = vmatmul.mubr.bf16.gmra.mrb[0].mxu0 %v1052
    %v5787 = vpop.f32.mrb[0].mxu0
    %v5788 = vadd.f32 %v980, %v5787
    %v5789 = vpop.f32.mrb[0].mxu0
    %v5790 = vadd.f32 %v984, %v5789
    %v5791 = vpop.f32.mrb[0].mxu0
    %v5792 = vpop.f32.mrb[0].mxu0
    %5793 = vdwg.mxu0
    %5794 = vmatprep.subr.bf16.mxu0 %v3951
    %5795 = vmatpush1.bf16.msra.mxu0 %v3950
    %5796 = vmatprep.subr.bf16.mxu0 %v3969
    %5797 = vmatpush1.bf16.msra.mxu0 %v3968
    %5798 = vmatprep.subr.bf16.mxu0 %v3987
    %5799 = vmatpush1.bf16.msra.mxu0 %v3986
    %5800 = vmatprep.subr.bf16.mxu0 %v4005
    %5801 = vmatpush1.bf16.msra.mxu0 %v4004
    %5802 = vmatprep.subr.bf16.mxu0 %v4023
    %5803 = vmatpush1.bf16.msra.mxu0 %v4022
    %5804 = vmatprep.subr.bf16.mxu0 %v4041
    %5805 = vmatpush1.bf16.msra.mxu0 %v4040
    %5806 = vmatprep.subr.bf16.mxu0 %v4059
    %5807 = vmatpush1.bf16.msra.mxu0 %v4058
    %5808 = vmatprep.subr.bf16.mxu0 %v4077
    %5809 = vmatpush1.bf16.msra.mxu0 %v4076
    %5810 = vmatprep.subr.bf16.mxu0 %v4095
    %5811 = vmatpush1.bf16.msra.mxu0 %v4094
    %5812 = vmatprep.subr.bf16.mxu0 %v4113
    %5813 = vmatpush1.bf16.msra.mxu0 %v4112
    %5814 = vmatprep.subr.bf16.mxu0 %v4131
    %5815 = vmatpush1.bf16.msra.mxu0 %v4130
    %5816 = vmatprep.subr.bf16.mxu0 %v4149
    %5817 = vmatpush1.bf16.msra.mxu0 %v4148
    %5818 = vmatprep.subr.bf16.mxu0 %v4167
    %5819 = vmatpush1.bf16.msra.mxu0 %v4166
    %5820 = vmatprep.subr.bf16.mxu0 %v4185
    %5821 = vmatpush1.bf16.msra.mxu0 %v4184
    %5822 = vmatprep.subr.bf16.mxu0 %v4203
    %5823 = vmatpush1.bf16.msra.mxu0 %v4202
    %5824 = vmatprep.subr.bf16.mxu0 %v4221
    %5825 = vmatpush1.bf16.msra.mxu0 %v4220
    %5826 = vmatprep.mubr.bf16.mxu0 %v1055
    %5827 = vmatmul.mubr.bf16.gmra.mrb[0].mxu0 %v1054
    %v5828 = vpop.f32.mrb[0].mxu0
    %v5829 = vadd.f32 %v5788, %v5828
    %v5830 = vpop.f32.mrb[0].mxu0
    %v5831 = vadd.f32 %v5790, %v5830
    %v5832 = vpop.f32.mrb[0].mxu0
    %v5833 = vpop.f32.mrb[0].mxu0
    %5834 = vdwg.mxu0
    %5835 = vmatprep.subr.bf16.mxu0 %v4239
    %5836 = vmatpush1.bf16.msra.mxu0 %v4238
    %5837 = vmatprep.subr.bf16.mxu0 %v4257
    %5838 = vmatpush1.bf16.msra.mxu0 %v4256
    %5839 = vmatprep.subr.bf16.mxu0 %v4275
    %5840 = vmatpush1.bf16.msra.mxu0 %v4274
    %5841 = vmatprep.subr.bf16.mxu0 %v4293
    %5842 = vmatpush1.bf16.msra.mxu0 %v4292
    %5843 = vmatprep.subr.bf16.mxu0 %v4311
    %5844 = vmatpush1.bf16.msra.mxu0 %v4310
    %5845 = vmatprep.subr.bf16.mxu0 %v4329
    %5846 = vmatpush1.bf16.msra.mxu0 %v4328
    %5847 = vmatprep.subr.bf16.mxu0 %v4347
    %5848 = vmatpush1.bf16.msra.mxu0 %v4346
    %5849 = vmatprep.subr.bf16.mxu0 %v4365
    %5850 = vmatpush1.bf16.msra.mxu0 %v4364
    %5851 = vmatprep.subr.bf16.mxu0 %v4383
    %5852 = vmatpush1.bf16.msra.mxu0 %v4382
    %5853 = vmatprep.subr.bf16.mxu0 %v4401
    %5854 = vmatpush1.bf16.msra.mxu0 %v4400
    %5855 = vmatprep.subr.bf16.mxu0 %v4419
    %5856 = vmatpush1.bf16.msra.mxu0 %v4418
    %5857 = vmatprep.subr.bf16.mxu0 %v4437
    %5858 = vmatpush1.bf16.msra.mxu0 %v4436
    %5859 = vmatprep.subr.bf16.mxu0 %v4455
    %5860 = vmatpush1.bf16.msra.mxu0 %v4454
    %5861 = vmatprep.subr.bf16.mxu0 %v4473
    %5862 = vmatpush1.bf16.msra.mxu0 %v4472
    %5863 = vmatprep.subr.bf16.mxu0 %v4491
    %5864 = vmatpush1.bf16.msra.mxu0 %v4490
    %5865 = vmatprep.subr.bf16.mxu0 %v4509
    %5866 = vmatpush1.bf16.msra.mxu0 %v4508
    %5867 = vmatprep.mubr.bf16.mxu0 %v1057
    %5868 = vmatmul.mubr.bf16.gmra.mrb[0].mxu0 %v1056
    %v5869 = vpop.f32.mrb[0].mxu0
    %v5870 = vadd.f32 %v5829, %v5869
    %v5871 = vpop.f32.mrb[0].mxu0
    %v5872 = vadd.f32 %v5831, %v5871
    %v5873 = vpop.f32.mrb[0].mxu0
    %v5874 = vpop.f32.mrb[0].mxu0
    %5875 = vdwg.mxu0
    %5876 = vmatprep.subr.bf16.mxu0 %v3665
    %5877 = vmatpush1.bf16.msra.mxu0 %v3664
    %5878 = vmatprep.subr.bf16.mxu0 %v3683
    %5879 = vmatpush1.bf16.msra.mxu0 %v3682
    %5880 = vmatprep.subr.bf16.mxu0 %v3701
    %5881 = vmatpush1.bf16.msra.mxu0 %v3700
    %5882 = vmatprep.subr.bf16.mxu0 %v3719
    %5883 = vmatpush1.bf16.msra.mxu0 %v3718
    %5884 = vmatprep.subr.bf16.mxu0 %v3737
    %5885 = vmatpush1.bf16.msra.mxu0 %v3736
    %5886 = vmatprep.subr.bf16.mxu0 %v3755
    %5887 = vmatpush1.bf16.msra.mxu0 %v3754
    %5888 = vmatprep.subr.bf16.mxu0 %v3773
    %5889 = vmatpush1.bf16.msra.mxu0 %v3772
    %5890 = vmatprep.subr.bf16.mxu0 %v3791
    %5891 = vmatpush1.bf16.msra.mxu0 %v3790
    %5892 = vmatprep.subr.bf16.mxu0 %v3809
    %5893 = vmatpush1.bf16.msra.mxu0 %v3808
    %5894 = vmatprep.subr.bf16.mxu0 %v3827
    %5895 = vmatpush1.bf16.msra.mxu0 %v3826
    %5896 = vmatprep.subr.bf16.mxu0 %v3845
    %5897 = vmatpush1.bf16.msra.mxu0 %v3844
    %5898 = vmatprep.subr.bf16.mxu0 %v3863
    %5899 = vmatpush1.bf16.msra.mxu0 %v3862
    %5900 = vmatprep.subr.bf16.mxu0 %v3881
    %5901 = vmatpush1.bf16.msra.mxu0 %v3880
    %5902 = vmatprep.subr.bf16.mxu0 %v3899
    %5903 = vmatpush1.bf16.msra.mxu0 %v3898
    %5904 = vmatprep.subr.bf16.mxu0 %v3917
    %5905 = vmatpush1.bf16.msra.mxu0 %v3916
    %5906 = vmatprep.subr.bf16.mxu0 %v3935
    %5907 = vmatpush1.bf16.msra.mxu0 %v3934
    %5908 = vmatprep.mubr.bf16.mxu0 %v1053
    %5909 = vmatmul.mubr.bf16.gmra.mrb[0].mxu0 %v1052
    %v5910 = vpop.f32.mrb[0].mxu0
    %v5911 = vadd.f32 %v988, %v5910
    %v5912 = vpop.f32.mrb[0].mxu0
    %v5913 = vadd.f32 %v992, %v5912
    %v5914 = vpop.f32.mrb[0].mxu0
    %v5915 = vpop.f32.mrb[0].mxu0
    %5916 = vdwg.mxu0
    %5917 = vmatprep.subr.bf16.mxu0 %v3953
    %5918 = vmatpush1.bf16.msra.mxu0 %v3952
    %5919 = vmatprep.subr.bf16.mxu0 %v3971
    %5920 = vmatpush1.bf16.msra.mxu0 %v3970
    %5921 = vmatprep.subr.bf16.mxu0 %v3989
    %5922 = vmatpush1.bf16.msra.mxu0 %v3988
    %5923 = vmatprep.subr.bf16.mxu0 %v4007
    %5924 = vmatpush1.bf16.msra.mxu0 %v4006
    %5925 = vmatprep.subr.bf16.mxu0 %v4025
    %5926 = vmatpush1.bf16.msra.mxu0 %v4024
    %5927 = vmatprep.subr.bf16.mxu0 %v4043
    %5928 = vmatpush1.bf16.msra.mxu0 %v4042
    %5929 = vmatprep.subr.bf16.mxu0 %v4061
    %5930 = vmatpush1.bf16.msra.mxu0 %v4060
    %5931 = vmatprep.subr.bf16.mxu0 %v4079
    %5932 = vmatpush1.bf16.msra.mxu0 %v4078
    %5933 = vmatprep.subr.bf16.mxu0 %v4097
    %5934 = vmatpush1.bf16.msra.mxu0 %v4096
    %5935 = vmatprep.subr.bf16.mxu0 %v4115
    %5936 = vmatpush1.bf16.msra.mxu0 %v4114
    %5937 = vmatprep.subr.bf16.mxu0 %v4133
    %5938 = vmatpush1.bf16.msra.mxu0 %v4132
    %5939 = vmatprep.subr.bf16.mxu0 %v4151
    %5940 = vmatpush1.bf16.msra.mxu0 %v4150
    %5941 = vmatprep.subr.bf16.mxu0 %v4169
    %5942 = vmatpush1.bf16.msra.mxu0 %v4168
    %5943 = vmatprep.subr.bf16.mxu0 %v4187
    %5944 = vmatpush1.bf16.msra.mxu0 %v4186
    %5945 = vmatprep.subr.bf16.mxu0 %v4205
    %5946 = vmatpush1.bf16.msra.mxu0 %v4204
    %5947 = vmatprep.subr.bf16.mxu0 %v4223
    %5948 = vmatpush1.bf16.msra.mxu0 %v4222
    %5949 = vmatprep.mubr.bf16.mxu0 %v1055
    %5950 = vmatmul.mubr.bf16.gmra.mrb[0].mxu0 %v1054
    %v5951 = vpop.f32.mrb[0].mxu0
    %v5952 = vadd.f32 %v5911, %v5951
    %v5953 = vpop.f32.mrb[0].mxu0
    %v5954 = vadd.f32 %v5913, %v5953
    %v5955 = vpop.f32.mrb[0].mxu0
    %v5956 = vpop.f32.mrb[0].mxu0
    %5957 = vdwg.mxu0
    %5958 = vmatprep.subr.bf16.mxu0 %v4241
    %5959 = vmatpush1.bf16.msra.mxu0 %v4240
    %5960 = vmatprep.subr.bf16.mxu0 %v4259
    %5961 = vmatpush1.bf16.msra.mxu0 %v4258
    %5962 = vmatprep.subr.bf16.mxu0 %v4277
    %5963 = vmatpush1.bf16.msra.mxu0 %v4276
    %5964 = vmatprep.subr.bf16.mxu0 %v4295
    %5965 = vmatpush1.bf16.msra.mxu0 %v4294
    %5966 = vmatprep.subr.bf16.mxu0 %v4313
    %5967 = vmatpush1.bf16.msra.mxu0 %v4312
    %5968 = vmatprep.subr.bf16.mxu0 %v4331
    %5969 = vmatpush1.bf16.msra.mxu0 %v4330
    %5970 = vmatprep.subr.bf16.mxu0 %v4349
    %5971 = vmatpush1.bf16.msra.mxu0 %v4348
    %5972 = vmatprep.subr.bf16.mxu0 %v4367
    %5973 = vmatpush1.bf16.msra.mxu0 %v4366
    %5974 = vmatprep.subr.bf16.mxu0 %v4385
    %5975 = vmatpush1.bf16.msra.mxu0 %v4384
    %5976 = vmatprep.subr.bf16.mxu0 %v4403
    %5977 = vmatpush1.bf16.msra.mxu0 %v4402
    %5978 = vmatprep.subr.bf16.mxu0 %v4421
    %5979 = vmatpush1.bf16.msra.mxu0 %v4420
    %5980 = vmatprep.subr.bf16.mxu0 %v4439
    %5981 = vmatpush1.bf16.msra.mxu0 %v4438
    %5982 = vmatprep.subr.bf16.mxu0 %v4457
    %5983 = vmatpush1.bf16.msra.mxu0 %v4456
    %5984 = vmatprep.subr.bf16.mxu0 %v4475
    %5985 = vmatpush1.bf16.msra.mxu0 %v4474
    %5986 = vmatprep.subr.bf16.mxu0 %v4493
    %5987 = vmatpush1.bf16.msra.mxu0 %v4492
    %5988 = vmatprep.subr.bf16.mxu0 %v4511
    %5989 = vmatpush1.bf16.msra.mxu0 %v4510
    %5990 = vmatprep.mubr.bf16.mxu0 %v1057
    %5991 = vmatmul.mubr.bf16.gmra.mrb[0].mxu0 %v1056
    %v5992 = vpop.f32.mrb[0].mxu0
    %v5993 = vadd.f32 %v5952, %v5992
    %v5994 = vpop.f32.mrb[0].mxu0
    %v5995 = vadd.f32 %v5954, %v5994
    %v5996 = vpop.f32.mrb[0].mxu0
    %v5997 = vpop.f32.mrb[0].mxu0
    %5998 = vdwg.mxu0
    %5999 = vmatprep.subr.bf16.mxu0 %v3667
    %6000 = vmatpush1.bf16.msra.mxu0 %v3666
    %6001 = vmatprep.subr.bf16.mxu0 %v3685
    %6002 = vmatpush1.bf16.msra.mxu0 %v3684
    %6003 = vmatprep.subr.bf16.mxu0 %v3703
    %6004 = vmatpush1.bf16.msra.mxu0 %v3702
    %6005 = vmatprep.subr.bf16.mxu0 %v3721
    %6006 = vmatpush1.bf16.msra.mxu0 %v3720
    %6007 = vmatprep.subr.bf16.mxu0 %v3739
    %6008 = vmatpush1.bf16.msra.mxu0 %v3738
    %6009 = vmatprep.subr.bf16.mxu0 %v3757
    %6010 = vmatpush1.bf16.msra.mxu0 %v3756
    %6011 = vmatprep.subr.bf16.mxu0 %v3775
    %6012 = vmatpush1.bf16.msra.mxu0 %v3774
    %6013 = vmatprep.subr.bf16.mxu0 %v3793
    %6014 = vmatpush1.bf16.msra.mxu0 %v3792
    %6015 = vmatprep.subr.bf16.mxu0 %v3811
    %6016 = vmatpush1.bf16.msra.mxu0 %v3810
    %6017 = vmatprep.subr.bf16.mxu0 %v3829
    %6018 = vmatpush1.bf16.msra.mxu0 %v3828
    %6019 = vmatprep.subr.bf16.mxu0 %v3847
    %6020 = vmatpush1.bf16.msra.mxu0 %v3846
    %6021 = vmatprep.subr.bf16.mxu0 %v3865
    %6022 = vmatpush1.bf16.msra.mxu0 %v3864
    %6023 = vmatprep.subr.bf16.mxu0 %v3883
    %6024 = vmatpush1.bf16.msra.mxu0 %v3882
    %6025 = vmatprep.subr.bf16.mxu0 %v3901
    %6026 = vmatpush1.bf16.msra.mxu0 %v3900
    %6027 = vmatprep.subr.bf16.mxu0 %v3919
    %6028 = vmatpush1.bf16.msra.mxu0 %v3918
    %6029 = vmatprep.subr.bf16.mxu0 %v3937
    %6030 = vmatpush1.bf16.msra.mxu0 %v3936
    %6031 = vmatprep.mubr.bf16.mxu0 %v1053
    %6032 = vmatmul.mubr.bf16.gmra.mrb[0].mxu0 %v1052
    %v6033 = vpop.f32.mrb[0].mxu0
    %v6034 = vadd.f32 %v996, %v6033
    %v6035 = vpop.f32.mrb[0].mxu0
    %v6036 = vadd.f32 %v1000, %v6035
    %v6037 = vpop.f32.mrb[0].mxu0
    %v6038 = vpop.f32.mrb[0].mxu0
    %6039 = vdwg.mxu0
    %6040 = vmatprep.subr.bf16.mxu0 %v3955
    %6041 = vmatpush1.bf16.msra.mxu0 %v3954
    %6042 = vmatprep.subr.bf16.mxu0 %v3973
    %6043 = vmatpush1.bf16.msra.mxu0 %v3972
    %6044 = vmatprep.subr.bf16.mxu0 %v3991
    %6045 = vmatpush1.bf16.msra.mxu0 %v3990
    %6046 = vmatprep.subr.bf16.mxu0 %v4009
    %6047 = vmatpush1.bf16.msra.mxu0 %v4008
    %6048 = vmatprep.subr.bf16.mxu0 %v4027
    %6049 = vmatpush1.bf16.msra.mxu0 %v4026
    %6050 = vmatprep.subr.bf16.mxu0 %v4045
    %6051 = vmatpush1.bf16.msra.mxu0 %v4044
    %6052 = vmatprep.subr.bf16.mxu0 %v4063
    %6053 = vmatpush1.bf16.msra.mxu0 %v4062
    %6054 = vmatprep.subr.bf16.mxu0 %v4081
    %6055 = vmatpush1.bf16.msra.mxu0 %v4080
    %6056 = vmatprep.subr.bf16.mxu0 %v4099
    %6057 = vmatpush1.bf16.msra.mxu0 %v4098
    %6058 = vmatprep.subr.bf16.mxu0 %v4117
    %6059 = vmatpush1.bf16.msra.mxu0 %v4116
    %6060 = vmatprep.subr.bf16.mxu0 %v4135
    %6061 = vmatpush1.bf16.msra.mxu0 %v4134
    %6062 = vmatprep.subr.bf16.mxu0 %v4153
    %6063 = vmatpush1.bf16.msra.mxu0 %v4152
    %6064 = vmatprep.subr.bf16.mxu0 %v4171
    %6065 = vmatpush1.bf16.msra.mxu0 %v4170
    %6066 = vmatprep.subr.bf16.mxu0 %v4189
    %6067 = vmatpush1.bf16.msra.mxu0 %v4188
    %6068 = vmatprep.subr.bf16.mxu0 %v4207
    %6069 = vmatpush1.bf16.msra.mxu0 %v4206
    %6070 = vmatprep.subr.bf16.mxu0 %v4225
    %6071 = vmatpush1.bf16.msra.mxu0 %v4224
    %6072 = vmatprep.mubr.bf16.mxu0 %v1055
    %6073 = vmatmul.mubr.bf16.gmra.mrb[0].mxu0 %v1054
    %v6074 = vpop.f32.mrb[0].mxu0
    %v6075 = vadd.f32 %v6034, %v6074
    %v6076 = vpop.f32.mrb[0].mxu0
    %v6077 = vadd.f32 %v6036, %v6076
    %v6078 = vpop.f32.mrb[0].mxu0
    %v6079 = vpop.f32.mrb[0].mxu0
    %6080 = vdwg.mxu0
    %6081 = vmatprep.subr.bf16.mxu0 %v4243
    %6082 = vmatpush1.bf16.msra.mxu0 %v4242
    %6083 = vmatprep.subr.bf16.mxu0 %v4261
    %6084 = vmatpush1.bf16.msra.mxu0 %v4260
    %6085 = vmatprep.subr.bf16.mxu0 %v4279
    %6086 = vmatpush1.bf16.msra.mxu0 %v4278
    %6087 = vmatprep.subr.bf16.mxu0 %v4297
    %6088 = vmatpush1.bf16.msra.mxu0 %v4296
    %6089 = vmatprep.subr.bf16.mxu0 %v4315
    %6090 = vmatpush1.bf16.msra.mxu0 %v4314
    %6091 = vmatprep.subr.bf16.mxu0 %v4333
    %6092 = vmatpush1.bf16.msra.mxu0 %v4332
    %6093 = vmatprep.subr.bf16.mxu0 %v4351
    %6094 = vmatpush1.bf16.msra.mxu0 %v4350
    %6095 = vmatprep.subr.bf16.mxu0 %v4369
    %6096 = vmatpush1.bf16.msra.mxu0 %v4368
    %6097 = vmatprep.subr.bf16.mxu0 %v4387
    %6098 = vmatpush1.bf16.msra.mxu0 %v4386
    %6099 = vmatprep.subr.bf16.mxu0 %v4405
    %6100 = vmatpush1.bf16.msra.mxu0 %v4404
    %6101 = vmatprep.subr.bf16.mxu0 %v4423
    %6102 = vmatpush1.bf16.msra.mxu0 %v4422
    %6103 = vmatprep.subr.bf16.mxu0 %v4441
    %6104 = vmatpush1.bf16.msra.mxu0 %v4440
    %6105 = vmatprep.subr.bf16.mxu0 %v4459
    %6106 = vmatpush1.bf16.msra.mxu0 %v4458
    %6107 = vmatprep.subr.bf16.mxu0 %v4477
    %6108 = vmatpush1.bf16.msra.mxu0 %v4476
    %6109 = vmatprep.subr.bf16.mxu0 %v4495
    %6110 = vmatpush1.bf16.msra.mxu0 %v4494
    %6111 = vmatprep.subr.bf16.mxu0 %v4513
    %6112 = vmatpush1.bf16.msra.mxu0 %v4512
    %6113 = vmatprep.mubr.bf16.mxu0 %v1057
    %6114 = vmatmul.mubr.bf16.gmra.mrb[0].mxu0 %v1056
    %v6115 = vpop.f32.mrb[0].mxu0
    %v6116 = vadd.f32 %v6075, %v6115
    %v6117 = vpop.f32.mrb[0].mxu0
    %v6118 = vadd.f32 %v6077, %v6117
    %v6119 = vpop.f32.mrb[0].mxu0
    %v6120 = vpop.f32.mrb[0].mxu0
    %6121 = vdwg.mxu0
    %6122 = vmatprep.subr.bf16.mxu0 %v3669
    %6123 = vmatpush1.bf16.msra.mxu0 %v3668
    %6124 = vmatprep.subr.bf16.mxu0 %v3687
    %6125 = vmatpush1.bf16.msra.mxu0 %v3686
    %6126 = vmatprep.subr.bf16.mxu0 %v3705
    %6127 = vmatpush1.bf16.msra.mxu0 %v3704
    %6128 = vmatprep.subr.bf16.mxu0 %v3723
    %6129 = vmatpush1.bf16.msra.mxu0 %v3722
    %6130 = vmatprep.subr.bf16.mxu0 %v3741
    %6131 = vmatpush1.bf16.msra.mxu0 %v3740
    %6132 = vmatprep.subr.bf16.mxu0 %v3759
    %6133 = vmatpush1.bf16.msra.mxu0 %v3758
    %6134 = vmatprep.subr.bf16.mxu0 %v3777
    %6135 = vmatpush1.bf16.msra.mxu0 %v3776
    %6136 = vmatprep.subr.bf16.mxu0 %v3795
    %6137 = vmatpush1.bf16.msra.mxu0 %v3794
    %6138 = vmatprep.subr.bf16.mxu0 %v3813
    %6139 = vmatpush1.bf16.msra.mxu0 %v3812
    %6140 = vmatprep.subr.bf16.mxu0 %v3831
    %6141 = vmatpush1.bf16.msra.mxu0 %v3830
    %6142 = vmatprep.subr.bf16.mxu0 %v3849
    %6143 = vmatpush1.bf16.msra.mxu0 %v3848
    %6144 = vmatprep.subr.bf16.mxu0 %v3867
    %6145 = vmatpush1.bf16.msra.mxu0 %v3866
    %6146 = vmatprep.subr.bf16.mxu0 %v3885
    %6147 = vmatpush1.bf16.msra.mxu0 %v3884
    %6148 = vmatprep.subr.bf16.mxu0 %v3903
    %6149 = vmatpush1.bf16.msra.mxu0 %v3902
    %6150 = vmatprep.subr.bf16.mxu0 %v3921
    %6151 = vmatpush1.bf16.msra.mxu0 %v3920
    %6152 = vmatprep.subr.bf16.mxu0 %v3939
    %6153 = vmatpush1.bf16.msra.mxu0 %v3938
    %6154 = vmatprep.mubr.bf16.mxu0 %v1053
    %6155 = vmatmul.mubr.bf16.gmra.mrb[0].mxu0 %v1052
    %v6156 = vpop.f32.mrb[0].mxu0
    %v6157 = vadd.f32 %v1004, %v6156
    %v6158 = vpop.f32.mrb[0].mxu0
    %v6159 = vadd.f32 %v1008, %v6158
    %v6160 = vpop.f32.mrb[0].mxu0
    %v6161 = vpop.f32.mrb[0].mxu0
    %6162 = vdwg.mxu0
    %6163 = vmatprep.subr.bf16.mxu0 %v3957
    %6164 = vmatpush1.bf16.msra.mxu0 %v3956
    %6165 = vmatprep.subr.bf16.mxu0 %v3975
    %6166 = vmatpush1.bf16.msra.mxu0 %v3974
    %6167 = vmatprep.subr.bf16.mxu0 %v3993
    %6168 = vmatpush1.bf16.msra.mxu0 %v3992
    %6169 = vmatprep.subr.bf16.mxu0 %v4011
    %6170 = vmatpush1.bf16.msra.mxu0 %v4010
    %6171 = vmatprep.subr.bf16.mxu0 %v4029
    %6172 = vmatpush1.bf16.msra.mxu0 %v4028
    %6173 = vmatprep.subr.bf16.mxu0 %v4047
    %6174 = vmatpush1.bf16.msra.mxu0 %v4046
    %6175 = vmatprep.subr.bf16.mxu0 %v4065
    %6176 = vmatpush1.bf16.msra.mxu0 %v4064
    %6177 = vmatprep.subr.bf16.mxu0 %v4083
    %6178 = vmatpush1.bf16.msra.mxu0 %v4082
    %6179 = vmatprep.subr.bf16.mxu0 %v4101
    %6180 = vmatpush1.bf16.msra.mxu0 %v4100
    %6181 = vmatprep.subr.bf16.mxu0 %v4119
    %6182 = vmatpush1.bf16.msra.mxu0 %v4118
    %6183 = vmatprep.subr.bf16.mxu0 %v4137
    %6184 = vmatpush1.bf16.msra.mxu0 %v4136
    %6185 = vmatprep.subr.bf16.mxu0 %v4155
    %6186 = vmatpush1.bf16.msra.mxu0 %v4154
    %6187 = vmatprep.subr.bf16.mxu0 %v4173
    %6188 = vmatpush1.bf16.msra.mxu0 %v4172
    %6189 = vmatprep.subr.bf16.mxu0 %v4191
    %6190 = vmatpush1.bf16.msra.mxu0 %v4190
    %6191 = vmatprep.subr.bf16.mxu0 %v4209
    %6192 = vmatpush1.bf16.msra.mxu0 %v4208
    %6193 = vmatprep.subr.bf16.mxu0 %v4227
    %6194 = vmatpush1.bf16.msra.mxu0 %v4226
    %6195 = vmatprep.mubr.bf16.mxu0 %v1055
    %6196 = vmatmul.mubr.bf16.gmra.mrb[0].mxu0 %v1054
    %v6197 = vpop.f32.mrb[0].mxu0
    %v6198 = vadd.f32 %v6157, %v6197
    %v6199 = vpop.f32.mrb[0].mxu0
    %v6200 = vadd.f32 %v6159, %v6199
    %v6201 = vpop.f32.mrb[0].mxu0
    %v6202 = vpop.f32.mrb[0].mxu0
    %6203 = vdwg.mxu0
    %6204 = vmatprep.subr.bf16.mxu0 %v4245
    %6205 = vmatpush1.bf16.msra.mxu0 %v4244
    %6206 = vmatprep.subr.bf16.mxu0 %v4263
    %6207 = vmatpush1.bf16.msra.mxu0 %v4262
    %6208 = vmatprep.subr.bf16.mxu0 %v4281
    %6209 = vmatpush1.bf16.msra.mxu0 %v4280
    %6210 = vmatprep.subr.bf16.mxu0 %v4299
    %6211 = vmatpush1.bf16.msra.mxu0 %v4298
    %6212 = vmatprep.subr.bf16.mxu0 %v4317
    %6213 = vmatpush1.bf16.msra.mxu0 %v4316
    %6214 = vmatprep.subr.bf16.mxu0 %v4335
    %6215 = vmatpush1.bf16.msra.mxu0 %v4334
    %6216 = vmatprep.subr.bf16.mxu0 %v4353
    %6217 = vmatpush1.bf16.msra.mxu0 %v4352
    %6218 = vmatprep.subr.bf16.mxu0 %v4371
    %6219 = vmatpush1.bf16.msra.mxu0 %v4370
    %6220 = vmatprep.subr.bf16.mxu0 %v4389
    %6221 = vmatpush1.bf16.msra.mxu0 %v4388
    %6222 = vmatprep.subr.bf16.mxu0 %v4407
    %6223 = vmatpush1.bf16.msra.mxu0 %v4406
    %6224 = vmatprep.subr.bf16.mxu0 %v4425
    %6225 = vmatpush1.bf16.msra.mxu0 %v4424
    %6226 = vmatprep.subr.bf16.mxu0 %v4443
    %6227 = vmatpush1.bf16.msra.mxu0 %v4442
    %6228 = vmatprep.subr.bf16.mxu0 %v4461
    %6229 = vmatpush1.bf16.msra.mxu0 %v4460
    %6230 = vmatprep.subr.bf16.mxu0 %v4479
    %6231 = vmatpush1.bf16.msra.mxu0 %v4478
    %6232 = vmatprep.subr.bf16.mxu0 %v4497
    %6233 = vmatpush1.bf16.msra.mxu0 %v4496
    %6234 = vmatprep.subr.bf16.mxu0 %v4515
    %6235 = vmatpush1.bf16.msra.mxu0 %v4514
    %6236 = vmatprep.mubr.bf16.mxu0 %v1057
    %6237 = vmatmul.mubr.bf16.gmra.mrb[0].mxu0 %v1056
    %v6238 = vpop.f32.mrb[0].mxu0
    %v6239 = vadd.f32 %v6198, %v6238
    %v6240 = vpop.f32.mrb[0].mxu0
    %v6241 = vadd.f32 %v6200, %v6240
    %v6242 = vpop.f32.mrb[0].mxu0
    %v6243 = vpop.f32.mrb[0].mxu0
    %6244 = vdwg.mxu0
    %6245 = vmatprep.subr.bf16.mxu0 %v3671
    %6246 = vmatpush1.bf16.msra.mxu0 %v3670
    %6247 = vmatprep.subr.bf16.mxu0 %v3689
    %6248 = vmatpush1.bf16.msra.mxu0 %v3688
    %6249 = vmatprep.subr.bf16.mxu0 %v3707
    %6250 = vmatpush1.bf16.msra.mxu0 %v3706
    %6251 = vmatprep.subr.bf16.mxu0 %v3725
    %6252 = vmatpush1.bf16.msra.mxu0 %v3724
    %6253 = vmatprep.subr.bf16.mxu0 %v3743
    %6254 = vmatpush1.bf16.msra.mxu0 %v3742
    %6255 = vmatprep.subr.bf16.mxu0 %v3761
    %6256 = vmatpush1.bf16.msra.mxu0 %v3760
    %6257 = vmatprep.subr.bf16.mxu0 %v3779
    %6258 = vmatpush1.bf16.msra.mxu0 %v3778
    %6259 = vmatprep.subr.bf16.mxu0 %v3797
    %6260 = vmatpush1.bf16.msra.mxu0 %v3796
    %6261 = vmatprep.subr.bf16.mxu0 %v3815
    %6262 = vmatpush1.bf16.msra.mxu0 %v3814
    %6263 = vmatprep.subr.bf16.mxu0 %v3833
    %6264 = vmatpush1.bf16.msra.mxu0 %v3832
    %6265 = vmatprep.subr.bf16.mxu0 %v3851
    %6266 = vmatpush1.bf16.msra.mxu0 %v3850
    %6267 = vmatprep.subr.bf16.mxu0 %v3869
    %6268 = vmatpush1.bf16.msra.mxu0 %v3868
    %6269 = vmatprep.subr.bf16.mxu0 %v3887
    %6270 = vmatpush1.bf16.msra.mxu0 %v3886
    %6271 = vmatprep.subr.bf16.mxu0 %v3905
    %6272 = vmatpush1.bf16.msra.mxu0 %v3904
    %6273 = vmatprep.subr.bf16.mxu0 %v3923
    %6274 = vmatpush1.bf16.msra.mxu0 %v3922
    %6275 = vmatprep.subr.bf16.mxu0 %v3941
    %6276 = vmatpush1.bf16.msra.mxu0 %v3940
    %6277 = vmatprep.mubr.bf16.mxu0 %v1053
    %6278 = vmatmul.mubr.bf16.gmra.mrb[0].mxu0 %v1052
    %v6279 = vpop.f32.mrb[0].mxu0
    %v6280 = vadd.f32 %v1012, %v6279
    %v6281 = vpop.f32.mrb[0].mxu0
    %v6282 = vadd.f32 %v1016, %v6281
    %v6283 = vpop.f32.mrb[0].mxu0
    %v6284 = vpop.f32.mrb[0].mxu0
    %6285 = vdwg.mxu0
    %6286 = vmatprep.subr.bf16.mxu0 %v3959
    %6287 = vmatpush1.bf16.msra.mxu0 %v3958
    %6288 = vmatprep.subr.bf16.mxu0 %v3977
    %6289 = vmatpush1.bf16.msra.mxu0 %v3976
    %6290 = vmatprep.subr.bf16.mxu0 %v3995
    %6291 = vmatpush1.bf16.msra.mxu0 %v3994
    %6292 = vmatprep.subr.bf16.mxu0 %v4013
    %6293 = vmatpush1.bf16.msra.mxu0 %v4012
    %6294 = vmatprep.subr.bf16.mxu0 %v4031
    %6295 = vmatpush1.bf16.msra.mxu0 %v4030
    %6296 = vmatprep.subr.bf16.mxu0 %v4049
    %6297 = vmatpush1.bf16.msra.mxu0 %v4048
    %6298 = vmatprep.subr.bf16.mxu0 %v4067
    %6299 = vmatpush1.bf16.msra.mxu0 %v4066
    %6300 = vmatprep.subr.bf16.mxu0 %v4085
    %6301 = vmatpush1.bf16.msra.mxu0 %v4084
    %6302 = vmatprep.subr.bf16.mxu0 %v4103
    %6303 = vmatpush1.bf16.msra.mxu0 %v4102
    %6304 = vmatprep.subr.bf16.mxu0 %v4121
    %6305 = vmatpush1.bf16.msra.mxu0 %v4120
    %6306 = vmatprep.subr.bf16.mxu0 %v4139
    %6307 = vmatpush1.bf16.msra.mxu0 %v4138
    %6308 = vmatprep.subr.bf16.mxu0 %v4157
    %6309 = vmatpush1.bf16.msra.mxu0 %v4156
    %6310 = vmatprep.subr.bf16.mxu0 %v4175
    %6311 = vmatpush1.bf16.msra.mxu0 %v4174
    %6312 = vmatprep.subr.bf16.mxu0 %v4193
    %6313 = vmatpush1.bf16.msra.mxu0 %v4192
    %6314 = vmatprep.subr.bf16.mxu0 %v4211
    %6315 = vmatpush1.bf16.msra.mxu0 %v4210
    %6316 = vmatprep.subr.bf16.mxu0 %v4229
    %6317 = vmatpush1.bf16.msra.mxu0 %v4228
    %6318 = vmatprep.mubr.bf16.mxu0 %v1055
    %6319 = vmatmul.mubr.bf16.gmra.mrb[0].mxu0 %v1054
    %v6320 = vpop.f32.mrb[0].mxu0
    %v6321 = vadd.f32 %v6280, %v6320
    %v6322 = vpop.f32.mrb[0].mxu0
    %v6323 = vadd.f32 %v6282, %v6322
    %v6324 = vpop.f32.mrb[0].mxu0
    %v6325 = vpop.f32.mrb[0].mxu0
    %6326 = vdwg.mxu0
    %6327 = vmatprep.subr.bf16.mxu0 %v4247
    %6328 = vmatpush1.bf16.msra.mxu0 %v4246
    %6329 = vmatprep.subr.bf16.mxu0 %v4265
    %6330 = vmatpush1.bf16.msra.mxu0 %v4264
    %6331 = vmatprep.subr.bf16.mxu0 %v4283
    %6332 = vmatpush1.bf16.msra.mxu0 %v4282
    %6333 = vmatprep.subr.bf16.mxu0 %v4301
    %6334 = vmatpush1.bf16.msra.mxu0 %v4300
    %6335 = vmatprep.subr.bf16.mxu0 %v4319
    %6336 = vmatpush1.bf16.msra.mxu0 %v4318
    %6337 = vmatprep.subr.bf16.mxu0 %v4337
    %6338 = vmatpush1.bf16.msra.mxu0 %v4336
    %6339 = vmatprep.subr.bf16.mxu0 %v4355
    %6340 = vmatpush1.bf16.msra.mxu0 %v4354
    %6341 = vmatprep.subr.bf16.mxu0 %v4373
    %6342 = vmatpush1.bf16.msra.mxu0 %v4372
    %6343 = vmatprep.subr.bf16.mxu0 %v4391
    %6344 = vmatpush1.bf16.msra.mxu0 %v4390
    %6345 = vmatprep.subr.bf16.mxu0 %v4409
    %6346 = vmatpush1.bf16.msra.mxu0 %v4408
    %6347 = vmatprep.subr.bf16.mxu0 %v4427
    %6348 = vmatpush1.bf16.msra.mxu0 %v4426
    %6349 = vmatprep.subr.bf16.mxu0 %v4445
    %6350 = vmatpush1.bf16.msra.mxu0 %v4444
    %6351 = vmatprep.subr.bf16.mxu0 %v4463
    %6352 = vmatpush1.bf16.msra.mxu0 %v4462
    %6353 = vmatprep.subr.bf16.mxu0 %v4481
    %6354 = vmatpush1.bf16.msra.mxu0 %v4480
    %6355 = vmatprep.subr.bf16.mxu0 %v4499
    %6356 = vmatpush1.bf16.msra.mxu0 %v4498
    %6357 = vmatprep.subr.bf16.mxu0 %v4517
    %6358 = vmatpush1.bf16.msra.mxu0 %v4516
    %6359 = vmatprep.mubr.bf16.mxu0 %v1057
    %6360 = vmatmul.mubr.bf16.gmra.mrb[0].mxu0 %v1056
    %v6361 = vpop.f32.mrb[0].mxu0
    %v6362 = vadd.f32 %v6321, %v6361
    %v6363 = vpop.f32.mrb[0].mxu0
    %v6364 = vadd.f32 %v6323, %v6363
    %v6365 = vpop.f32.mrb[0].mxu0
    %v6366 = vpop.f32.mrb[0].mxu0
    %6367 = vdwg.mxu0
    %6368 = vmatprep.subr.bf16.mxu0 %v3673
    %6369 = vmatpush1.bf16.msra.mxu0 %v3672
    %6370 = vmatprep.subr.bf16.mxu0 %v3691
    %6371 = vmatpush1.bf16.msra.mxu0 %v3690
    %6372 = vmatprep.subr.bf16.mxu0 %v3709
    %6373 = vmatpush1.bf16.msra.mxu0 %v3708
    %6374 = vmatprep.subr.bf16.mxu0 %v3727
    %6375 = vmatpush1.bf16.msra.mxu0 %v3726
    %6376 = vmatprep.subr.bf16.mxu0 %v3745
    %6377 = vmatpush1.bf16.msra.mxu0 %v3744
    %6378 = vmatprep.subr.bf16.mxu0 %v3763
    %6379 = vmatpush1.bf16.msra.mxu0 %v3762
    %6380 = vmatprep.subr.bf16.mxu0 %v3781
    %6381 = vmatpush1.bf16.msra.mxu0 %v3780
    %6382 = vmatprep.subr.bf16.mxu0 %v3799
    %6383 = vmatpush1.bf16.msra.mxu0 %v3798
    %6384 = vmatprep.subr.bf16.mxu0 %v3817
    %6385 = vmatpush1.bf16.msra.mxu0 %v3816
    %6386 = vmatprep.subr.bf16.mxu0 %v3835
    %6387 = vmatpush1.bf16.msra.mxu0 %v3834
    %6388 = vmatprep.subr.bf16.mxu0 %v3853
    %6389 = vmatpush1.bf16.msra.mxu0 %v3852
    %6390 = vmatprep.subr.bf16.mxu0 %v3871
    %6391 = vmatpush1.bf16.msra.mxu0 %v3870
    %6392 = vmatprep.subr.bf16.mxu0 %v3889
    %6393 = vmatpush1.bf16.msra.mxu0 %v3888
    %6394 = vmatprep.subr.bf16.mxu0 %v3907
    %6395 = vmatpush1.bf16.msra.mxu0 %v3906
    %6396 = vmatprep.subr.bf16.mxu0 %v3925
    %6397 = vmatpush1.bf16.msra.mxu0 %v3924
    %6398 = vmatprep.subr.bf16.mxu0 %v3943
    %6399 = vmatpush1.bf16.msra.mxu0 %v3942
    %6400 = vmatprep.mubr.bf16.mxu0 %v1053
    %6401 = vmatmul.mubr.bf16.gmra.mrb[0].mxu0 %v1052
    %v6402 = vpop.f32.mrb[0].mxu0
    %v6403 = vadd.f32 %v1020, %v6402
    %v6404 = vpop.f32.mrb[0].mxu0
    %v6405 = vadd.f32 %v1024, %v6404
    %v6406 = vpop.f32.mrb[0].mxu0
    %v6407 = vpop.f32.mrb[0].mxu0
    %6408 = vdwg.mxu0
    %6409 = vmatprep.subr.bf16.mxu0 %v3961
    %6410 = vmatpush1.bf16.msra.mxu0 %v3960
    %6411 = vmatprep.subr.bf16.mxu0 %v3979
    %6412 = vmatpush1.bf16.msra.mxu0 %v3978
    %6413 = vmatprep.subr.bf16.mxu0 %v3997
    %6414 = vmatpush1.bf16.msra.mxu0 %v3996
    %6415 = vmatprep.subr.bf16.mxu0 %v4015
    %6416 = vmatpush1.bf16.msra.mxu0 %v4014
    %6417 = vmatprep.subr.bf16.mxu0 %v4033
    %6418 = vmatpush1.bf16.msra.mxu0 %v4032
    %6419 = vmatprep.subr.bf16.mxu0 %v4051
    %6420 = vmatpush1.bf16.msra.mxu0 %v4050
    %6421 = vmatprep.subr.bf16.mxu0 %v4069
    %6422 = vmatpush1.bf16.msra.mxu0 %v4068
    %6423 = vmatprep.subr.bf16.mxu0 %v4087
    %6424 = vmatpush1.bf16.msra.mxu0 %v4086
    %6425 = vmatprep.subr.bf16.mxu0 %v4105
    %6426 = vmatpush1.bf16.msra.mxu0 %v4104
    %6427 = vmatprep.subr.bf16.mxu0 %v4123
    %6428 = vmatpush1.bf16.msra.mxu0 %v4122
    %6429 = vmatprep.subr.bf16.mxu0 %v4141
    %6430 = vmatpush1.bf16.msra.mxu0 %v4140
    %6431 = vmatprep.subr.bf16.mxu0 %v4159
    %6432 = vmatpush1.bf16.msra.mxu0 %v4158
    %6433 = vmatprep.subr.bf16.mxu0 %v4177
    %6434 = vmatpush1.bf16.msra.mxu0 %v4176
    %6435 = vmatprep.subr.bf16.mxu0 %v4195
    %6436 = vmatpush1.bf16.msra.mxu0 %v4194
    %6437 = vmatprep.subr.bf16.mxu0 %v4213
    %6438 = vmatpush1.bf16.msra.mxu0 %v4212
    %6439 = vmatprep.subr.bf16.mxu0 %v4231
    %6440 = vmatpush1.bf16.msra.mxu0 %v4230
    %6441 = vmatprep.mubr.bf16.mxu0 %v1055
    %6442 = vmatmul.mubr.bf16.gmra.mrb[0].mxu0 %v1054
    %v6443 = vpop.f32.mrb[0].mxu0
    %v6444 = vadd.f32 %v6403, %v6443
    %v6445 = vpop.f32.mrb[0].mxu0
    %v6446 = vadd.f32 %v6405, %v6445
    %v6447 = vpop.f32.mrb[0].mxu0
    %v6448 = vpop.f32.mrb[0].mxu0
    %6449 = vdwg.mxu0
    %6450 = vmatprep.subr.bf16.mxu0 %v4249
    %6451 = vmatpush1.bf16.msra.mxu0 %v4248
    %6452 = vmatprep.subr.bf16.mxu0 %v4267
    %6453 = vmatpush1.bf16.msra.mxu0 %v4266
    %6454 = vmatprep.subr.bf16.mxu0 %v4285
    %6455 = vmatpush1.bf16.msra.mxu0 %v4284
    %6456 = vmatprep.subr.bf16.mxu0 %v4303
    %6457 = vmatpush1.bf16.msra.mxu0 %v4302
    %6458 = vmatprep.subr.bf16.mxu0 %v4321
    %6459 = vmatpush1.bf16.msra.mxu0 %v4320
    %6460 = vmatprep.subr.bf16.mxu0 %v4339
    %6461 = vmatpush1.bf16.msra.mxu0 %v4338
    %6462 = vmatprep.subr.bf16.mxu0 %v4357
    %6463 = vmatpush1.bf16.msra.mxu0 %v4356
    %6464 = vmatprep.subr.bf16.mxu0 %v4375
    %6465 = vmatpush1.bf16.msra.mxu0 %v4374
    %6466 = vmatprep.subr.bf16.mxu0 %v4393
    %6467 = vmatpush1.bf16.msra.mxu0 %v4392
    %6468 = vmatprep.subr.bf16.mxu0 %v4411
    %6469 = vmatpush1.bf16.msra.mxu0 %v4410
    %6470 = vmatprep.subr.bf16.mxu0 %v4429
    %6471 = vmatpush1.bf16.msra.mxu0 %v4428
    %6472 = vmatprep.subr.bf16.mxu0 %v4447
    %6473 = vmatpush1.bf16.msra.mxu0 %v4446
    %6474 = vmatprep.subr.bf16.mxu0 %v4465
    %6475 = vmatpush1.bf16.msra.mxu0 %v4464
    %6476 = vmatprep.subr.bf16.mxu0 %v4483
    %6477 = vmatpush1.bf16.msra.mxu0 %v4482
    %6478 = vmatprep.subr.bf16.mxu0 %v4501
    %6479 = vmatpush1.bf16.msra.mxu0 %v4500
    %6480 = vmatprep.subr.bf16.mxu0 %v4519
    %6481 = vmatpush1.bf16.msra.mxu0 %v4518
    %6482 = vmatprep.mubr.bf16.mxu0 %v1057
    %6483 = vmatmul.mubr.bf16.gmra.mrb[0].mxu0 %v1056
    %v6484 = vpop.f32.mrb[0].mxu0
    %v6485 = vadd.f32 %v6444, %v6484
    %v6486 = vpop.f32.mrb[0].mxu0
    %v6487 = vadd.f32 %v6446, %v6486
    %v6488 = vpop.f32.mrb[0].mxu0
    %v6489 = vpop.f32.mrb[0].mxu0
    %6490 = vdwg.mxu0
    %v6491 = vxor.u32 %v5501, 2147483648
    %v6492 = vxor.u32 %v5503, 2147483648
    %v6493 = vxor.u32 %v5624, 2147483648
    %v6494 = vxor.u32 %v5626, 2147483648
    %v6495 = vxor.u32 %v5747, 2147483648
    %v6496 = vxor.u32 %v5749, 2147483648
    %v6497 = vmul.f32 %v6491, 1.442695
    %v6498 = vpow.pop %v6497
    %v6499 = vmul.f32 %v6492, 1.442695
    %v6500 = vpow.pop %v6499
    %v6501 = vmul.f32 %v6493, 1.442695
    %v6502 = vpow.pop %v6501
    %v6503 = vmul.f32 %v6494, 1.442695
    %v6504 = vpow.pop %v6503
    %v6505 = vmul.f32 %v6495, 1.442695
    %v6506 = vpow.pop %v6505
    %v6507 = vmul.f32 %v6496, 1.442695
    %v6508 = vpow.pop %v6507
    %v6509 = vadd.f32 %v6498, 1.0
    %v6510 = vadd.f32 %v6500, 1.0
    %v6511 = vadd.f32 %v6502, 1.0
    %v6512 = vadd.f32 %v6504, 1.0
    %v6513 = vadd.f32 %v6506, 1.0
    %v6514 = vadd.f32 %v6508, 1.0
    %v6515 = vrcp.pop %v6509
    %v6516 = vmul.f32 1.0, %v6515
    %v6517 = vrcp.pop %v6510
    %v6518 = vmul.f32 1.0, %v6517
    %v6519 = vrcp.pop %v6511
    %v6520 = vmul.f32 1.0, %v6519
    %v6521 = vrcp.pop %v6512
    %v6522 = vmul.f32 1.0, %v6521
    %v6523 = vrcp.pop %v6513
    %v6524 = vmul.f32 1.0, %v6523
    %v6525 = vrcp.pop %v6514
    %v6526 = vmul.f32 1.0, %v6525
    %v6527 = vxor.u32 %v5870, 2147483648
    %v6528 = vxor.u32 %v5872, 2147483648
    %v6529 = vxor.u32 %v5993, 2147483648
    %v6530 = vxor.u32 %v5995, 2147483648
    %v6531 = vxor.u32 %v6116, 2147483648
    %v6532 = vxor.u32 %v6118, 2147483648
    %v6533 = vmul.f32 %v6527, 1.442695
    %v6534 = vpow.pop %v6533
    %v6535 = vmul.f32 %v6528, 1.442695
    %v6536 = vpow.pop %v6535
    %v6537 = vmul.f32 %v6529, 1.442695
    %v6538 = vpow.pop %v6537
    %v6539 = vmul.f32 %v6530, 1.442695
    %v6540 = vpow.pop %v6539
    %v6541 = vmul.f32 %v6531, 1.442695
    %v6542 = vpow.pop %v6541
    %v6543 = vmul.f32 %v6532, 1.442695
    %v6544 = vpow.pop %v6543
    %v6545 = vadd.f32 %v6534, 1.0
    %v6546 = vadd.f32 %v6536, 1.0
    %v6547 = vadd.f32 %v6538, 1.0
    %v6548 = vadd.f32 %v6540, 1.0
    %v6549 = vadd.f32 %v6542, 1.0
    %v6550 = vadd.f32 %v6544, 1.0
    %v6551 = vrcp.pop %v6545
    %v6552 = vmul.f32 1.0, %v6551
    %v6553 = vrcp.pop %v6546
    %v6554 = vmul.f32 1.0, %v6553
    %v6555 = vrcp.pop %v6547
    %v6556 = vmul.f32 1.0, %v6555
    %v6557 = vrcp.pop %v6548
    %v6558 = vmul.f32 1.0, %v6557
    %v6559 = vrcp.pop %v6549
    %v6560 = vmul.f32 1.0, %v6559
    %v6561 = vrcp.pop %v6550
    %v6562 = vmul.f32 1.0, %v6561
    %v6563 = vld [vmem:[%s2] sm:$0xf]
    %v6564 = vld [vmem:[#allocation4] sm:$0xff]
    %v6565 = vld [vmem:[#allocation4 + $0x8] sm:$0xff]
    %v6566 = vld [vmem:[#allocation4 + $0x10] sm:$0xff]
    %v6567 = vld [vmem:[#allocation4 + $0x18] sm:$0xff]
    %v6568 = vld [vmem:[#allocation4 + $0x20] sm:$0xff]
    %v6569 = vld [vmem:[#allocation4 + $0x28] sm:$0xff]
    %v6570 = vld [vmem:[#allocation4 + $0x30] sm:$0xff]
    %v6571 = vld [vmem:[#allocation4 + $0x38] sm:$0xff]
    %v6572 = vld [vmem:[#allocation4 + $0x40] sm:$0xff]
    %v6573 = vld [vmem:[#allocation4 + $0x48] sm:$0xff]
    %v6574 = vld [vmem:[#allocation4 + $0x50] sm:$0xff]
    %v6575 = vld [vmem:[#allocation4 + $0x58] sm:$0xff]
    %v6576 = vld [vmem:[#allocation4 + $0x60] sm:$0xff]
    %v6577 = vld [vmem:[#allocation4 + $0x68] sm:$0xff]
    %v6578 = vld [vmem:[#allocation4 + $0x70] sm:$0xff]
    %v6579 = vld [vmem:[#allocation4 + $0x78] sm:$0xff]
    %v6580 = vld [vmem:[#allocation4 + $0x80] sm:$0xff]
    %v6581 = vld [vmem:[#allocation4 + $0x88] sm:$0xff]
    %v6582 = vld [vmem:[#allocation4 + $0x90] sm:$0xff]
    %v6583 = vld [vmem:[#allocation4 + $0x98] sm:$0xff]
    %v6584 = vld [vmem:[#allocation4 + $0xa0] sm:$0xff]
    %v6585 = vld [vmem:[#allocation4 + $0xa8] sm:$0xff]
    %v6586 = vld [vmem:[#allocation4 + $0xb0] sm:$0xff]
    %v6587 = vld [vmem:[#allocation4 + $0xb8] sm:$0xff]
    %v6588 = vld [vmem:[#allocation4 + $0xc0] sm:$0xff]
    %v6589 = vld [vmem:[#allocation4 + $0xc8] sm:$0xff]
    %v6590 = vld [vmem:[#allocation4 + $0xd0] sm:$0xff]
    %v6591 = vld [vmem:[#allocation4 + $0xd8] sm:$0xff]
    %v6592 = vld [vmem:[#allocation4 + $0xe0] sm:$0xff]
    %v6593 = vld [vmem:[#allocation4 + $0xe8] sm:$0xff]
    %v6594 = vld [vmem:[#allocation4 + $0xf0] sm:$0xff]
    %v6595 = vld [vmem:[#allocation4 + $0xf8] sm:$0xff]
    %v6596 = vld [vmem:[#allocation4 + $0x100] sm:$0xff]
    %v6597 = vld [vmem:[#allocation4 + $0x108] sm:$0xff]
    %v6598 = vld [vmem:[#allocation4 + $0x110] sm:$0xff]
    %v6599 = vld [vmem:[#allocation4 + $0x118] sm:$0xff]
    %v6600 = vld [vmem:[#allocation4 + $0x120] sm:$0xff]
    %v6601 = vld [vmem:[#allocation4 + $0x128] sm:$0xff]
    %v6602 = vld [vmem:[#allocation4 + $0x130] sm:$0xff]
    %v6603 = vld [vmem:[#allocation4 + $0x138] sm:$0xff]
    %v6604 = vld [vmem:[#allocation4 + $0x140] sm:$0xff]
    %v6605 = vld [vmem:[#allocation4 + $0x148] sm:$0xff]
    %v6606 = vld [vmem:[#allocation4 + $0x150] sm:$0xff]
    %v6607 = vld [vmem:[#allocation4 + $0x158] sm:$0xff]
    %v6608 = vld [vmem:[#allocation4 + $0x160] sm:$0xff]
    %v6609 = vld [vmem:[#allocation4 + $0x168] sm:$0xff]
    %v6610 = vld [vmem:[#allocation4 + $0x170] sm:$0xff]
    %v6611 = vld [vmem:[#allocation4 + $0x178] sm:$0xff]
    %v6612 = vld [vmem:[#allocation7 + $0x12] sm:$0x3f]
    %v6614 = vlaneseq
    %v6615 = vshrl.u32 %v6614, 7
    %v6616 = vsub.s32 0, %v6615
    %v6617 = vrot.slane %v6612, %v6616
    %v6618 = vlaneseq
    %v6619 = vshrl.u32 %v6618, 7
    %v6620 = vsub.s32 1, %v6619
    %v6621 = vrot.slane %v6612, %v6620
    %v6622 = vlaneseq
    %v6623 = vshrl.u32 %v6622, 7
    %v6624 = vsub.s32 2, %v6623
    %v6625 = vrot.slane %v6612, %v6624
    %v6626 = vlaneseq
    %v6627 = vshrl.u32 %v6626, 7
    %v6628 = vsub.s32 3, %v6627
    %v6629 = vrot.slane %v6612, %v6628
    %v6630 = vlaneseq
    %v6631 = vshrl.u32 %v6630, 7
    %v6632 = vsub.s32 4, %v6631
    %v6633 = vrot.slane %v6612, %v6632
    %v6634 = vlaneseq
    %v6635 = vshrl.u32 %v6634, 7
    %v6636 = vsub.s32 5, %v6635
    %v6637 = vrot.slane %v6612, %v6636
    %v6692 = vunpack.c.l.b16 %v6564
    %v6693 = vunpack.c.h.b16 %v6564
    %v6694 = vunpack.c.l.b16 %v6565
    %v6695 = vunpack.c.h.b16 %v6565
    %v6696 = vunpack.c.l.b16 %v6566
    %v6697 = vunpack.c.h.b16 %v6566
    %v6698 = vunpack.c.l.b16 %v6567
    %v6699 = vunpack.c.h.b16 %v6567
    %v6700 = vunpack.c.l.b16 %v6568
    %v6701 = vunpack.c.h.b16 %v6568
    %v6702 = vunpack.c.l.b16 %v6569
    %v6703 = vunpack.c.h.b16 %v6569
    %v6704 = vunpack.c.l.b16 %v6570
    %v6705 = vunpack.c.h.b16 %v6570
    %v6706 = vunpack.c.l.b16 %v6571
    %v6707 = vunpack.c.h.b16 %v6571
    %v6708 = vunpack.c.l.b16 %v6572
    %v6709 = vunpack.c.h.b16 %v6572
    %v6710 = vunpack.c.l.b16 %v6573
    %v6711 = vunpack.c.h.b16 %v6573
    %v6712 = vunpack.c.l.b16 %v6574
    %v6713 = vunpack.c.h.b16 %v6574
    %v6714 = vunpack.c.l.b16 %v6575
    %v6715 = vunpack.c.h.b16 %v6575
    %v6716 = vunpack.c.l.b16 %v6576
    %v6717 = vunpack.c.h.b16 %v6576
    %v6718 = vunpack.c.l.b16 %v6577
    %v6719 = vunpack.c.h.b16 %v6577
    %v6720 = vunpack.c.l.b16 %v6578
    %v6721 = vunpack.c.h.b16 %v6578
    %v6722 = vunpack.c.l.b16 %v6579
    %v6723 = vunpack.c.h.b16 %v6579
    %v6724 = vunpack.c.l.b16 %v6580
    %v6725 = vunpack.c.h.b16 %v6580
    %v6726 = vunpack.c.l.b16 %v6581
    %v6727 = vunpack.c.h.b16 %v6581
    %v6728 = vunpack.c.l.b16 %v6582
    %v6729 = vunpack.c.h.b16 %v6582
    %v6730 = vunpack.c.l.b16 %v6583
    %v6731 = vunpack.c.h.b16 %v6583
    %v6732 = vunpack.c.l.b16 %v6584
    %v6733 = vunpack.c.h.b16 %v6584
    %v6734 = vunpack.c.l.b16 %v6585
    %v6735 = vunpack.c.h.b16 %v6585
    %v6736 = vunpack.c.l.b16 %v6586
    %v6737 = vunpack.c.h.b16 %v6586
    %v6738 = vunpack.c.l.b16 %v6587
    %v6739 = vunpack.c.h.b16 %v6587
    %v6740 = vunpack.c.l.b16 %v6588
    %v6741 = vunpack.c.h.b16 %v6588
    %v6742 = vunpack.c.l.b16 %v6589
    %v6743 = vunpack.c.h.b16 %v6589
    %v6744 = vunpack.c.l.b16 %v6590
    %v6745 = vunpack.c.h.b16 %v6590
    %v6746 = vunpack.c.l.b16 %v6591
    %v6747 = vunpack.c.h.b16 %v6591
    %v6748 = vunpack.c.l.b16 %v6592
    %v6749 = vunpack.c.h.b16 %v6592
    %v6750 = vunpack.c.l.b16 %v6593
    %v6751 = vunpack.c.h.b16 %v6593
    %v6752 = vunpack.c.l.b16 %v6594
    %v6753 = vunpack.c.h.b16 %v6594
    %v6754 = vunpack.c.l.b16 %v6595
    %v6755 = vunpack.c.h.b16 %v6595
    %v6756 = vunpack.c.l.b16 %v6596
    %v6757 = vunpack.c.h.b16 %v6596
    %v6758 = vunpack.c.l.b16 %v6597
    %v6759 = vunpack.c.h.b16 %v6597
    %v6760 = vunpack.c.l.b16 %v6598
    %v6761 = vunpack.c.h.b16 %v6598
    %v6762 = vunpack.c.l.b16 %v6599
    %v6763 = vunpack.c.h.b16 %v6599
    %v6764 = vunpack.c.l.b16 %v6600
    %v6765 = vunpack.c.h.b16 %v6600
    %v6766 = vunpack.c.l.b16 %v6601
    %v6767 = vunpack.c.h.b16 %v6601
    %v6768 = vunpack.c.l.b16 %v6602
    %v6769 = vunpack.c.h.b16 %v6602
    %v6770 = vunpack.c.l.b16 %v6603
    %v6771 = vunpack.c.h.b16 %v6603
    %v6772 = vunpack.c.l.b16 %v6604
    %v6773 = vunpack.c.h.b16 %v6604
    %v6774 = vunpack.c.l.b16 %v6605
    %v6775 = vunpack.c.h.b16 %v6605
    %v6776 = vunpack.c.l.b16 %v6606
    %v6777 = vunpack.c.h.b16 %v6606
    %v6778 = vunpack.c.l.b16 %v6607
    %v6779 = vunpack.c.h.b16 %v6607
    %v6780 = vunpack.c.l.b16 %v6608
    %v6781 = vunpack.c.h.b16 %v6608
    %v6782 = vunpack.c.l.b16 %v6609
    %v6783 = vunpack.c.h.b16 %v6609
    %v6784 = vunpack.c.l.b16 %v6610
    %v6785 = vunpack.c.h.b16 %v6610
    %v6786 = vunpack.c.l.b16 %v6611
    %v6787 = vunpack.c.h.b16 %v6611
    %v6788 = vpack.c.b16 %v6698, %v6692
    %v6789 = vpack.c.b16 %v6699, %v6693
    %v6790 = vpack.c.b16 %v6700, %v6694
    %v6791 = vpack.c.b16 %v6701, %v6695
    %v6792 = vpack.c.b16 %v6702, %v6696
    %v6793 = vpack.c.b16 %v6703, %v6697
    %v6794 = vpack.c.b16 %v6710, %v6704
    %v6795 = vpack.c.b16 %v6711, %v6705
    %v6796 = vpack.c.b16 %v6712, %v6706
    %v6797 = vpack.c.b16 %v6713, %v6707
    %v6798 = vpack.c.b16 %v6714, %v6708
    %v6799 = vpack.c.b16 %v6715, %v6709
    %v6800 = vpack.c.b16 %v6722, %v6716
    %v6801 = vpack.c.b16 %v6723, %v6717
    %v6802 = vpack.c.b16 %v6724, %v6718
    %v6803 = vpack.c.b16 %v6725, %v6719
    %v6804 = vpack.c.b16 %v6726, %v6720
    %v6805 = vpack.c.b16 %v6727, %v6721
    %v6806 = vpack.c.b16 %v6734, %v6728
    %v6807 = vpack.c.b16 %v6735, %v6729
    %v6808 = vpack.c.b16 %v6736, %v6730
    %v6809 = vpack.c.b16 %v6737, %v6731
    %v6810 = vpack.c.b16 %v6738, %v6732
    %v6811 = vpack.c.b16 %v6739, %v6733
    %v6812 = vpack.c.b16 %v6746, %v6740
    %v6813 = vpack.c.b16 %v6747, %v6741
    %v6814 = vpack.c.b16 %v6748, %v6742
    %v6815 = vpack.c.b16 %v6749, %v6743
    %v6816 = vpack.c.b16 %v6750, %v6744
    %v6817 = vpack.c.b16 %v6751, %v6745
    %v6818 = vpack.c.b16 %v6758, %v6752
    %v6819 = vpack.c.b16 %v6759, %v6753
    %v6820 = vpack.c.b16 %v6760, %v6754
    %v6821 = vpack.c.b16 %v6761, %v6755
    %v6822 = vpack.c.b16 %v6762, %v6756
    %v6823 = vpack.c.b16 %v6763, %v6757
    %v6824 = vpack.c.b16 %v6770, %v6764
    %v6825 = vpack.c.b16 %v6771, %v6765
    %v6826 = vpack.c.b16 %v6772, %v6766
    %v6827 = vpack.c.b16 %v6773, %v6767
    %v6828 = vpack.c.b16 %v6774, %v6768
    %v6829 = vpack.c.b16 %v6775, %v6769
    %v6830 = vpack.c.b16 %v6782, %v6776
    %v6831 = vpack.c.b16 %v6783, %v6777
    %v6832 = vpack.c.b16 %v6784, %v6778
    %v6833 = vpack.c.b16 %v6785, %v6779
    %v6834 = vpack.c.b16 %v6786, %v6780
    %v6835 = vpack.c.b16 %v6787, %v6781
    %6884 = vmatprep.subr.bf16.mxu0 %v6789
    %6885 = vmatpush1.bf16.msra.mxu0 %v6788
    %6886 = vmatprep.subr.bf16.mxu0 %v6795
    %6887 = vmatpush1.bf16.msra.mxu0 %v6794
    %6888 = vmatprep.subr.bf16.mxu0 %v6801
    %6889 = vmatpush1.bf16.msra.mxu0 %v6800
    %6890 = vmatprep.subr.bf16.mxu0 %v6807
    %6891 = vmatpush1.bf16.msra.mxu0 %v6806
    %6892 = vmatprep.subr.bf16.mxu0 %v6813
    %6893 = vmatpush1.bf16.msra.mxu0 %v6812
    %6894 = vmatprep.subr.bf16.mxu0 %v6819
    %6895 = vmatpush1.bf16.msra.mxu0 %v6818
    %6896 = vmatprep.subr.bf16.mxu0 %v6825
    %6897 = vmatpush1.bf16.msra.mxu0 %v6824
    %6898 = vmatprep.subr.bf16.mxu0 %v6831
    %6899 = vmatpush1.bf16.msra.mxu0 %v6830
    %6900 = vmatprep.subr.bf16.mxu0 0
    %6901 = vmatpush1.bf16.msra.mxu0 0
    %6902 = vmatprep.subr.bf16.mxu0 0
    %6903 = vmatpush1.bf16.msra.mxu0 0
    %6904 = vmatprep.subr.bf16.mxu0 0
    %6905 = vmatpush1.bf16.msra.mxu0 0
    %6906 = vmatprep.subr.bf16.mxu0 0
    %6907 = vmatpush1.bf16.msra.mxu0 0
    %6908 = vmatprep.subr.bf16.mxu0 0
    %6909 = vmatpush1.bf16.msra.mxu0 0
    %6910 = vmatprep.subr.bf16.mxu0 0
    %6911 = vmatpush1.bf16.msra.mxu0 0
    %6912 = vmatprep.subr.bf16.mxu0 0
    %6913 = vmatpush1.bf16.msra.mxu0 0
    %6914 = vmatprep.subr.bf16.mxu0 0
    %6915 = vmatpush1.bf16.msra.mxu0 0
    %6916 = vmatprep.mubr.bf16.mxu0 0
    %6917 = vmatmul.mubr.bf16.gmra.mrb[0].mxu0 %v6563
    %v6918 = vpop.f32.mrb[0].mxu0
    %v6919 = vadd.f32 %v6617, %v6918
    %v6920 = vpop.f32.mrb[0].mxu0
    %v6921 = vadd.f32 %v6621, %v6920
    %v6922 = vpop.f32.mrb[0].mxu0
    %v6923 = vpop.f32.mrb[0].mxu0
    %6924 = vdwg.mxu0
    %6925 = vmatprep.subr.bf16.mxu0 %v6791
    %6926 = vmatpush1.bf16.msra.mxu0 %v6790
    %6927 = vmatprep.subr.bf16.mxu0 %v6797
    %6928 = vmatpush1.bf16.msra.mxu0 %v6796
    %6929 = vmatprep.subr.bf16.mxu0 %v6803
    %6930 = vmatpush1.bf16.msra.mxu0 %v6802
    %6931 = vmatprep.subr.bf16.mxu0 %v6809
    %6932 = vmatpush1.bf16.msra.mxu0 %v6808
    %6933 = vmatprep.subr.bf16.mxu0 %v6815
    %6934 = vmatpush1.bf16.msra.mxu0 %v6814
    %6935 = vmatprep.subr.bf16.mxu0 %v6821
    %6936 = vmatpush1.bf16.msra.mxu0 %v6820
    %6937 = vmatprep.subr.bf16.mxu0 %v6827
    %6938 = vmatpush1.bf16.msra.mxu0 %v6826
    %6939 = vmatprep.subr.bf16.mxu0 %v6833
    %6940 = vmatpush1.bf16.msra.mxu0 %v6832
    %6941 = vmatprep.subr.bf16.mxu0 0
    %6942 = vmatpush1.bf16.msra.mxu0 0
    %6943 = vmatprep.subr.bf16.mxu0 0
    %6944 = vmatpush1.bf16.msra.mxu0 0
    %6945 = vmatprep.subr.bf16.mxu0 0
    %6946 = vmatpush1.bf16.msra.mxu0 0
    %6947 = vmatprep.subr.bf16.mxu0 0
    %6948 = vmatpush1.bf16.msra.mxu0 0
    %6949 = vmatprep.subr.bf16.mxu0 0
    %6950 = vmatpush1.bf16.msra.mxu0 0
    %6951 = vmatprep.subr.bf16.mxu0 0
    %6952 = vmatpush1.bf16.msra.mxu0 0
    %6953 = vmatprep.subr.bf16.mxu0 0
    %6954 = vmatpush1.bf16.msra.mxu0 0
    %6955 = vmatprep.subr.bf16.mxu0 0
    %6956 = vmatpush1.bf16.msra.mxu0 0
    %6957 = vmatprep.mubr.bf16.mxu0 0
    %6958 = vmatmul.mubr.bf16.gmra.mrb[0].mxu0 %v6563
    %v6959 = vpop.f32.mrb[0].mxu0
    %v6960 = vadd.f32 %v6625, %v6959
    %v6961 = vpop.f32.mrb[0].mxu0
    %v6962 = vadd.f32 %v6629, %v6961
    %v6963 = vpop.f32.mrb[0].mxu0
    %v6964 = vpop.f32.mrb[0].mxu0
    %6965 = vdwg.mxu0
    %6966 = vmatprep.subr.bf16.mxu0 %v6793
    %6967 = vmatpush1.bf16.msra.mxu0 %v6792
    %6968 = vmatprep.subr.bf16.mxu0 %v6799
    %6969 = vmatpush1.bf16.msra.mxu0 %v6798
    %6970 = vmatprep.subr.bf16.mxu0 %v6805
    %6971 = vmatpush1.bf16.msra.mxu0 %v6804
    %6972 = vmatprep.subr.bf16.mxu0 %v6811
    %6973 = vmatpush1.bf16.msra.mxu0 %v6810
    %6974 = vmatprep.subr.bf16.mxu0 %v6817
    %6975 = vmatpush1.bf16.msra.mxu0 %v6816
    %6976 = vmatprep.subr.bf16.mxu0 %v6823
    %6977 = vmatpush1.bf16.msra.mxu0 %v6822
    %6978 = vmatprep.subr.bf16.mxu0 %v6829
    %6979 = vmatpush1.bf16.msra.mxu0 %v6828
    %6980 = vmatprep.subr.bf16.mxu0 %v6835
    %6981 = vmatpush1.bf16.msra.mxu0 %v6834
    %6982 = vmatprep.subr.bf16.mxu0 0
    %6983 = vmatpush1.bf16.msra.mxu0 0
    %6984 = vmatprep.subr.bf16.mxu0 0
    %6985 = vmatpush1.bf16.msra.mxu0 0
    %6986 = vmatprep.subr.bf16.mxu0 0
    %6987 = vmatpush1.bf16.msra.mxu0 0
    %6988 = vmatprep.subr.bf16.mxu0 0
    %6989 = vmatpush1.bf16.msra.mxu0 0
    %6990 = vmatprep.subr.bf16.mxu0 0
    %6991 = vmatpush1.bf16.msra.mxu0 0
    %6992 = vmatprep.subr.bf16.mxu0 0
    %6993 = vmatpush1.bf16.msra.mxu0 0
    %6994 = vmatprep.subr.bf16.mxu0 0
    %6995 = vmatpush1.bf16.msra.mxu0 0
    %6996 = vmatprep.subr.bf16.mxu0 0
    %6997 = vmatpush1.bf16.msra.mxu0 0
    %6998 = vmatprep.mubr.bf16.mxu0 0
    %6999 = vmatmul.mubr.bf16.gmra.mrb[0].mxu0 %v6563
    %v7000 = vpop.f32.mrb[0].mxu0
    %v7001 = vadd.f32 %v6633, %v7000
    %v7002 = vpop.f32.mrb[0].mxu0
    %v7003 = vadd.f32 %v6637, %v7002
    %v7004 = vpop.f32.mrb[0].mxu0
    %v7005 = vpop.f32.mrb[0].mxu0
    %7006 = vdwg.mxu0
    %v7007 = vmul.f32 %v6516, %v6239
    %v7008 = vmul.f32 %v6518, %v6241
    %v7009 = vmul.f32 %v6520, %v6362
    %v7010 = vmul.f32 %v6522, %v6364
    %v7011 = vmul.f32 %v6524, %v6485
    %v7012 = vmul.f32 %v6526, %v6487
    %v7013 = vadd.f32 %v6919, %v7007
    %v7014 = vadd.f32 %v6921, %v7008
    %v7015 = vadd.f32 %v6960, %v7009
    %v7016 = vadd.f32 %v6962, %v7010
    %v7017 = vadd.f32 %v7001, %v7011
    %v7018 = vadd.f32 %v7003, %v7012
    %v7019 = vtanh.pop %v7013
    %v7020 = vtanh.pop %v7014
    %v7021 = vtanh.pop %v7015
    %v7022 = vtanh.pop %v7016
    %v7023 = vtanh.pop %v7017
    %v7024 = vtanh.pop %v7018
    %v7025 = vld [vmem:[%s1] sm:$0xff]
    %v7026 = vld [vmem:[%s1 + $0x8] sm:$0xff]
    %v7027 = vld [vmem:[%s1 + $0x10] sm:$0xff]
    %v7028 = vld [vmem:[%s1 + $0x18] sm:$0xff]
    %v7029 = vld [vmem:[%s1 + $0x20] sm:$0xff]
    %v7030 = vld [vmem:[%s1 + $0x28] sm:$0xff]
    %v7031 = vsub.f32 1.0, %v6552
    %v7032 = vsub.f32 1.0, %v6554
    %v7033 = vsub.f32 1.0, %v6556
    %v7034 = vsub.f32 1.0, %v6558
    %v7035 = vsub.f32 1.0, %v6560
    %v7036 = vsub.f32 1.0, %v6562
    %v7037 = vmul.f32 %v7031, %v7019
    %v7038 = vmul.f32 %v7032, %v7020
    %v7039 = vmul.f32 %v7033, %v7021
    %v7040 = vmul.f32 %v7034, %v7022
    %v7041 = vmul.f32 %v7035, %v7023
    %v7042 = vmul.f32 %v7036, %v7024
    %v7043 = vmul.f32 %v6552, %v7025
    %v7044 = vmul.f32 %v6554, %v7026
    %v7045 = vmul.f32 %v6556, %v7027
    %v7046 = vmul.f32 %v6558, %v7028
    %v7047 = vmul.f32 %v6560, %v7029
    %v7048 = vmul.f32 %v6562, %v7030
    %v7049 = vadd.f32 %v7037, %v7043
    %v7050 = vadd.f32 %v7038, %v7044
    %v7051 = vadd.f32 %v7039, %v7045
    %v7052 = vadd.f32 %v7040, %v7046
    %v7053 = vadd.f32 %v7041, %v7047
    %v7054 = vadd.f32 %v7042, %v7048
    %v7055 = vpack.c.bf16 %v7049, %v7049
    %v7056 = vpack.c.bf16 %v7050, %v7050
    %v7057 = vpack.c.bf16 %v7051, %v7051
    %v7058 = vpack.c.bf16 %v7052, %v7052
    %v7059 = vpack.c.bf16 %v7053, %v7053
    %v7060 = vpack.c.bf16 %v7054, %v7054
    %v7061 = vld [vmem:[#allocation6] sm:$0xf]
    %v7062 = vld [vmem:[#allocation6 + $0x4] sm:$0xf]
    %v7063 = vld [vmem:[#allocation6 + $0x8] sm:$0xf]
    %v7064 = vld [vmem:[#allocation6 + $0xc] sm:$0xf]
    %v7065 = vld [vmem:[#allocation6 + $0x10] sm:$0xf]
    %v7066 = vld [vmem:[#allocation6 + $0x14] sm:$0xf]
    %v7067 = vld [vmem:[#allocation6 + $0x18] sm:$0xf]
    %v7068 = vld [vmem:[#allocation6 + $0x1c] sm:$0xf]
    %v7069 = vld [vmem:[#allocation6 + $0x20] sm:$0xf]
    %v7070 = vld [vmem:[#allocation6 + $0x24] sm:$0xf]
    %v7071 = vld [vmem:[#allocation6 + $0x28] sm:$0xf]
    %v7072 = vld [vmem:[#allocation6 + $0x2c] sm:$0xf]
    %v7073 = vld [vmem:[#allocation6 + $0x30] sm:$0xf]
    %v7074 = vld [vmem:[#allocation6 + $0x34] sm:$0xf]
    %v7075 = vld [vmem:[#allocation6 + $0x38] sm:$0xf]
    %v7076 = vld [vmem:[#allocation6 + $0x3c] sm:$0xf]
    %v7077 = vld [vmem:[#allocation6 + $0x40] sm:$0xf]
    %v7078 = vld [vmem:[#allocation6 + $0x44] sm:$0xf]
    %v7079 = vld [vmem:[#allocation6 + $0x48] sm:$0xf]
    %v7080 = vld [vmem:[#allocation6 + $0x4c] sm:$0xf]
    %v7081 = vld [vmem:[#allocation6 + $0x50] sm:$0xf]
    %v7082 = vld [vmem:[#allocation6 + $0x54] sm:$0xf]
    %v7083 = vld [vmem:[#allocation6 + $0x58] sm:$0xf]
    %v7084 = vld [vmem:[#allocation6 + $0x5c] sm:$0xf]
    %v7085 = vld [vmem:[#allocation6 + $0x60] sm:$0xf]
    %v7086 = vld [vmem:[#allocation6 + $0x64] sm:$0xf]
    %v7087 = vld [vmem:[#allocation6 + $0x68] sm:$0xf]
    %v7088 = vld [vmem:[#allocation6 + $0x6c] sm:$0xf]
    %v7089 = vld [vmem:[#allocation6 + $0x70] sm:$0xf]
    %v7090 = vld [vmem:[#allocation6 + $0x74] sm:$0xf]
    %v7091 = vld [vmem:[#allocation6 + $0x78] sm:$0xf]
    %v7092 = vld [vmem:[#allocation6 + $0x7c] sm:$0xf]
    %v7093 = vld [vmem:[#allocation6 + $0x80] sm:$0xf]
    %v7094 = vld [vmem:[#allocation6 + $0x84] sm:$0xf]
    %v7095 = vld [vmem:[#allocation6 + $0x88] sm:$0xf]
    %v7096 = vld [vmem:[#allocation6 + $0x8c] sm:$0xf]
    %v7097 = vld [vmem:[#allocation6 + $0x90] sm:$0xf]
    %v7098 = vld [vmem:[#allocation6 + $0x94] sm:$0xf]
    %v7099 = vld [vmem:[#allocation6 + $0x98] sm:$0xf]
    %v7100 = vld [vmem:[#allocation6 + $0x9c] sm:$0xf]
    %v7101 = vld [vmem:[#allocation6 + $0xa0] sm:$0xf]
    %v7102 = vld [vmem:[#allocation6 + $0xa4] sm:$0xf]
    %v7103 = vld [vmem:[#allocation6 + $0xa8] sm:$0xf]
    %v7104 = vld [vmem:[#allocation6 + $0xac] sm:$0xf]
    %v7105 = vld [vmem:[#allocation6 + $0xb0] sm:$0xf]
    %v7106 = vld [vmem:[#allocation6 + $0xb4] sm:$0xf]
    %v7107 = vld [vmem:[#allocation6 + $0xb8] sm:$0xf]
    %v7108 = vld [vmem:[#allocation6 + $0xbc] sm:$0xf]
    %v7109 = vld [vmem:[#allocation6 + $0xc0] sm:$0xf]
    %v7110 = vld [vmem:[#allocation6 + $0xc4] sm:$0xf]
    %v7111 = vld [vmem:[#allocation6 + $0xc8] sm:$0xf]
    %v7112 = vld [vmem:[#allocation6 + $0xcc] sm:$0xf]
    %v7113 = vld [vmem:[#allocation6 + $0xd0] sm:$0xf]
    %v7114 = vld [vmem:[#allocation6 + $0xd4] sm:$0xf]
    %v7115 = vld [vmem:[#allocation6 + $0xd8] sm:$0xf]
    %v7116 = vld [vmem:[#allocation6 + $0xdc] sm:$0xf]
    %v7117 = vld [vmem:[#allocation6 + $0xe0] sm:$0xf]
    %v7118 = vld [vmem:[#allocation6 + $0xe4] sm:$0xf]
    %v7119 = vld [vmem:[#allocation6 + $0xe8] sm:$0xf]
    %v7120 = vld [vmem:[#allocation6 + $0xec] sm:$0xf]
    %v7121 = vld [vmem:[#allocation6 + $0xf0] sm:$0xf]
    %v7122 = vld [vmem:[#allocation6 + $0xf4] sm:$0xf]
    %v7123 = vld [vmem:[#allocation6 + $0xf8] sm:$0xf]
    %v7124 = vld [vmem:[#allocation6 + $0xfc] sm:$0xf]
    %v7125 = vld [vmem:[#allocation6 + $0x100] sm:$0xf]
    %v7126 = vld [vmem:[#allocation6 + $0x104] sm:$0xf]
    %v7127 = vld [vmem:[#allocation6 + $0x108] sm:$0xf]
    %v7128 = vld [vmem:[#allocation6 + $0x10c] sm:$0xf]
    %v7129 = vld [vmem:[#allocation6 + $0x110] sm:$0xf]
    %v7130 = vld [vmem:[#allocation6 + $0x114] sm:$0xf]
    %v7131 = vld [vmem:[#allocation6 + $0x118] sm:$0xf]
    %v7132 = vld [vmem:[#allocation6 + $0x11c] sm:$0xf]
    %v7133 = vld [vmem:[#allocation6 + $0x120] sm:$0xf]
    %v7134 = vld [vmem:[#allocation6 + $0x124] sm:$0xf]
    %v7135 = vld [vmem:[#allocation6 + $0x128] sm:$0xf]
    %v7136 = vld [vmem:[#allocation6 + $0x12c] sm:$0xf]
    %v7137 = vld [vmem:[#allocation6 + $0x130] sm:$0xf]
    %v7138 = vld [vmem:[#allocation6 + $0x134] sm:$0xf]
    %v7139 = vld [vmem:[#allocation6 + $0x138] sm:$0xf]
    %v7140 = vld [vmem:[#allocation6 + $0x13c] sm:$0xf]
    %v7141 = vld [vmem:[#allocation6 + $0x140] sm:$0xf]
    %v7142 = vld [vmem:[#allocation6 + $0x144] sm:$0xf]
    %v7143 = vld [vmem:[#allocation6 + $0x148] sm:$0xf]
    %v7144 = vld [vmem:[#allocation6 + $0x14c] sm:$0xf]
    %v7145 = vld [vmem:[#allocation6 + $0x150] sm:$0xf]
    %v7146 = vld [vmem:[#allocation6 + $0x154] sm:$0xf]
    %v7147 = vld [vmem:[#allocation6 + $0x158] sm:$0xf]
    %v7148 = vld [vmem:[#allocation6 + $0x15c] sm:$0xf]
    %v7149 = vld [vmem:[#allocation6 + $0x160] sm:$0xf]
    %v7150 = vld [vmem:[#allocation6 + $0x164] sm:$0xf]
    %v7151 = vld [vmem:[#allocation6 + $0x168] sm:$0xf]
    %v7152 = vld [vmem:[#allocation6 + $0x16c] sm:$0xf]
    %v7153 = vld [vmem:[#allocation6 + $0x170] sm:$0xf]
    %v7154 = vld [vmem:[#allocation6 + $0x174] sm:$0xf]
    %v7155 = vld [vmem:[#allocation6 + $0x178] sm:$0xf]
    %v7156 = vld [vmem:[#allocation6 + $0x17c] sm:$0xf]
    %v7157 = vld [vmem:[#allocation7 + $0x18] sm:$0x1]
    %v7159 = vlaneseq
    %v7160 = vshrl.u32 %v7159, 7
    %v7161 = vsub.s32 0, %v7160
    %v7162 = vrot.slane %v7157, %v7161
    %v7260 = vunpack.c.l.b16 %v7061
    %v7261 = vunpack.c.l.b16 %v7062
    %v7262 = vunpack.c.l.b16 %v7063
    %v7263 = vunpack.c.l.b16 %v7064
    %v7264 = vunpack.c.l.b16 %v7065
    %v7265 = vunpack.c.l.b16 %v7066
    %v7266 = vunpack.c.l.b16 %v7067
    %v7267 = vunpack.c.l.b16 %v7068
    %v7268 = vunpack.c.l.b16 %v7069
    %v7269 = vunpack.c.l.b16 %v7070
    %v7270 = vunpack.c.l.b16 %v7071
    %v7271 = vunpack.c.l.b16 %v7072
    %v7272 = vunpack.c.l.b16 %v7073
    %v7273 = vunpack.c.l.b16 %v7074
    %v7274 = vunpack.c.l.b16 %v7075
    %v7275 = vunpack.c.l.b16 %v7076
    %v7276 = vunpack.c.l.b16 %v7077
    %v7277 = vunpack.c.l.b16 %v7078
    %v7278 = vunpack.c.l.b16 %v7079
    %v7279 = vunpack.c.l.b16 %v7080
    %v7280 = vunpack.c.l.b16 %v7081
    %v7281 = vunpack.c.l.b16 %v7082
    %v7282 = vunpack.c.l.b16 %v7083
    %v7283 = vunpack.c.l.b16 %v7084
    %v7284 = vunpack.c.l.b16 %v7085
    %v7285 = vunpack.c.l.b16 %v7086
    %v7286 = vunpack.c.l.b16 %v7087
    %v7287 = vunpack.c.l.b16 %v7088
    %v7288 = vunpack.c.l.b16 %v7089
    %v7289 = vunpack.c.l.b16 %v7090
    %v7290 = vunpack.c.l.b16 %v7091
    %v7291 = vunpack.c.l.b16 %v7092
    %v7292 = vunpack.c.l.b16 %v7093
    %v7293 = vunpack.c.l.b16 %v7094
    %v7294 = vunpack.c.l.b16 %v7095
    %v7295 = vunpack.c.l.b16 %v7096
    %v7296 = vunpack.c.l.b16 %v7097
    %v7297 = vunpack.c.l.b16 %v7098
    %v7298 = vunpack.c.l.b16 %v7099
    %v7299 = vunpack.c.l.b16 %v7100
    %v7300 = vunpack.c.l.b16 %v7101
    %v7301 = vunpack.c.l.b16 %v7102
    %v7302 = vunpack.c.l.b16 %v7103
    %v7303 = vunpack.c.l.b16 %v7104
    %v7304 = vunpack.c.l.b16 %v7105
    %v7305 = vunpack.c.l.b16 %v7106
    %v7306 = vunpack.c.l.b16 %v7107
    %v7307 = vunpack.c.l.b16 %v7108
    %v7308 = vunpack.c.l.b16 %v7109
    %v7309 = vunpack.c.l.b16 %v7110
    %v7310 = vunpack.c.l.b16 %v7111
    %v7311 = vunpack.c.l.b16 %v7112
    %v7312 = vunpack.c.l.b16 %v7113
    %v7313 = vunpack.c.l.b16 %v7114
    %v7314 = vunpack.c.l.b16 %v7115
    %v7315 = vunpack.c.l.b16 %v7116
    %v7316 = vunpack.c.l.b16 %v7117
    %v7317 = vunpack.c.l.b16 %v7118
    %v7318 = vunpack.c.l.b16 %v7119
    %v7319 = vunpack.c.l.b16 %v7120
    %v7320 = vunpack.c.l.b16 %v7121
    %v7321 = vunpack.c.l.b16 %v7122
    %v7322 = vunpack.c.l.b16 %v7123
    %v7323 = vunpack.c.l.b16 %v7124
    %v7324 = vunpack.c.l.b16 %v7125
    %v7325 = vunpack.c.l.b16 %v7126
    %v7326 = vunpack.c.l.b16 %v7127
    %v7327 = vunpack.c.l.b16 %v7128
    %v7328 = vunpack.c.l.b16 %v7129
    %v7329 = vunpack.c.l.b16 %v7130
    %v7330 = vunpack.c.l.b16 %v7131
    %v7331 = vunpack.c.l.b16 %v7132
    %v7332 = vunpack.c.l.b16 %v7133
    %v7333 = vunpack.c.l.b16 %v7134
    %v7334 = vunpack.c.l.b16 %v7135
    %v7335 = vunpack.c.l.b16 %v7136
    %v7336 = vunpack.c.l.b16 %v7137
    %v7337 = vunpack.c.l.b16 %v7138
    %v7338 = vunpack.c.l.b16 %v7139
    %v7339 = vunpack.c.l.b16 %v7140
    %v7340 = vunpack.c.l.b16 %v7141
    %v7341 = vunpack.c.l.b16 %v7142
    %v7342 = vunpack.c.l.b16 %v7143
    %v7343 = vunpack.c.l.b16 %v7144
    %v7344 = vunpack.c.l.b16 %v7145
    %v7345 = vunpack.c.l.b16 %v7146
    %v7346 = vunpack.c.l.b16 %v7147
    %v7347 = vunpack.c.l.b16 %v7148
    %v7348 = vunpack.c.l.b16 %v7149
    %v7349 = vunpack.c.l.b16 %v7150
    %v7350 = vunpack.c.l.b16 %v7151
    %v7351 = vunpack.c.l.b16 %v7152
    %v7352 = vunpack.c.l.b16 %v7153
    %v7353 = vunpack.c.l.b16 %v7154
    %v7354 = vunpack.c.l.b16 %v7155
    %v7355 = vunpack.c.l.b16 %v7156
    %v7356 = vpack.c.b16 %v7261, %v7260
    %v7357 = vpack.c.b16 %v7263, %v7262
    %v7358 = vpack.c.b16 %v7265, %v7264
    %v7359 = vpack.c.b16 %v7267, %v7266
    %v7360 = vpack.c.b16 %v7269, %v7268
    %v7361 = vpack.c.b16 %v7271, %v7270
    %v7362 = vpack.c.b16 %v7273, %v7272
    %v7363 = vpack.c.b16 %v7275, %v7274
    %v7364 = vpack.c.b16 %v7277, %v7276
    %v7365 = vpack.c.b16 %v7279, %v7278
    %v7366 = vpack.c.b16 %v7281, %v7280
    %v7367 = vpack.c.b16 %v7283, %v7282
    %v7368 = vpack.c.b16 %v7285, %v7284
    %v7369 = vpack.c.b16 %v7287, %v7286
    %v7370 = vpack.c.b16 %v7289, %v7288
    %v7371 = vpack.c.b16 %v7291, %v7290
    %v7372 = vpack.c.b16 %v7293, %v7292
    %v7373 = vpack.c.b16 %v7295, %v7294
    %v7374 = vpack.c.b16 %v7297, %v7296
    %v7375 = vpack.c.b16 %v7299, %v7298
    %v7376 = vpack.c.b16 %v7301, %v7300
    %v7377 = vpack.c.b16 %v7303, %v7302
    %v7378 = vpack.c.b16 %v7305, %v7304
    %v7379 = vpack.c.b16 %v7307, %v7306
    %v7380 = vpack.c.b16 %v7309, %v7308
    %v7381 = vpack.c.b16 %v7311, %v7310
    %v7382 = vpack.c.b16 %v7313, %v7312
    %v7383 = vpack.c.b16 %v7315, %v7314
    %v7384 = vpack.c.b16 %v7317, %v7316
    %v7385 = vpack.c.b16 %v7319, %v7318
    %v7386 = vpack.c.b16 %v7321, %v7320
    %v7387 = vpack.c.b16 %v7323, %v7322
    %v7388 = vpack.c.b16 %v7325, %v7324
    %v7389 = vpack.c.b16 %v7327, %v7326
    %v7390 = vpack.c.b16 %v7329, %v7328
    %v7391 = vpack.c.b16 %v7331, %v7330
    %v7392 = vpack.c.b16 %v7333, %v7332
    %v7393 = vpack.c.b16 %v7335, %v7334
    %v7394 = vpack.c.b16 %v7337, %v7336
    %v7395 = vpack.c.b16 %v7339, %v7338
    %v7396 = vpack.c.b16 %v7341, %v7340
    %v7397 = vpack.c.b16 %v7343, %v7342
    %v7398 = vpack.c.b16 %v7345, %v7344
    %v7399 = vpack.c.b16 %v7347, %v7346
    %v7400 = vpack.c.b16 %v7349, %v7348
    %v7401 = vpack.c.b16 %v7351, %v7350
    %v7402 = vpack.c.b16 %v7353, %v7352
    %v7403 = vpack.c.b16 %v7355, %v7354
    %7452 = vmatprep.subr.bf16.mxu0 0
    %7453 = vmatpush1.bf16.msra.mxu0 %v7356
    %7454 = vmatprep.subr.bf16.mxu0 0
    %7455 = vmatpush1.bf16.msra.mxu0 %v7357
    %7456 = vmatprep.subr.bf16.mxu0 0
    %7457 = vmatpush1.bf16.msra.mxu0 %v7358
    %7458 = vmatprep.subr.bf16.mxu0 0
    %7459 = vmatpush1.bf16.msra.mxu0 %v7359
    %7460 = vmatprep.subr.bf16.mxu0 0
    %7461 = vmatpush1.bf16.msra.mxu0 %v7360
    %7462 = vmatprep.subr.bf16.mxu0 0
    %7463 = vmatpush1.bf16.msra.mxu0 %v7361
    %7464 = vmatprep.subr.bf16.mxu0 0
    %7465 = vmatpush1.bf16.msra.mxu0 %v7362
    %7466 = vmatprep.subr.bf16.mxu0 0
    %7467 = vmatpush1.bf16.msra.mxu0 %v7363
    %7468 = vmatprep.subr.bf16.mxu0 0
    %7469 = vmatpush1.bf16.msra.mxu0 %v7364
    %7470 = vmatprep.subr.bf16.mxu0 0
    %7471 = vmatpush1.bf16.msra.mxu0 %v7365
    %7472 = vmatprep.subr.bf16.mxu0 0
    %7473 = vmatpush1.bf16.msra.mxu0 %v7366
    %7474 = vmatprep.subr.bf16.mxu0 0
    %7475 = vmatpush1.bf16.msra.mxu0 %v7367
    %7476 = vmatprep.subr.bf16.mxu0 0
    %7477 = vmatpush1.bf16.msra.mxu0 %v7368
    %7478 = vmatprep.subr.bf16.mxu0 0
    %7479 = vmatpush1.bf16.msra.mxu0 %v7369
    %7480 = vmatprep.subr.bf16.mxu0 0
    %7481 = vmatpush1.bf16.msra.mxu0 %v7370
    %7482 = vmatprep.subr.bf16.mxu0 0
    %7483 = vmatpush1.bf16.msra.mxu0 %v7371
    %7484 = vmatprep.mubr.bf16.mxu0 %v7056
    %7485 = vmatmul.mubr.bf16.gmra.mrb[0].mxu0 %v7055
    %v7486 = vpop.f32.mrb[0].mxu0
    %v7487 = vadd.f32 %v7162, %v7486
    %v7488 = vpop.f32.mrb[0].mxu0
    %v7489 = vpop.f32.mrb[0].mxu0
    %v7490 = vpop.f32.mrb[0].mxu0
    %7491 = vdwg.mxu0
    %7492 = vmatprep.subr.bf16.mxu0 0
    %7493 = vmatpush1.bf16.msra.mxu0 %v7372
    %7494 = vmatprep.subr.bf16.mxu0 0
    %7495 = vmatpush1.bf16.msra.mxu0 %v7373
    %7496 = vmatprep.subr.bf16.mxu0 0
    %7497 = vmatpush1.bf16.msra.mxu0 %v7374
    %7498 = vmatprep.subr.bf16.mxu0 0
    %7499 = vmatpush1.bf16.msra.mxu0 %v7375
    %7500 = vmatprep.subr.bf16.mxu0 0
    %7501 = vmatpush1.bf16.msra.mxu0 %v7376
    %7502 = vmatprep.subr.bf16.mxu0 0
    %7503 = vmatpush1.bf16.msra.mxu0 %v7377
    %7504 = vmatprep.subr.bf16.mxu0 0
    %7505 = vmatpush1.bf16.msra.mxu0 %v7378
    %7506 = vmatprep.subr.bf16.mxu0 0
    %7507 = vmatpush1.bf16.msra.mxu0 %v7379
    %7508 = vmatprep.subr.bf16.mxu0 0
    %7509 = vmatpush1.bf16.msra.mxu0 %v7380
    %7510 = vmatprep.subr.bf16.mxu0 0
    %7511 = vmatpush1.bf16.msra.mxu0 %v7381
    %7512 = vmatprep.subr.bf16.mxu0 0
    %7513 = vmatpush1.bf16.msra.mxu0 %v7382
    %7514 = vmatprep.subr.bf16.mxu0 0
    %7515 = vmatpush1.bf16.msra.mxu0 %v7383
    %7516 = vmatprep.subr.bf16.mxu0 0
    %7517 = vmatpush1.bf16.msra.mxu0 %v7384
    %7518 = vmatprep.subr.bf16.mxu0 0
    %7519 = vmatpush1.bf16.msra.mxu0 %v7385
    %7520 = vmatprep.subr.bf16.mxu0 0
    %7521 = vmatpush1.bf16.msra.mxu0 %v7386
    %7522 = vmatprep.subr.bf16.mxu0 0
    %7523 = vmatpush1.bf16.msra.mxu0 %v7387
    %7524 = vmatprep.mubr.bf16.mxu0 %v7058
    %7525 = vmatmul.mubr.bf16.gmra.mrb[0].mxu0 %v7057
    %v7526 = vpop.f32.mrb[0].mxu0
    %v7527 = vadd.f32 %v7487, %v7526
    %v7528 = vpop.f32.mrb[0].mxu0
    %v7529 = vpop.f32.mrb[0].mxu0
    %v7530 = vpop.f32.mrb[0].mxu0
    %7531 = vdwg.mxu0
    %7532 = vmatprep.subr.bf16.mxu0 0
    %7533 = vmatpush1.bf16.msra.mxu0 %v7388
    %7534 = vmatprep.subr.bf16.mxu0 0
    %7535 = vmatpush1.bf16.msra.mxu0 %v7389
    %7536 = vmatprep.subr.bf16.mxu0 0
    %7537 = vmatpush1.bf16.msra.mxu0 %v7390
    %7538 = vmatprep.subr.bf16.mxu0 0
    %7539 = vmatpush1.bf16.msra.mxu0 %v7391
    %7540 = vmatprep.subr.bf16.mxu0 0
    %7541 = vmatpush1.bf16.msra.mxu0 %v7392
    %7542 = vmatprep.subr.bf16.mxu0 0
    %7543 = vmatpush1.bf16.msra.mxu0 %v7393
    %7544 = vmatprep.subr.bf16.mxu0 0
    %7545 = vmatpush1.bf16.msra.mxu0 %v7394
    %7546 = vmatprep.subr.bf16.mxu0 0
    %7547 = vmatpush1.bf16.msra.mxu0 %v7395
    %7548 = vmatprep.subr.bf16.mxu0 0
    %7549 = vmatpush1.bf16.msra.mxu0 %v7396
    %7550 = vmatprep.subr.bf16.mxu0 0
    %7551 = vmatpush1.bf16.msra.mxu0 %v7397
    %7552 = vmatprep.subr.bf16.mxu0 0
    %7553 = vmatpush1.bf16.msra.mxu0 %v7398
    %7554 = vmatprep.subr.bf16.mxu0 0
    %7555 = vmatpush1.bf16.msra.mxu0 %v7399
    %7556 = vmatprep.subr.bf16.mxu0 0
    %7557 = vmatpush1.bf16.msra.mxu0 %v7400
    %7558 = vmatprep.subr.bf16.mxu0 0
    %7559 = vmatpush1.bf16.msra.mxu0 %v7401
    %7560 = vmatprep.subr.bf16.mxu0 0
    %7561 = vmatpush1.bf16.msra.mxu0 %v7402
    %7562 = vmatprep.subr.bf16.mxu0 0
    %7563 = vmatpush1.bf16.msra.mxu0 %v7403
    %7564 = vmatprep.mubr.bf16.mxu0 %v7060
    %7565 = vmatmul.mubr.bf16.gmra.mrb[0].mxu0 %v7059
    %v7566 = vpop.f32.mrb[0].mxu0
    %v7567 = vadd.f32 %v7527, %v7566
    %v7568 = vpop.f32.mrb[0].mxu0
    %v7569 = vpop.f32.mrb[0].mxu0
    %v7570 = vpop.f32.mrb[0].mxu0
    %7571 = vdwg.mxu0
    %7572 = vst [vmem:[%s7] sm:$0xff] %v7049
    %7573 = vst [vmem:[%s7 + $0x8] sm:$0xff] %v7050
    %7574 = vst [vmem:[%s7 + $0x10] sm:$0xff] %v7051
    %7575 = vst [vmem:[%s7 + $0x18] sm:$0xff] %v7052
    %7576 = vst [vmem:[%s7 + $0x20] sm:$0xff] %v7053
    %7577 = vst [vmem:[%s7 + $0x28] sm:$0xff] %v7054
    %7578 = vst [vmem:[%s7 + $0x30] sm:$0xff] %v7567
    // Predicated region
    $region46: #{gru_model_forward.1} parent=1 // pred_check
      _
    $region47: #{gru_model_forward.1} parent=1 // pred_check_branch
      %7580 = sbr.rel (0) target = $region49
    $region48: #{gru_model_forward.1} parent=1 // pred_region
      _
    $region49: #{gru_model_forward.1} parent=1 // pred_fallthru
      _
    // Predicated region
    $region50: #{gru_model_forward.1} parent=1 // pred_check
      _
    $region51: #{gru_model_forward.1} parent=1 // pred_check_branch
      %7582 = sbr.rel (0) target = $region53
    $region52: #{gru_model_forward.1} parent=1 // pred_region
      _
    $region53: #{gru_model_forward.1} parent=1 // pred_fallthru
      _
    %7583 = vsyncpa [#allocation3], 1
    %7584 = vsyncpa [#allocation5], 1
    %7585 = vsyncpa [#allocation8], 1

</llo_original>
